<compile_context>
chip_gen: v7x
topology: tpu7x:2x2x1
jax: 0.10.0
libtpu: 0.0.40
codegen_flags: <defaults>
</compile_context>

<pallas_src>
import math
import functools

import jax
import jax.numpy as jnp
from jax.experimental import pallas as pl
from jax.experimental.pallas import tpu as pltpu


def _round_up(x, m):
    return (x + m - 1) // m * m


# ----------------------------------------------------------------------------
# Kernel
# ----------------------------------------------------------------------------
def _masked_layernorm(x, gamma, beta, d_true, eps=1e-5):
    """LayerNorm over the *true* d_model features.  `x` has exact zeros in all
    padded feature columns, so sums over the padded width equal sums over the
    true width; gamma/beta are zero-padded, so padded columns stay zero."""
    inv_d = 1.0 / d_true
    mean = jnp.sum(x, axis=-1, keepdims=True) * inv_d
    var = jnp.sum(x * x, axis=-1, keepdims=True) * inv_d - mean * mean
    return (x - mean) * jax.lax.rsqrt(var + eps) * gamma + beta


def fused_encoder_kernel(x_ref, pe_ref, bias_ref, w_in_ref, b_in_ref,
                         wqkv_ref, bqkv_ref, wo_ref, bo_ref, g1_ref, be1_ref,
                         w1_ref, b1_ref, w2_ref, b2_ref, g2_ref, be2_ref,
                         out_ref, h_ref,
                         *, batch_per_chunk, t_pad, num_heads, d_head_pad,
                         d_model_true):
    layer = pl.program_id(1)
    d_pad = num_heads * d_head_pad

    # ---- layer 0: input projection + positional encoding (h stays resident) ----
    @pl.when(layer == 0)
    def _():
        x = x_ref[...].astype(jnp.bfloat16)                         # (Mc, Fin_p)
        h0 = jnp.dot(x, w_in_ref[...], preferred_element_type=jnp.float32)
        h_ref[...] = h0 + b_in_ref[...] + pe_ref[...]               # (Mc, Dp) f32

    h = h_ref[...]                                                  # (Mc, Dp) f32
    h_bf = h.astype(jnp.bfloat16)

    # ---- fused QKV projection over all Mc = Bc*Tp rows (one big-M MXU matmul) --
    qkv = jnp.dot(h_bf, wqkv_ref[0], preferred_element_type=jnp.float32)
    qkv = qkv + bqkv_ref[0]                                         # (Mc, 3*Dp) f32
    # Split rows back into (Bc, Tp, 3Dp): Tp % 8 == 0 so this reshape is
    # layout-preserving (sublane split on f32 tiles).
    qkv3 = qkv.reshape(batch_per_chunk, t_pad, 3 * d_pad)

    key_bias = bias_ref[...]                                        # (Bc, 1, Tp)

    # ---- scaled-dot-product attention, batched over the chunk, per head -------
    # The 1/sqrt(d_head) scale is pre-folded into Wq/bq on the host.
    # TODO(synk): for long speech sequences (T >~ 1k) block the key axis
    # (flash-style online softmax) so scores are (Bc, Tp, tk) instead of (Bc, Tp, Tp).
    head_ctx = []
    for hd in range(num_heads):
        lo = hd * d_head_pad
        qh = qkv3[:, :, 0 * d_pad + lo: 0 * d_pad + lo + d_head_pad].astype(jnp.bfloat16)
        kh = qkv3[:, :, 1 * d_pad + lo: 1 * d_pad + lo + d_head_pad].astype(jnp.bfloat16)
        vh = qkv3[:, :, 2 * d_pad + lo: 2 * d_pad + lo + d_head_pad].astype(jnp.bfloat16)
        # q @ k^T without materializing a transpose (batched over Bc).
        s = jnp.einsum('btd,bsd->bts', qh, kh,
                       preferred_element_type=jnp.float32)          # (Bc, Tp, Tp)
        s = s + key_bias                                            # mask padded keys
        s = s - jnp.max(s, axis=-1, keepdims=True)
        p = jnp.exp(s)
        p = p * pl.reciprocal(jnp.sum(p, axis=-1, keepdims=True), approx=True)
        head_ctx.append(jnp.einsum('bts,bsd->btd', p.astype(jnp.bfloat16), vh,
                                   preferred_element_type=jnp.float32))
    ctx = jnp.concatenate(head_ctx, axis=-1)                        # (Bc, Tp, Dp)
    ctx = ctx.reshape(batch_per_chunk * t_pad, d_pad)               # (Mc, Dp)

    attn_out = jnp.dot(ctx.astype(jnp.bfloat16), wo_ref[0],
                       preferred_element_type=jnp.float32) + bo_ref[0]
    x1 = _masked_layernorm(h + attn_out, g1_ref[0], be1_ref[0], d_model_true)

    # ---- position-wise FFN ('ff' style: Linear -> ReLU -> Linear) --------------
    ff = jnp.dot(x1.astype(jnp.bfloat16), w1_ref[0],
                 preferred_element_type=jnp.float32) + b1_ref[0]
    ff = jnp.maximum(ff, 0.0)
    ff = jnp.dot(ff.astype(jnp.bfloat16), w2_ref[0],
                 preferred_element_type=jnp.float32) + b2_ref[0]
    y = _masked_layernorm(x1 + ff, g2_ref[0], be2_ref[0], d_model_true)

    h_ref[...] = y                                                  # carry to next layer

    @pl.when(layer == pl.num_programs(1) - 1)
    def _():
        out_ref[...] = y                                            # lane-dense slab


# ----------------------------------------------------------------------------
# Host-side helpers
# ----------------------------------------------------------------------------
def positional_encoding(length, d_model):
    position = jnp.arange(length, dtype=jnp.float32)[:, None]
    div_term = jnp.exp(jnp.arange(0, d_model, 2, dtype=jnp.float32)
                       * (-math.log(10000.0) / d_model))
    pe = jnp.zeros((length, d_model), dtype=jnp.float32)
    pe = pe.at[:, 0::2].set(jnp.sin(position * div_term))
    pe = pe.at[:, 1::2].set(jnp.cos(position * div_term)[:, : d_model // 2])
    return pe


def get_attn_pad_bias(input_lengths, seq_len):
    # get_attn_pad_mask: True where the KEY position is padding -> additive -1e9
    key_pos = jnp.arange(seq_len)[None, :]
    padded = key_pos >= input_lengths[:, None]
    return jnp.where(padded, -1e9, 0.0).astype(jnp.float32)        # (B, seq_len)


# ----------------------------------------------------------------------------
# Wrapper: pack params into the padded kernel layout and run one pallas_call
# ----------------------------------------------------------------------------
def speech_transformer_encoder(inputs, input_lengths, params, num_heads,
                               num_batch_chunks=1):
    """inputs: (B, T, Fin) float32; input_lengths: (B,) int32."""
    B, T, Fin = inputs.shape
    D = params["w_in"].shape[1]
    F = params["layers"][0]["w1"].shape[1]
    L = len(params["layers"])
    H = num_heads
    assert D % H == 0
    d_head = D // H

    # Head-aware padded layout: Dp = H * dh_p is a multiple of 128.
    align = 128 // math.gcd(H, 128)
    dh_p = _round_up(d_head, align)
    Dp = H * dh_p
    Fin_p = _round_up(Fin, 128)
    Fp = _round_up(F, 128)
    Tp = _round_up(T, 8)

    assert B % num_batch_chunks == 0
    Bc = B // num_batch_chunks
    Mc = Bc * Tp
    M = B * Tp

    heads = jnp.arange(D) // d_head
    offs = jnp.arange(D) % d_head
    col_map = heads * dh_p + offs                  # true feature j -> padded column

    def scatter_cols(w):
        out = jnp.zeros(w.shape[:-1] + (Dp,), w.dtype)
        return out.at[..., col_map].set(w)

    def scatter_rows(w):
        out = jnp.zeros((Dp,) + w.shape[1:], w.dtype)
        return out.at[col_map].set(w)

    def pad_last(w, n):
        return jnp.pad(w, [(0, 0)] * (w.ndim - 1) + [(0, n - w.shape[-1])])

    def pad_first(w, n):
        return jnp.pad(w, [(0, n - w.shape[0])] + [(0, 0)] * (w.ndim - 1))

    # ---- inputs / positional encoding / pad bias (broadcasts hoisted here) -----
    x = jnp.pad(inputs, ((0, 0), (0, Tp - T), (0, Fin_p - Fin))).reshape(M, Fin_p)
    pe = scatter_cols(pad_first(positional_encoding(T, D), Tp))      # (Tp, Dp)
    pe_flat = jnp.tile(pe, (B, 1))                                   # (M, Dp)
    key_bias = get_attn_pad_bias(input_lengths, Tp)[:, None, :]      # (B, 1, Tp)

    # ---- weights: head-aware padded, bf16 matmul weights, f32 biases/LN --------
    w_in = scatter_cols(pad_first(params["w_in"], Fin_p)).astype(jnp.bfloat16)
    b_in = scatter_cols(params["b_in"])                              # (1, Dp)

    def stack(fn):
        return jnp.stack([fn(lp) for lp in params["layers"]], axis=0)

    s_att = 1.0 / math.sqrt(d_head)   # attention scale folded into Wq / bq (free)
    wqkv = stack(lambda lp: jnp.concatenate(
        [scatter_cols(scatter_rows(lp["wq"])) * s_att,
         scatter_cols(scatter_rows(lp["wk"])),
         scatter_cols(scatter_rows(lp["wv"]))],
        axis=-1)).astype(jnp.bfloat16)                               # (L, Dp, 3Dp)
    bqkv = stack(lambda lp: jnp.concatenate(
        [scatter_cols(lp["bq"]) * s_att,
         scatter_cols(lp["bk"]),
         scatter_cols(lp["bv"])], axis=-1))                          # (L, 1, 3Dp)
    wo = stack(lambda lp: scatter_cols(scatter_rows(lp["wo"]))).astype(jnp.bfloat16)
    bo = stack(lambda lp: scatter_cols(lp["bo"]))
    g1 = stack(lambda lp: scatter_cols(lp["g1"]))
    be1 = stack(lambda lp: scatter_cols(lp["be1"]))
    w1 = stack(lambda lp: pad_last(scatter_rows(lp["w1"]), Fp)).astype(jnp.bfloat16)
    b1 = stack(lambda lp: pad_last(lp["b1"], Fp))
    w2 = stack(lambda lp: scatter_cols(pad_first(lp["w2"], Fp))).astype(jnp.bfloat16)
    b2 = stack(lambda lp: scatter_cols(lp["b2"]))
    g2 = stack(lambda lp: scatter_cols(lp["g2"]))
    be2 = stack(lambda lp: scatter_cols(lp["be2"]))

    # ---- pallas_call: grid = (batch chunks [parallel], layers [arbitrary]) -----
    def layer_spec(arr):                       # stacked (L, a, b), streamed over l
        return pl.BlockSpec((1,) + arr.shape[1:], lambda g, l: (l, 0, 0))

    in_specs = [
        pl.BlockSpec((Mc, Fin_p), lambda g, l: (g, 0)),      # x (flattened rows)
        pl.BlockSpec((Mc, Dp), lambda g, l: (g, 0)),         # positional encoding
        pl.BlockSpec((Bc, 1, Tp), lambda g, l: (g, 0, 0)),   # key pad bias
        pl.BlockSpec((Fin_p, Dp), lambda g, l: (0, 0)),      # w_in
        pl.BlockSpec((1, Dp), lambda g, l: (0, 0)),          # b_in
    ] + [layer_spec(a) for a in
         (wqkv, bqkv, wo, bo, g1, be1, w1, b1, w2, b2, g2, be2)]

    out_specs = pl.BlockSpec((Mc, Dp), lambda g, l: (g, 0))

    # VMEM budget: double-buffered bf16 layer weights + resident activations.
    # Clamped to [32 MiB, 64 MiB] -> valid on v5e/v6e (128 MiB) and v7x (64 MiB).
    bytes_layer = 2 * (Dp * 3 * Dp + Dp * Dp + 2 * Dp * Fp) + 4 * (9 * Dp + Fp)
    bytes_act = 4 * (Mc * (Fin_p + 6 * Dp + Fp) + 2 * Bc * Tp * Tp)
    vmem_limit = int(min(max(2 * bytes_layer + bytes_act + 2 * Fin_p * Dp + (2 << 20),
                             32 * 1024 * 1024), 64 * 1024 * 1024))

    kernel = functools.partial(
        fused_encoder_kernel,
        batch_per_chunk=Bc, t_pad=Tp, num_heads=H, d_head_pad=dh_p,
        d_model_true=D)

    out_flat = pl.pallas_call(
        kernel,
        out_shape=jax.ShapeDtypeStruct((M, Dp), jnp.float32),
        grid=(num_batch_chunks, L),
        in_specs=in_specs,
        out_specs=out_specs,
        scratch_shapes=[pltpu.VMEM((Mc, Dp), jnp.float32)],   # resident hidden state
        compiler_params=pltpu.CompilerParams(
            dimension_semantics=("parallel", "arbitrary"),
            vmem_limit_bytes=vmem_limit),
    )(x, pe_flat, key_bias, w_in, b_in,
      wqkv, bqkv, wo, bo, g1, be1, w1, b1, w2, b2, g2, be2)

    out = out_flat.reshape(B, Tp, Dp)[:, :T, :]
    out = jnp.take(out, col_map, axis=-1)      # back to the true (B, T, D) layout
    return out, input_lengths


# ----------------------------------------------------------------------------
# Deterministic parameter initialization (synthetic, no checkpoint)
# ----------------------------------------------------------------------------
def init_params(key, input_dim, d_model, d_ff, num_layers):
    def dense(k, shape, scale):
        return (jax.random.normal(k, shape, jnp.float32) * scale).astype(jnp.float32)

    keys = jax.random.split(key, 2 + num_layers)
    params = {
        "w_in": dense(keys[0], (input_dim, d_model), 1.0 / math.sqrt(input_dim)),
        "b_in": jnp.zeros((1, d_model), jnp.float32),
        "layers": [],
    }
    for li in range(num_layers):
        lk = jax.random.split(keys[2 + li], 6)
        s = 1.0 / math.sqrt(d_model)
        params["layers"].append({
            "wq": dense(lk[0], (d_model, d_model), s), "bq": jnp.zeros((1, d_model), jnp.float32),
            "wk": dense(lk[1], (d_model, d_model), s), "bk": jnp.zeros((1, d_model), jnp.float32),
            "wv": dense(lk[2], (d_model, d_model), s), "bv": jnp.zeros((1, d_model), jnp.float32),
            "wo": dense(lk[3], (d_model, d_model), s), "bo": jnp.zeros((1, d_model), jnp.float32),
            "g1": jnp.ones((1, d_model), jnp.float32), "be1": jnp.zeros((1, d_model), jnp.float32),
            "w1": dense(lk[4], (d_model, d_ff), s), "b1": jnp.zeros((1, d_ff), jnp.float32),
            "w2": dense(lk[5], (d_ff, d_model), 1.0 / math.sqrt(d_ff)),
            "b2": jnp.zeros((1, d_model), jnp.float32),
            "g2": jnp.ones((1, d_model), jnp.float32), "be2": jnp.zeros((1, d_model), jnp.float32),
        })
    return params


# ----------------------------------------------------------------------------
# Pure-JAX reference (f32) for a tolerance check
# ----------------------------------------------------------------------------
def _layernorm_ref(x, gamma, beta, eps=1e-5):
    mean = jnp.mean(x, axis=-1, keepdims=True)
    var = jnp.mean((x - mean) ** 2, axis=-1, keepdims=True)
    return (x - mean) * jax.lax.rsqrt(var + eps) * gamma + beta


def reference_forward(inputs, input_lengths, params, num_heads):
    B, T, _ = inputs.shape
    D = params["w_in"].shape[1]
    d_head = D // num_heads
    h = inputs @ params["w_in"] + params["b_in"] + positional_encoding(T, D)[None]
    bias = get_attn_pad_bias(input_lengths, T)[:, None, :]          # (B, 1, T)
    for lp in params["layers"]:
        q = h @ lp["wq"] + lp["bq"]
        k = h @ lp["wk"] + lp["bk"]
        v = h @ lp["wv"] + lp["bv"]
        ctx = []
        for hd in range(num_heads):
            sl = slice(hd * d_head, (hd + 1) * d_head)
            s = jnp.einsum("btd,bsd->bts", q[..., sl], k[..., sl]) / math.sqrt(d_head)
            p = jax.nn.softmax(s + bias, axis=-1)
            ctx.append(jnp.einsum("bts,bsd->btd", p, v[..., sl]))
        ctx = jnp.concatenate(ctx, axis=-1)
        x1 = _layernorm_ref(h + ctx @ lp["wo"] + lp["bo"], lp["g1"], lp["be1"])
        ff = jnp.maximum(x1 @ lp["w1"] + lp["b1"], 0.0) @ lp["w2"] + lp["b2"]
        h = _layernorm_ref(x1 + ff, lp["g2"], lp["be2"])
    return h


# ----------------------------------------------------------------------------
if __name__ == "__main__":
    # Small shapes consistent with the module's forward:
    #   batch=2, frame_length=8, features(input_dim)=16, d_model=32,
    #   d_ff=64, num_heads=4, num_layers=2
    B, T, Fin = 2, 8, 16
    d_model, d_ff, num_heads, num_layers = 32, 64, 4, 2

    key = jax.random.PRNGKey(0)
    k_x, k_p = jax.random.split(key)
    inputs = jax.random.normal(k_x, (B, T, Fin), jnp.float32)
    input_lengths = jnp.array([8, 5], dtype=jnp.int32)

    params = init_params(k_p, Fin, d_model, d_ff, num_layers)

    fwd = jax.jit(functools.partial(speech_transformer_encoder, num_heads=num_heads))
    outputs, out_lengths = fwd(inputs, input_lengths, params)
    jax.block_until_ready(outputs)
    jax.block_until_ready(out_lengths)

    assert outputs.shape == (B, T, d_model)
    assert bool(jnp.all(jnp.isfinite(outputs)))

    # Loose tolerance check vs. a pure-JAX f32 reference (kernel matmuls run bf16).
    ref = reference_forward(inputs, input_lengths, params, num_heads)
    max_err = float(jnp.max(jnp.abs(outputs - ref)))
    assert max_err < 0.25, f"kernel deviates from reference: max_err={max_err}"

    print("KERNEL_OK")
</pallas_src>

<mosaic_0001>
module attributes {stable_mosaic.version = 11 : i64} {
  func.func @fused_encoder_kernel(%arg0: i32, %arg1: i32, %arg2: memref<16x128xf32, #tpu.memory_space<vmem>>, %arg3: memref<16x128xf32, #tpu.memory_space<vmem>>, %arg4: memref<2x1x8xf32, #tpu.memory_space<vmem>>, %arg5: memref<128x128xbf16, #tpu.memory_space<vmem>>, %arg6: memref<1x128xf32, #tpu.memory_space<vmem>>, %arg7: memref<1x128x384xbf16, #tpu.memory_space<vmem>>, %arg8: memref<1x1x384xf32, #tpu.memory_space<vmem>>, %arg9: memref<1x128x128xbf16, #tpu.memory_space<vmem>>, %arg10: memref<1x1x128xf32, #tpu.memory_space<vmem>>, %arg11: memref<1x1x128xf32, #tpu.memory_space<vmem>>, %arg12: memref<1x1x128xf32, #tpu.memory_space<vmem>>, %arg13: memref<1x128x128xbf16, #tpu.memory_space<vmem>>, %arg14: memref<1x1x128xf32, #tpu.memory_space<vmem>>, %arg15: memref<1x128x128xbf16, #tpu.memory_space<vmem>>, %arg16: memref<1x1x128xf32, #tpu.memory_space<vmem>>, %arg17: memref<1x1x128xf32, #tpu.memory_space<vmem>>, %arg18: memref<1x1x128xf32, #tpu.memory_space<vmem>>, %arg19: memref<16x128xf32, #tpu.memory_space<vmem>>, %arg20: memref<16x128xf32, #tpu.memory_space<vmem>>) attributes {dimension_semantics = [#tpu.dimension_semantics<parallel>, #tpu.dimension_semantics<arbitrary>], iteration_bounds = array<i64: 1, 2>, scalar_prefetch = 0 : i64, scratch_operands = 1 : i64, tpu.core_type = #tpu.core_type<tc>, window_params = [{transform_indices = @transform_0, window_bounds = array<i64: 16, 128>}, {transform_indices = @transform_1, window_bounds = array<i64: 16, 128>}, {transform_indices = @transform_2, window_bounds = array<i64: 2, 1, 8>}, {pipeline_mode = #tpu.pipeline_mode<synchronous>, transform_indices = @transform_3, window_bounds = array<i64: 128, 128>}, {pipeline_mode = #tpu.pipeline_mode<synchronous>, transform_indices = @transform_4, window_bounds = array<i64: 1, 128>}, {transform_indices = @transform_5, window_bounds = array<i64: 1, 128, 384>}, {transform_indices = @transform_6, window_bounds = array<i64: 1, 1, 384>}, {transform_indices = @transform_7, window_bounds = array<i64: 1, 128, 128>}, {transform_indices = @transform_8, window_bounds = array<i64: 1, 1, 128>}, {transform_indices = @transform_9, window_bounds = array<i64: 1, 1, 128>}, {transform_indices = @transform_10, window_bounds = array<i64: 1, 1, 128>}, {transform_indices = @transform_11, window_bounds = array<i64: 1, 128, 128>}, {transform_indices = @transform_12, window_bounds = array<i64: 1, 1, 128>}, {transform_indices = @transform_13, window_bounds = array<i64: 1, 128, 128>}, {transform_indices = @transform_14, window_bounds = array<i64: 1, 1, 128>}, {transform_indices = @transform_15, window_bounds = array<i64: 1, 1, 128>}, {transform_indices = @transform_16, window_bounds = array<i64: 1, 1, 128>}, {transform_indices = @transform_17, window_bounds = array<i64: 16, 128>}]} {
    %c0_i32 = arith.constant 0 : i32
    %0 = arith.cmpi eq, %arg1, %c0_i32 : i32
    %1 = arith.extui %0 : i1 to i32
    %c0_i32_0 = arith.constant 0 : i32
    %2 = arith.cmpi ne, %1, %c0_i32_0 : i32
    scf.if %2 {
      %c0_74 = arith.constant 0 : index
      %c0_75 = arith.constant 0 : index
      %184 = vector.load %arg2[%c0_74, %c0_75] : memref<16x128xf32, #tpu.memory_space<vmem>>, vector<16x128xf32>
      %185 = arith.truncf %184 : vector<16x128xf32> to vector<16x128xbf16>
      %c0_76 = arith.constant 0 : index
      %c0_77 = arith.constant 0 : index
      %186 = vector.load %arg5[%c0_76, %c0_77] : memref<128x128xbf16, #tpu.memory_space<vmem>>, vector<128x128xbf16>
      %cst_78 = arith.constant dense<0.000000e+00> : vector<16x128xf32>
      %187 = tpu.matmul %185, %186, %cst_78 {dimension_numbers = #tpu.dot_dimension_numbers<[1], [0], [0], [1], [0, 0, 1, 1], [], []>} : vector<16x128xbf16>, vector<128x128xbf16>, vector<16x128xf32> -> vector<16x128xf32>
      %c0_79 = arith.constant 0 : index
      %c0_80 = arith.constant 0 : index
      %188 = vector.load %arg6[%c0_79, %c0_80] : memref<1x128xf32, #tpu.memory_space<vmem>>, vector<1x128xf32>
      %189 = vector.broadcast %188 : vector<1x128xf32> to vector<16x128xf32>
      %190 = arith.addf %187, %189 : vector<16x128xf32>
      %c0_81 = arith.constant 0 : index
      %c0_82 = arith.constant 0 : index
      %191 = vector.load %arg3[%c0_81, %c0_82] : memref<16x128xf32, #tpu.memory_space<vmem>>, vector<16x128xf32>
      %192 = arith.addf %190, %191 : vector<16x128xf32>
      %c0_83 = arith.constant 0 : index
      %c0_84 = arith.constant 0 : index
      %193 = vector.load %arg20[%c0_83, %c0_84] : memref<16x128xf32, #tpu.memory_space<vmem>>, vector<16x128xf32>
      tpu.vector_store %arg20[%c0_83, %c0_84], %192 {strides = array<i32>} : memref<16x128xf32, #tpu.memory_space<vmem>>, vector<16x128xf32>,
    } else {
    }
    %c0 = arith.constant 0 : index
    %c0_1 = arith.constant 0 : index
    %3 = vector.load %arg20[%c0, %c0_1] : memref<16x128xf32, #tpu.memory_space<vmem>>, vector<16x128xf32>
    %4 = arith.truncf %3 : vector<16x128xf32> to vector<16x128xbf16>
    %c0_2 = arith.constant 0 : index
    %c0_3 = arith.constant 0 : index
    %c0_4 = arith.constant 0 : index
    %5 = vector.load %arg7[%c0_2, %c0_3, %c0_4] : memref<1x128x384xbf16, #tpu.memory_space<vmem>>, vector<1x128x384xbf16>
    %6 = vector.shape_cast %5 : vector<1x128x384xbf16> to vector<128x384xbf16>
    %cst = arith.constant dense<0.000000e+00> : vector<16x384xf32>
    %7 = tpu.matmul %4, %6, %cst {dimension_numbers = #tpu.dot_dimension_numbers<[1], [0], [0], [1], [0, 0, 1, 1], [], []>} : vector<16x128xbf16>, vector<128x384xbf16>, vector<16x384xf32> -> vector<16x384xf32>
    %c0_5 = arith.constant 0 : index
    %c0_6 = arith.constant 0 : index
    %c0_7 = arith.constant 0 : index
    %8 = vector.load %arg8[%c0_5, %c0_6, %c0_7] : memref<1x1x384xf32, #tpu.memory_space<vmem>>, vector<1x1x384xf32>
    %9 = vector.shape_cast %8 : vector<1x1x384xf32> to vector<1x384xf32>
    %10 = vector.broadcast %9 : vector<1x384xf32> to vector<16x384xf32>
    %11 = arith.addf %7, %10 : vector<16x384xf32>
    %12 = vector.shape_cast %11 : vector<16x384xf32> to vector<2x8x384xf32>
    %c0_8 = arith.constant 0 : index
    %c0_9 = arith.constant 0 : index
    %c0_10 = arith.constant 0 : index
    %13 = vector.load %arg4[%c0_8, %c0_9, %c0_10] : memref<2x1x8xf32, #tpu.memory_space<vmem>>, vector<2x1x8xf32>
    %14 = vector.extract_strided_slice %12 {offsets = [0, 0, 0], sizes = [2, 8, 32], strides = [1, 1, 1]} : vector<2x8x384xf32> to vector<2x8x32xf32>
    %15 = arith.truncf %14 : vector<2x8x32xf32> to vector<2x8x32xbf16>
    %16 = vector.extract_strided_slice %12 {offsets = [0, 0, 128], sizes = [2, 8, 32], strides = [1, 1, 1]} : vector<2x8x384xf32> to vector<2x8x32xf32>
    %17 = arith.truncf %16 : vector<2x8x32xf32> to vector<2x8x32xbf16>
    %18 = vector.extract_strided_slice %12 {offsets = [0, 0, 256], sizes = [2, 8, 32], strides = [1, 1, 1]} : vector<2x8x384xf32> to vector<2x8x32xf32>
    %19 = arith.truncf %18 : vector<2x8x32xf32> to vector<2x8x32xbf16>
    "tpu.trace_start"() <{level = 10 : i32, message = "btd,bsd->bts"}> : () -> ()
    %cst_11 = arith.constant dense<0.000000e+00> : vector<2x8x8xf32>
    %20 = tpu.matmul %15, %17, %cst_11 {dimension_numbers = #tpu.dot_dimension_numbers<[2], [2], [1], [1], [0, 0, 0, 1, 1, 1], [0], [0]>} : vector<2x8x32xbf16>, vector<2x8x32xbf16>, vector<2x8x8xf32> -> vector<2x8x8xf32>
    "tpu.trace_stop"() : () -> ()
    %21 = vector.broadcast %13 : vector<2x1x8xf32> to vector<2x8x8xf32>
    %22 = arith.addf %20, %21 : vector<2x8x8xf32>
    %cst_12 = arith.constant dense<0xFF800000> : vector<2x8xf32>
    %23 = vector.multi_reduction <maximumf>, %22, %cst_12 [2] : vector<2x8x8xf32> to vector<2x8xf32>
    %24 = vector.shape_cast %23 : vector<2x8xf32> to vector<2x8x1xf32>
    %25 = vector.broadcast %24 : vector<2x8x1xf32> to vector<2x8x8xf32>
    %26 = arith.subf %22, %25 : vector<2x8x8xf32>
    %27 = math.exp %26 : vector<2x8x8xf32>
    %cst_13 = arith.constant dense<0.000000e+00> : vector<2x8xf32>
    %28 = vector.multi_reduction <add>, %27, %cst_13 [2] : vector<2x8x8xf32> to vector<2x8xf32>
    %29 = vector.shape_cast %28 : vector<2x8xf32> to vector<2x8x1xf32>
    %30 = tpu.reciprocal %29 {approx = true} : vector<2x8x1xf32> -> vector<2x8x1xf32>
    %31 = vector.broadcast %30 : vector<2x8x1xf32> to vector<2x8x8xf32>
    %32 = arith.mulf %27, %31 : vector<2x8x8xf32>
    %33 = arith.truncf %32 : vector<2x8x8xf32> to vector<2x8x8xbf16>
    "tpu.trace_start"() <{level = 10 : i32, message = "bts,bsd->btd"}> : () -> ()
    %cst_14 = arith.constant dense<0.000000e+00> : vector<2x8x32xf32>
    %34 = tpu.matmul %33, %19, %cst_14 {dimension_numbers = #tpu.dot_dimension_numbers<[2], [1], [1], [2], [0, 0, 0, 1, 1, 2], [0], [0]>} : vector<2x8x8xbf16>, vector<2x8x32xbf16>, vector<2x8x32xf32> -> vector<2x8x32xf32>
    "tpu.trace_stop"() : () -> ()
    %35 = vector.extract_strided_slice %12 {offsets = [0, 0, 32], sizes = [2, 8, 32], strides = [1, 1, 1]} : vector<2x8x384xf32> to vector<2x8x32xf32>
    %36 = arith.truncf %35 : vector<2x8x32xf32> to vector<2x8x32xbf16>
    %37 = vector.extract_strided_slice %12 {offsets = [0, 0, 160], sizes = [2, 8, 32], strides = [1, 1, 1]} : vector<2x8x384xf32> to vector<2x8x32xf32>
    %38 = arith.truncf %37 : vector<2x8x32xf32> to vector<2x8x32xbf16>
    %39 = vector.extract_strided_slice %12 {offsets = [0, 0, 288], sizes = [2, 8, 32], strides = [1, 1, 1]} : vector<2x8x384xf32> to vector<2x8x32xf32>
    %40 = arith.truncf %39 : vector<2x8x32xf32> to vector<2x8x32xbf16>
    "tpu.trace_start"() <{level = 10 : i32, message = "btd,bsd->bts"}> : () -> ()
    %cst_15 = arith.constant dense<0.000000e+00> : vector<2x8x8xf32>
    %41 = tpu.matmul %36, %38, %cst_15 {dimension_numbers = #tpu.dot_dimension_numbers<[2], [2], [1], [1], [0, 0, 0, 1, 1, 1], [0], [0]>} : vector<2x8x32xbf16>, vector<2x8x32xbf16>, vector<2x8x8xf32> -> vector<2x8x8xf32>
    "tpu.trace_stop"() : () -> ()
    %42 = vector.broadcast %13 : vector<2x1x8xf32> to vector<2x8x8xf32>
    %43 = arith.addf %41, %42 : vector<2x8x8xf32>
    %cst_16 = arith.constant dense<0xFF800000> : vector<2x8xf32>
    %44 = vector.multi_reduction <maximumf>, %43, %cst_16 [2] : vector<2x8x8xf32> to vector<2x8xf32>
    %45 = vector.shape_cast %44 : vector<2x8xf32> to vector<2x8x1xf32>
    %46 = vector.broadcast %45 : vector<2x8x1xf32> to vector<2x8x8xf32>
    %47 = arith.subf %43, %46 : vector<2x8x8xf32>
    %48 = math.exp %47 : vector<2x8x8xf32>
    %cst_17 = arith.constant dense<0.000000e+00> : vector<2x8xf32>
    %49 = vector.multi_reduction <add>, %48, %cst_17 [2] : vector<2x8x8xf32> to vector<2x8xf32>
    %50 = vector.shape_cast %49 : vector<2x8xf32> to vector<2x8x1xf32>
    %51 = tpu.reciprocal %50 {approx = true} : vector<2x8x1xf32> -> vector<2x8x1xf32>
    %52 = vector.broadcast %51 : vector<2x8x1xf32> to vector<2x8x8xf32>
    %53 = arith.mulf %48, %52 : vector<2x8x8xf32>
    %54 = arith.truncf %53 : vector<2x8x8xf32> to vector<2x8x8xbf16>
    "tpu.trace_start"() <{level = 10 : i32, message = "bts,bsd->btd"}> : () -> ()
    %cst_18 = arith.constant dense<0.000000e+00> : vector<2x8x32xf32>
    %55 = tpu.matmul %54, %40, %cst_18 {dimension_numbers = #tpu.dot_dimension_numbers<[2], [1], [1], [2], [0, 0, 0, 1, 1, 2], [0], [0]>} : vector<2x8x8xbf16>, vector<2x8x32xbf16>, vector<2x8x32xf32> -> vector<2x8x32xf32>
    "tpu.trace_stop"() : () -> ()
    %56 = vector.extract_strided_slice %12 {offsets = [0, 0, 64], sizes = [2, 8, 32], strides = [1, 1, 1]} : vector<2x8x384xf32> to vector<2x8x32xf32>
    %57 = arith.truncf %56 : vector<2x8x32xf32> to vector<2x8x32xbf16>
    %58 = vector.extract_strided_slice %12 {offsets = [0, 0, 192], sizes = [2, 8, 32], strides = [1, 1, 1]} : vector<2x8x384xf32> to vector<2x8x32xf32>
    %59 = arith.truncf %58 : vector<2x8x32xf32> to vector<2x8x32xbf16>
    %60 = vector.extract_strided_slice %12 {offsets = [0, 0, 320], sizes = [2, 8, 32], strides = [1, 1, 1]} : vector<2x8x384xf32> to vector<2x8x32xf32>
    %61 = arith.truncf %60 : vector<2x8x32xf32> to vector<2x8x32xbf16>
    "tpu.trace_start"() <{level = 10 : i32, message = "btd,bsd->bts"}> : () -> ()
    %cst_19 = arith.constant dense<0.000000e+00> : vector<2x8x8xf32>
    %62 = tpu.matmul %57, %59, %cst_19 {dimension_numbers = #tpu.dot_dimension_numbers<[2], [2], [1], [1], [0, 0, 0, 1, 1, 1], [0], [0]>} : vector<2x8x32xbf16>, vector<2x8x32xbf16>, vector<2x8x8xf32> -> vector<2x8x8xf32>
    "tpu.trace_stop"() : () -> ()
    %63 = vector.broadcast %13 : vector<2x1x8xf32> to vector<2x8x8xf32>
    %64 = arith.addf %62, %63 : vector<2x8x8xf32>
    %cst_20 = arith.constant dense<0xFF800000> : vector<2x8xf32>
    %65 = vector.multi_reduction <maximumf>, %64, %cst_20 [2] : vector<2x8x8xf32> to vector<2x8xf32>
    %66 = vector.shape_cast %65 : vector<2x8xf32> to vector<2x8x1xf32>
    %67 = vector.broadcast %66 : vector<2x8x1xf32> to vector<2x8x8xf32>
    %68 = arith.subf %64, %67 : vector<2x8x8xf32>
    %69 = math.exp %68 : vector<2x8x8xf32>
    %cst_21 = arith.constant dense<0.000000e+00> : vector<2x8xf32>
    %70 = vector.multi_reduction <add>, %69, %cst_21 [2] : vector<2x8x8xf32> to vector<2x8xf32>
    %71 = vector.shape_cast %70 : vector<2x8xf32> to vector<2x8x1xf32>
    %72 = tpu.reciprocal %71 {approx = true} : vector<2x8x1xf32> -> vector<2x8x1xf32>
    %73 = vector.broadcast %72 : vector<2x8x1xf32> to vector<2x8x8xf32>
    %74 = arith.mulf %69, %73 : vector<2x8x8xf32>
    %75 = arith.truncf %74 : vector<2x8x8xf32> to vector<2x8x8xbf16>
    "tpu.trace_start"() <{level = 10 : i32, message = "bts,bsd->btd"}> : () -> ()
    %cst_22 = arith.constant dense<0.000000e+00> : vector<2x8x32xf32>
    %76 = tpu.matmul %75, %61, %cst_22 {dimension_numbers = #tpu.dot_dimension_numbers<[2], [1], [1], [2], [0, 0, 0, 1, 1, 2], [0], [0]>} : vector<2x8x8xbf16>, vector<2x8x32xbf16>, vector<2x8x32xf32> -> vector<2x8x32xf32>
    "tpu.trace_stop"() : () -> ()
    %77 = vector.extract_strided_slice %12 {offsets = [0, 0, 96], sizes = [2, 8, 32], strides = [1, 1, 1]} : vector<2x8x384xf32> to vector<2x8x32xf32>
    %78 = arith.truncf %77 : vector<2x8x32xf32> to vector<2x8x32xbf16>
    %79 = vector.extract_strided_slice %12 {offsets = [0, 0, 224], sizes = [2, 8, 32], strides = [1, 1, 1]} : vector<2x8x384xf32> to vector<2x8x32xf32>
    %80 = arith.truncf %79 : vector<2x8x32xf32> to vector<2x8x32xbf16>
    %81 = vector.extract_strided_slice %12 {offsets = [0, 0, 352], sizes = [2, 8, 32], strides = [1, 1, 1]} : vector<2x8x384xf32> to vector<2x8x32xf32>
    %82 = arith.truncf %81 : vector<2x8x32xf32> to vector<2x8x32xbf16>
    "tpu.trace_start"() <{level = 10 : i32, message = "btd,bsd->bts"}> : () -> ()
    %cst_23 = arith.constant dense<0.000000e+00> : vector<2x8x8xf32>
    %83 = tpu.matmul %78, %80, %cst_23 {dimension_numbers = #tpu.dot_dimension_numbers<[2], [2], [1], [1], [0, 0, 0, 1, 1, 1], [0], [0]>} : vector<2x8x32xbf16>, vector<2x8x32xbf16>, vector<2x8x8xf32> -> vector<2x8x8xf32>
    "tpu.trace_stop"() : () -> ()
    %84 = vector.broadcast %13 : vector<2x1x8xf32> to vector<2x8x8xf32>
    %85 = arith.addf %83, %84 : vector<2x8x8xf32>
    %cst_24 = arith.constant dense<0xFF800000> : vector<2x8xf32>
    %86 = vector.multi_reduction <maximumf>, %85, %cst_24 [2] : vector<2x8x8xf32> to vector<2x8xf32>
    %87 = vector.shape_cast %86 : vector<2x8xf32> to vector<2x8x1xf32>
    %88 = vector.broadcast %87 : vector<2x8x1xf32> to vector<2x8x8xf32>
    %89 = arith.subf %85, %88 : vector<2x8x8xf32>
    %90 = math.exp %89 : vector<2x8x8xf32>
    %cst_25 = arith.constant dense<0.000000e+00> : vector<2x8xf32>
    %91 = vector.multi_reduction <add>, %90, %cst_25 [2] : vector<2x8x8xf32> to vector<2x8xf32>
    %92 = vector.shape_cast %91 : vector<2x8xf32> to vector<2x8x1xf32>
    %93 = tpu.reciprocal %92 {approx = true} : vector<2x8x1xf32> -> vector<2x8x1xf32>
    %94 = vector.broadcast %93 : vector<2x8x1xf32> to vector<2x8x8xf32>
    %95 = arith.mulf %90, %94 : vector<2x8x8xf32>
    %96 = arith.truncf %95 : vector<2x8x8xf32> to vector<2x8x8xbf16>
    "tpu.trace_start"() <{level = 10 : i32, message = "bts,bsd->btd"}> : () -> ()
    %cst_26 = arith.constant dense<0.000000e+00> : vector<2x8x32xf32>
    %97 = tpu.matmul %96, %82, %cst_26 {dimension_numbers = #tpu.dot_dimension_numbers<[2], [1], [1], [2], [0, 0, 0, 1, 1, 2], [0], [0]>} : vector<2x8x8xbf16>, vector<2x8x32xbf16>, vector<2x8x32xf32> -> vector<2x8x32xf32>
    "tpu.trace_stop"() : () -> ()
    %98 = tpu.concatenate %34, %55, %76, %97 in 2 : vector<2x8x32xf32>, vector<2x8x32xf32>, vector<2x8x32xf32>, vector<2x8x32xf32> -> vector<2x8x128xf32>
    %99 = vector.shape_cast %98 : vector<2x8x128xf32> to vector<16x128xf32>
    %100 = arith.truncf %99 : vector<16x128xf32> to vector<16x128xbf16>
    %c0_27 = arith.constant 0 : index
    %c0_28 = arith.constant 0 : index
    %c0_29 = arith.constant 0 : index
    %101 = vector.load %arg9[%c0_27, %c0_28, %c0_29] : memref<1x128x128xbf16, #tpu.memory_space<vmem>>, vector<1x128x128xbf16>
    %102 = vector.shape_cast %101 : vector<1x128x128xbf16> to vector<128x128xbf16>
    %cst_30 = arith.constant dense<0.000000e+00> : vector<16x128xf32>
    %103 = tpu.matmul %100, %102, %cst_30 {dimension_numbers = #tpu.dot_dimension_numbers<[1], [0], [0], [1], [0, 0, 1, 1], [], []>} : vector<16x128xbf16>, vector<128x128xbf16>, vector<16x128xf32> -> vector<16x128xf32>
    %c0_31 = arith.constant 0 : index
    %c0_32 = arith.constant 0 : index
    %c0_33 = arith.constant 0 : index
    %104 = vector.load %arg10[%c0_31, %c0_32, %c0_33] : memref<1x1x128xf32, #tpu.memory_space<vmem>>, vector<1x1x128xf32>
    %105 = vector.shape_cast %104 : vector<1x1x128xf32> to vector<1x128xf32>
    %106 = vector.broadcast %105 : vector<1x128xf32> to vector<16x128xf32>
    %107 = arith.addf %103, %106 : vector<16x128xf32>
    %108 = arith.addf %3, %107 : vector<16x128xf32>
    %c0_34 = arith.constant 0 : index
    %c0_35 = arith.constant 0 : index
    %c0_36 = arith.constant 0 : index
    %109 = vector.load %arg11[%c0_34, %c0_35, %c0_36] : memref<1x1x128xf32, #tpu.memory_space<vmem>>, vector<1x1x128xf32>
    %110 = vector.shape_cast %109 : vector<1x1x128xf32> to vector<1x128xf32>
    %c0_37 = arith.constant 0 : index
    %c0_38 = arith.constant 0 : index
    %c0_39 = arith.constant 0 : index
    %111 = vector.load %arg12[%c0_37, %c0_38, %c0_39] : memref<1x1x128xf32, #tpu.memory_space<vmem>>, vector<1x1x128xf32>
    %112 = vector.shape_cast %111 : vector<1x1x128xf32> to vector<1x128xf32>
    %cst_40 = arith.constant dense<0.000000e+00> : vector<16xf32>
    %113 = vector.multi_reduction <add>, %108, %cst_40 [1] : vector<16x128xf32> to vector<16xf32>
    %114 = vector.shape_cast %113 : vector<16xf32> to vector<16x1xf32>
    %cst_41 = arith.constant 3.125000e-02 : f32
    %115 = vector.broadcast %cst_41 : f32 to vector<16x1xf32>
    %116 = arith.mulf %114, %115 : vector<16x1xf32>
    %117 = arith.mulf %108, %108 : vector<16x128xf32>
    %cst_42 = arith.constant dense<0.000000e+00> : vector<16xf32>
    %118 = vector.multi_reduction <add>, %117, %cst_42 [1] : vector<16x128xf32> to vector<16xf32>
    %119 = vector.shape_cast %118 : vector<16xf32> to vector<16x1xf32>
    %cst_43 = arith.constant 3.125000e-02 : f32
    %120 = vector.broadcast %cst_43 : f32 to vector<16x1xf32>
    %121 = arith.mulf %119, %120 : vector<16x1xf32>
    %122 = arith.mulf %116, %116 : vector<16x1xf32>
    %123 = arith.subf %121, %122 : vector<16x1xf32>
    %124 = vector.broadcast %116 : vector<16x1xf32> to vector<16x128xf32>
    %125 = arith.subf %108, %124 : vector<16x128xf32>
    %cst_44 = arith.constant 9.99999974E-6 : f32
    %126 = vector.broadcast %cst_44 : f32 to vector<16x1xf32>
    %127 = arith.addf %123, %126 : vector<16x1xf32>
    %128 = math.rsqrt %127 : vector<16x1xf32>
    %129 = vector.broadcast %128 : vector<16x1xf32> to vector<16x128xf32>
    %130 = arith.mulf %125, %129 : vector<16x128xf32>
    %131 = vector.broadcast %110 : vector<1x128xf32> to vector<16x128xf32>
    %132 = arith.mulf %130, %131 : vector<16x128xf32>
    %133 = vector.broadcast %112 : vector<1x128xf32> to vector<16x128xf32>
    %134 = arith.addf %132, %133 : vector<16x128xf32>
    %135 = arith.truncf %134 : vector<16x128xf32> to vector<16x128xbf16>
    %c0_45 = arith.constant 0 : index
    %c0_46 = arith.constant 0 : index
    %c0_47 = arith.constant 0 : index
    %136 = vector.load %arg13[%c0_45, %c0_46, %c0_47] : memref<1x128x128xbf16, #tpu.memory_space<vmem>>, vector<1x128x128xbf16>
    %137 = vector.shape_cast %136 : vector<1x128x128xbf16> to vector<128x128xbf16>
    %cst_48 = arith.constant dense<0.000000e+00> : vector<16x128xf32>
    %138 = tpu.matmul %135, %137, %cst_48 {dimension_numbers = #tpu.dot_dimension_numbers<[1], [0], [0], [1], [0, 0, 1, 1], [], []>} : vector<16x128xbf16>, vector<128x128xbf16>, vector<16x128xf32> -> vector<16x128xf32>
    %c0_49 = arith.constant 0 : index
    %c0_50 = arith.constant 0 : index
    %c0_51 = arith.constant 0 : index
    %139 = vector.load %arg14[%c0_49, %c0_50, %c0_51] : memref<1x1x128xf32, #tpu.memory_space<vmem>>, vector<1x1x128xf32>
    %140 = vector.shape_cast %139 : vector<1x1x128xf32> to vector<1x128xf32>
    %141 = vector.broadcast %140 : vector<1x128xf32> to vector<16x128xf32>
    %142 = arith.addf %138, %141 : vector<16x128xf32>
    %cst_52 = arith.constant 0.000000e+00 : f32
    %143 = vector.broadcast %cst_52 : f32 to vector<16x128xf32>
    %144 = arith.maximumf %142, %143 : vector<16x128xf32>
    %145 = arith.truncf %144 : vector<16x128xf32> to vector<16x128xbf16>
    %c0_53 = arith.constant 0 : index
    %c0_54 = arith.constant 0 : index
    %c0_55 = arith.constant 0 : index
    %146 = vector.load %arg15[%c0_53, %c0_54, %c0_55] : memref<1x128x128xbf16, #tpu.memory_space<vmem>>, vector<1x128x128xbf16>
    %147 = vector.shape_cast %146 : vector<1x128x128xbf16> to vector<128x128xbf16>
    %cst_56 = arith.constant dense<0.000000e+00> : vector<16x128xf32>
    %148 = tpu.matmul %145, %147, %cst_56 {dimension_numbers = #tpu.dot_dimension_numbers<[1], [0], [0], [1], [0, 0, 1, 1], [], []>} : vector<16x128xbf16>, vector<128x128xbf16>, vector<16x128xf32> -> vector<16x128xf32>
    %c0_57 = arith.constant 0 : index
    %c0_58 = arith.constant 0 : index
    %c0_59 = arith.constant 0 : index
    %149 = vector.load %arg16[%c0_57, %c0_58, %c0_59] : memref<1x1x128xf32, #tpu.memory_space<vmem>>, vector<1x1x128xf32>
    %150 = vector.shape_cast %149 : vector<1x1x128xf32> to vector<1x128xf32>
    %151 = vector.broadcast %150 : vector<1x128xf32> to vector<16x128xf32>
    %152 = arith.addf %148, %151 : vector<16x128xf32>
    %153 = arith.addf %134, %152 : vector<16x128xf32>
    %c0_60 = arith.constant 0 : index
    %c0_61 = arith.constant 0 : index
    %c0_62 = arith.constant 0 : index
    %154 = vector.load %arg17[%c0_60, %c0_61, %c0_62] : memref<1x1x128xf32, #tpu.memory_space<vmem>>, vector<1x1x128xf32>
    %155 = vector.shape_cast %154 : vector<1x1x128xf32> to vector<1x128xf32>
    %c0_63 = arith.constant 0 : index
    %c0_64 = arith.constant 0 : index
    %c0_65 = arith.constant 0 : index
    %156 = vector.load %arg18[%c0_63, %c0_64, %c0_65] : memref<1x1x128xf32, #tpu.memory_space<vmem>>, vector<1x1x128xf32>
    %157 = vector.shape_cast %156 : vector<1x1x128xf32> to vector<1x128xf32>
    %cst_66 = arith.constant dense<0.000000e+00> : vector<16xf32>
    %158 = vector.multi_reduction <add>, %153, %cst_66 [1] : vector<16x128xf32> to vector<16xf32>
    %159 = vector.shape_cast %158 : vector<16xf32> to vector<16x1xf32>
    %cst_67 = arith.constant 3.125000e-02 : f32
    %160 = vector.broadcast %cst_67 : f32 to vector<16x1xf32>
    %161 = arith.mulf %159, %160 : vector<16x1xf32>
    %162 = arith.mulf %153, %153 : vector<16x128xf32>
    %cst_68 = arith.constant dense<0.000000e+00> : vector<16xf32>
    %163 = vector.multi_reduction <add>, %162, %cst_68 [1] : vector<16x128xf32> to vector<16xf32>
    %164 = vector.shape_cast %163 : vector<16xf32> to vector<16x1xf32>
    %cst_69 = arith.constant 3.125000e-02 : f32
    %165 = vector.broadcast %cst_69 : f32 to vector<16x1xf32>
    %166 = arith.mulf %164, %165 : vector<16x1xf32>
    %167 = arith.mulf %161, %161 : vector<16x1xf32>
    %168 = arith.subf %166, %167 : vector<16x1xf32>
    %169 = vector.broadcast %161 : vector<16x1xf32> to vector<16x128xf32>
    %170 = arith.subf %153, %169 : vector<16x128xf32>
    %cst_70 = arith.constant 9.99999974E-6 : f32
    %171 = vector.broadcast %cst_70 : f32 to vector<16x1xf32>
    %172 = arith.addf %168, %171 : vector<16x1xf32>
    %173 = math.rsqrt %172 : vector<16x1xf32>
    %174 = vector.broadcast %173 : vector<16x1xf32> to vector<16x128xf32>
    %175 = arith.mulf %170, %174 : vector<16x128xf32>
    %176 = vector.broadcast %155 : vector<1x128xf32> to vector<16x128xf32>
    %177 = arith.mulf %175, %176 : vector<16x128xf32>
    %178 = vector.broadcast %157 : vector<1x128xf32> to vector<16x128xf32>
    %179 = arith.addf %177, %178 : vector<16x128xf32>
    %c0_71 = arith.constant 0 : index
    %c0_72 = arith.constant 0 : index
    %180 = vector.load %arg20[%c0_71, %c0_72] : memref<16x128xf32, #tpu.memory_space<vmem>>, vector<16x128xf32>
    tpu.vector_store %arg20[%c0_71, %c0_72], %179 {strides = array<i32>} : memref<16x128xf32, #tpu.memory_space<vmem>>, vector<16x128xf32>,
    %c1_i32 = arith.constant 1 : i32
    %181 = arith.cmpi eq, %arg1, %c1_i32 : i32
    %182 = arith.extui %181 : i1 to i32
    %c0_i32_73 = arith.constant 0 : i32
    %183 = arith.cmpi ne, %182, %c0_i32_73 : i32
    scf.if %183 {
      %c0_74 = arith.constant 0 : index
      %c0_75 = arith.constant 0 : index
      %184 = vector.load %arg19[%c0_74, %c0_75] : memref<16x128xf32, #tpu.memory_space<vmem>>, vector<16x128xf32>
      tpu.vector_store %arg19[%c0_74, %c0_75], %179 {strides = array<i32>} : memref<16x128xf32, #tpu.memory_space<vmem>>, vector<16x128xf32>,
    } else {
    }
    return
  }
  func.func @transform_0(%arg0: i32, %arg1: i32) -> (i32, i32) {
    %c0_i32 = arith.constant 0 : i32
    %c0_i32_0 = arith.constant 0 : i32
    return %arg0, %c0_i32 : i32, i32
  }
  func.func @transform_1(%arg0: i32, %arg1: i32) -> (i32, i32) {
    %c0_i32 = arith.constant 0 : i32
    %c0_i32_0 = arith.constant 0 : i32
    return %arg0, %c0_i32 : i32, i32
  }
  func.func @transform_2(%arg0: i32, %arg1: i32) -> (i32, i32, i32) {
    %c0_i32 = arith.constant 0 : i32
    %c0_i32_0 = arith.constant 0 : i32
    %c0_i32_1 = arith.constant 0 : i32
    return %arg0, %c0_i32, %c0_i32_0 : i32, i32, i32
  }
  func.func @transform_3(%arg0: i32, %arg1: i32) -> (i32, i32) {
    %c0_i32 = arith.constant 0 : i32
    %c0_i32_0 = arith.constant 0 : i32
    %c0_i32_1 = arith.constant 0 : i32
    return %c0_i32, %c0_i32_0 : i32, i32
  }
  func.func @transform_4(%arg0: i32, %arg1: i32) -> (i32, i32) {
    %c0_i32 = arith.constant 0 : i32
    %c0_i32_0 = arith.constant 0 : i32
    %c0_i32_1 = arith.constant 0 : i32
    return %c0_i32, %c0_i32_0 : i32, i32
  }
  func.func @transform_5(%arg0: i32, %arg1: i32) -> (i32, i32, i32) {
    %c0_i32 = arith.constant 0 : i32
    %c0_i32_0 = arith.constant 0 : i32
    %c0_i32_1 = arith.constant 0 : i32
    return %arg1, %c0_i32, %c0_i32_0 : i32, i32, i32
  }
  func.func @transform_6(%arg0: i32, %arg1: i32) -> (i32, i32, i32) {
    %c0_i32 = arith.constant 0 : i32
    %c0_i32_0 = arith.constant 0 : i32
    %c0_i32_1 = arith.constant 0 : i32
    return %arg1, %c0_i32, %c0_i32_0 : i32, i32, i32
  }
  func.func @transform_7(%arg0: i32, %arg1: i32) -> (i32, i32, i32) {
    %c0_i32 = arith.constant 0 : i32
    %c0_i32_0 = arith.constant 0 : i32
    %c0_i32_1 = arith.constant 0 : i32
    return %arg1, %c0_i32, %c0_i32_0 : i32, i32, i32
  }
  func.func @transform_8(%arg0: i32, %arg1: i32) -> (i32, i32, i32) {
    %c0_i32 = arith.constant 0 : i32
    %c0_i32_0 = arith.constant 0 : i32
    %c0_i32_1 = arith.constant 0 : i32
    return %arg1, %c0_i32, %c0_i32_0 : i32, i32, i32
  }
  func.func @transform_9(%arg0: i32, %arg1: i32) -> (i32, i32, i32) {
    %c0_i32 = arith.constant 0 : i32
    %c0_i32_0 = arith.constant 0 : i32
    %c0_i32_1 = arith.constant 0 : i32
    return %arg1, %c0_i32, %c0_i32_0 : i32, i32, i32
  }
  func.func @transform_10(%arg0: i32, %arg1: i32) -> (i32, i32, i32) {
    %c0_i32 = arith.constant 0 : i32
    %c0_i32_0 = arith.constant 0 : i32
    %c0_i32_1 = arith.constant 0 : i32
    return %arg1, %c0_i32, %c0_i32_0 : i32, i32, i32
  }
  func.func @transform_11(%arg0: i32, %arg1: i32) -> (i32, i32, i32) {
    %c0_i32 = arith.constant 0 : i32
    %c0_i32_0 = arith.constant 0 : i32
    %c0_i32_1 = arith.constant 0 : i32
    return %arg1, %c0_i32, %c0_i32_0 : i32, i32, i32
  }
  func.func @transform_12(%arg0: i32, %arg1: i32) -> (i32, i32, i32) {
    %c0_i32 = arith.constant 0 : i32
    %c0_i32_0 = arith.constant 0 : i32
    %c0_i32_1 = arith.constant 0 : i32
    return %arg1, %c0_i32, %c0_i32_0 : i32, i32, i32
  }
  func.func @transform_13(%arg0: i32, %arg1: i32) -> (i32, i32, i32) {
    %c0_i32 = arith.constant 0 : i32
    %c0_i32_0 = arith.constant 0 : i32
    %c0_i32_1 = arith.constant 0 : i32
    return %arg1, %c0_i32, %c0_i32_0 : i32, i32, i32
  }
  func.func @transform_14(%arg0: i32, %arg1: i32) -> (i32, i32, i32) {
    %c0_i32 = arith.constant 0 : i32
    %c0_i32_0 = arith.constant 0 : i32
    %c0_i32_1 = arith.constant 0 : i32
    return %arg1, %c0_i32, %c0_i32_0 : i32, i32, i32
  }
  func.func @transform_15(%arg0: i32, %arg1: i32) -> (i32, i32, i32) {
    %c0_i32 = arith.constant 0 : i32
    %c0_i32_0 = arith.constant 0 : i32
    %c0_i32_1 = arith.constant 0 : i32
    return %arg1, %c0_i32, %c0_i32_0 : i32, i32, i32
  }
  func.func @transform_16(%arg0: i32, %arg1: i32) -> (i32, i32, i32) {
    %c0_i32 = arith.constant 0 : i32
    %c0_i32_0 = arith.constant 0 : i32
    %c0_i32_1 = arith.constant 0 : i32
    return %arg1, %c0_i32, %c0_i32_0 : i32, i32, i32
  }
  func.func @transform_17(%arg0: i32, %arg1: i32) -> (i32, i32) {
    %c0_i32 = arith.constant 0 : i32
    %c0_i32_0 = arith.constant 0 : i32
    return %arg0, %c0_i32 : i32, i32
  }
}

</mosaic_0001>

<llo_original>
// kernel: speech_transformer_encoder.1
$region0: #{speech_transformer_encoder.1}
  #allocation0 [shape = 'u32[]', space=smem, size = 0x4, offset = 0x4, fixed_abs, tag = 'smem constant byte address 0x4 - core index']
  #allocation1 [shape = 'u32[144,128]{1,0:T(1,128)}', space=vmem, size = 0x12000, scoped, tag = 'internal scratch']
  #allocation2 [shape = 'f32[16,128]{1,0:T(8,128)}', space=vmem, size = 0x2000, scoped, tag = 'scratch operand']
  %s0 = inlined_call_operand.vmem [shape: f32[16,128], index: 0, kind: input, shape index: {}]
  %s1 = inlined_call_operand.vmem [shape: f32[16,128], index: 1, kind: input, shape index: {}]
  %s2 = inlined_call_operand.vmem [shape: f32[2,1,8], index: 2, kind: input, shape index: {}]
  %s3 = inlined_call_operand.vmem [shape: bf16[128,128], index: 3, kind: input, shape index: {}]
  %s4 = inlined_call_operand.vmem [shape: f32[1,128], index: 4, kind: input, shape index: {}]
  %s5 = inlined_call_operand.vmem [shape: bf16[2,128,384], index: 5, kind: input, shape index: {}]
  %s6 = inlined_call_operand.vmem [shape: f32[2,1,384], index: 6, kind: input, shape index: {}]
  %s7 = inlined_call_operand.vmem [shape: bf16[2,128,128], index: 7, kind: input, shape index: {}]
  %s8 = inlined_call_operand.vmem [shape: f32[2,1,128], index: 8, kind: input, shape index: {}]
  %s9 = inlined_call_operand.vmem [shape: f32[2,1,128], index: 9, kind: input, shape index: {}]
  %s10 = inlined_call_operand.vmem [shape: f32[2,1,128], index: 10, kind: input, shape index: {}]
  %s11 = inlined_call_operand.vmem [shape: bf16[2,128,128], index: 11, kind: input, shape index: {}]
  %s12 = inlined_call_operand.vmem [shape: f32[2,1,128], index: 12, kind: input, shape index: {}]
  %s13 = inlined_call_operand.vmem [shape: bf16[2,128,128], index: 13, kind: input, shape index: {}]
  %s14 = inlined_call_operand.vmem [shape: f32[2,1,128], index: 14, kind: input, shape index: {}]
  %s15 = inlined_call_operand.vmem [shape: f32[2,1,128], index: 15, kind: input, shape index: {}]
  %s16 = inlined_call_operand.vmem [shape: f32[2,1,128], index: 16, kind: input, shape index: {}]
  %s17 = inlined_call_operand.vmem [shape: f32[16,128], index: 17, kind: output, shape index: {}]
  %s18 = sld [smem:[#allocation0]]
  $region109: #{speech_transformer_encoder.1} parent=0
    _
  %s20 = ssub.s32 1, %s18
  %s21 = scalar_select 0, %s20, %s18
  loop: start=0, step=1, limit=4
  $region2: #{speech_transformer_encoder.1} parent=0 // loop_pre_header
    _
  $region3: #{speech_transformer_encoder.1} parent=0 // loop_header
    %s23 = sphi 0, %s27
    %p24 = scmp.ge.s32.totalorder %s23, 4
    %s30 = sphi 0, %s42
    %s31 = sphi 0, %s38
    %s32 = sphi 0, %s30
    %s33 = sphi 0, %s31
    %s34 = sphi 0, %s32
    %s35 = sphi 0, %s33
    %s45 = sphi 0, %s47
    %s48 = sphi 0, %s45
    %s49 = sphi 0, %s48
    %s65 = sphi 0, %s49
    %s71 = sphi 0, %s73
    %s74 = sphi 0, %s71
    %s75 = sphi 0, %s74
    %s91 = sphi 0, %s75
    %s97 = sphi 0, %s99
    %s100 = sphi 0, %s97
    %s101 = sphi 0, %s100
    %s117 = sphi 0, %s101
    %s121 = sphi 0, %s121
    %s123 = sphi 0, %s121
    %s124 = sphi 0, %s123
    %s138 = sphi 0, %s124
    %s142 = sphi 0, %s142
    %s144 = sphi 0, %s142
    %s145 = sphi 0, %s144
    %s159 = sphi 0, %s145
    %s165 = sphi 0, %s167
    %s168 = sphi 0, %s165
    %s169 = sphi 0, %s168
    %s185 = sphi 0, %s169
    %s191 = sphi 0, %s193
    %s194 = sphi 0, %s191
    %s195 = sphi 0, %s194
    %s211 = sphi 0, %s195
    %s217 = sphi 0, %s219
    %s220 = sphi 0, %s217
    %s221 = sphi 0, %s220
    %s237 = sphi 0, %s221
    %s243 = sphi 0, %s245
    %s246 = sphi 0, %s243
    %s247 = sphi 0, %s246
    %s263 = sphi 0, %s247
    %s269 = sphi 0, %s271
    %s272 = sphi 0, %s269
    %s273 = sphi 0, %s272
    %s289 = sphi 0, %s273
    %s295 = sphi 0, %s297
    %s298 = sphi 0, %s295
    %s299 = sphi 0, %s298
    %s315 = sphi 0, %s299
    %s321 = sphi 0, %s323
    %s324 = sphi 0, %s321
    %s325 = sphi 0, %s324
    %s341 = sphi 0, %s325
    %s347 = sphi 0, %s349
    %s350 = sphi 0, %s347
    %s351 = sphi 0, %s350
    %s367 = sphi 0, %s351
    %s373 = sphi 0, %s375
    %s376 = sphi 0, %s373
    %s377 = sphi 0, %s376
    %s393 = sphi 0, %s377
    %s399 = sphi 0, %s401
    %s402 = sphi 0, %s399
    %s403 = sphi 0, %s402
    %s419 = sphi 0, %s403
    %s425 = sphi 0, %s427
    %s428 = sphi 0, %s425
    %s429 = sphi 0, %s428
    %s445 = sphi 0, %s429
    %s451 = sphi 0, %s453
    %s454 = sphi 0, %s451
    %s455 = sphi 0, %s454
    %s471 = sphi 0, %s455
    %s477 = sphi 0, %s479
    %s480 = sphi 0, %s477
    %s481 = sphi 0, %s480
    %s497 = sphi 0, %s481
  $region4: #{speech_transformer_encoder.1} parent=0 // loop_header_branch
    %26 = sbr.rel (%p24) target = $region8
  $region5: #{speech_transformer_encoder.1} parent=0 // loop_body
    %s28 = ssub.s32 %s23, 1
    %s29 = ssub.s32 %s23, 2
    %s36 = sadd.s32 1, %s31
    %p37 = scmp.ge.s32.totalorder %s36, 2
    %s38 = scalar_select %p37, 0, %s36
    %s39 = sadd.s32 1, %s30
    %s40 = scalar_select %p37, %s39, %s30
    %p41 = scmp.ge.s32.totalorder %s40, 1
    %s42 = scalar_select %p41, 0, %s40
    %s43 = ssub.s32 %s30, %s42
    %p44 = scmp.eq.s32.totalorder %s43, 0
    %s46 = sadd.s32 %s45, 1
    %s47 = scalar_select %p44, %s45, %s46
    %p50 = pneg %p44
    %p51 = scmp.eq.s32.totalorder %s23, 1
    %p52 = por %p50, %p51
    %p53 = scmp.ne.s32.totalorder %s45, %s48
    %p54 = scmp.eq.s32.totalorder %s23, 0
    %p55 = por %p53, %p54
    %p56 = scmp.ne.s32.totalorder %s45, %s48
    %p57 = scmp.eq.s32.totalorder %s28, 1
    %p58 = por %p56, %p57
    %p59 = scmp.ne.s32.totalorder %s48, %s49
    %p60 = scmp.eq.s32.totalorder %s28, 0
    %p61 = por %p59, %p60
    %p62 = scmp.ne.s32.totalorder %s48, %s49
    %p63 = scmp.eq.s32.totalorder %s29, 1
    %p64 = por %p62, %p63
    %p66 = scmp.ne.s32.totalorder %s49, %s65
    %p67 = scmp.eq.s32.totalorder %s29, 0
    %p68 = por %p66, %p67
    %s69 = ssub.s32 %s30, %s42
    %p70 = scmp.eq.s32.totalorder %s69, 0
    %s72 = sadd.s32 %s71, 1
    %s73 = scalar_select %p70, %s71, %s72
    %p76 = pneg %p70
    %p77 = scmp.eq.s32.totalorder %s23, 1
    %p78 = por %p76, %p77
    %p79 = scmp.ne.s32.totalorder %s71, %s74
    %p80 = scmp.eq.s32.totalorder %s23, 0
    %p81 = por %p79, %p80
    %p82 = scmp.ne.s32.totalorder %s71, %s74
    %p83 = scmp.eq.s32.totalorder %s28, 1
    %p84 = por %p82, %p83
    %p85 = scmp.ne.s32.totalorder %s74, %s75
    %p86 = scmp.eq.s32.totalorder %s28, 0
    %p87 = por %p85, %p86
    %p88 = scmp.ne.s32.totalorder %s74, %s75
    %p89 = scmp.eq.s32.totalorder %s29, 1
    %p90 = por %p88, %p89
    %p92 = scmp.ne.s32.totalorder %s75, %s91
    %p93 = scmp.eq.s32.totalorder %s29, 0
    %p94 = por %p92, %p93
    %s95 = ssub.s32 %s30, %s42
    %p96 = scmp.eq.s32.totalorder %s95, 0
    %s98 = sadd.s32 %s97, 1
    %s99 = scalar_select %p96, %s97, %s98
    %p102 = pneg %p96
    %p103 = scmp.eq.s32.totalorder %s23, 1
    %p104 = por %p102, %p103
    %p105 = scmp.ne.s32.totalorder %s97, %s100
    %p106 = scmp.eq.s32.totalorder %s23, 0
    %p107 = por %p105, %p106
    %p108 = scmp.ne.s32.totalorder %s97, %s100
    %p109 = scmp.eq.s32.totalorder %s28, 1
    %p110 = por %p108, %p109
    %p111 = scmp.ne.s32.totalorder %s100, %s101
    %p112 = scmp.eq.s32.totalorder %s28, 0
    %p113 = por %p111, %p112
    %p114 = scmp.ne.s32.totalorder %s100, %s101
    %p115 = scmp.eq.s32.totalorder %s29, 1
    %p116 = por %p114, %p115
    %p118 = scmp.ne.s32.totalorder %s101, %s117
    %p119 = scmp.eq.s32.totalorder %s29, 0
    %p120 = por %p118, %p119
    %s122 = sadd.s32 %s121, 1
    %p125 = scmp.eq.s32.totalorder %s23, 1
    %p126 = scmp.ne.s32.totalorder %s121, %s123
    %p127 = scmp.eq.s32.totalorder %s23, 0
    %p128 = por %p126, %p127
    %p129 = scmp.ne.s32.totalorder %s121, %s123
    %p130 = scmp.eq.s32.totalorder %s28, 1
    %p131 = por %p129, %p130
    %p132 = scmp.ne.s32.totalorder %s123, %s124
    %p133 = scmp.eq.s32.totalorder %s28, 0
    %p134 = por %p132, %p133
    %p135 = scmp.ne.s32.totalorder %s123, %s124
    %p136 = scmp.eq.s32.totalorder %s29, 1
    %p137 = por %p135, %p136
    %p139 = scmp.ne.s32.totalorder %s124, %s138
    %p140 = scmp.eq.s32.totalorder %s29, 0
    %p141 = por %p139, %p140
    %s143 = sadd.s32 %s142, 1
    %p146 = scmp.eq.s32.totalorder %s23, 1
    %p147 = scmp.ne.s32.totalorder %s142, %s144
    %p148 = scmp.eq.s32.totalorder %s23, 0
    %p149 = por %p147, %p148
    %p150 = scmp.ne.s32.totalorder %s142, %s144
    %p151 = scmp.eq.s32.totalorder %s28, 1
    %p152 = por %p150, %p151
    %p153 = scmp.ne.s32.totalorder %s144, %s145
    %p154 = scmp.eq.s32.totalorder %s28, 0
    %p155 = por %p153, %p154
    %p156 = scmp.ne.s32.totalorder %s144, %s145
    %p157 = scmp.eq.s32.totalorder %s29, 1
    %p158 = por %p156, %p157
    %p160 = scmp.ne.s32.totalorder %s145, %s159
    %p161 = scmp.eq.s32.totalorder %s29, 0
    %p162 = por %p160, %p161
    %s163 = ssub.s32 %s31, %s38
    %p164 = scmp.eq.s32.totalorder %s163, 0
    %s166 = sadd.s32 %s165, 1
    %s167 = scalar_select %p164, %s165, %s166
    %p170 = pneg %p164
    %p171 = scmp.eq.s32.totalorder %s23, 1
    %p172 = por %p170, %p171
    %p173 = scmp.ne.s32.totalorder %s165, %s168
    %p174 = scmp.eq.s32.totalorder %s23, 0
    %p175 = por %p173, %p174
    %p176 = scmp.ne.s32.totalorder %s165, %s168
    %p177 = scmp.eq.s32.totalorder %s28, 1
    %p178 = por %p176, %p177
    %p179 = scmp.ne.s32.totalorder %s168, %s169
    %p180 = scmp.eq.s32.totalorder %s28, 0
    %p181 = por %p179, %p180
    %p182 = scmp.ne.s32.totalorder %s168, %s169
    %p183 = scmp.eq.s32.totalorder %s29, 1
    %p184 = por %p182, %p183
    %p186 = scmp.ne.s32.totalorder %s169, %s185
    %p187 = scmp.eq.s32.totalorder %s29, 0
    %p188 = por %p186, %p187
    %s189 = ssub.s32 %s31, %s38
    %p190 = scmp.eq.s32.totalorder %s189, 0
    %s192 = sadd.s32 %s191, 1
    %s193 = scalar_select %p190, %s191, %s192
    %p196 = pneg %p190
    %p197 = scmp.eq.s32.totalorder %s23, 1
    %p198 = por %p196, %p197
    %p199 = scmp.ne.s32.totalorder %s191, %s194
    %p200 = scmp.eq.s32.totalorder %s23, 0
    %p201 = por %p199, %p200
    %p202 = scmp.ne.s32.totalorder %s191, %s194
    %p203 = scmp.eq.s32.totalorder %s28, 1
    %p204 = por %p202, %p203
    %p205 = scmp.ne.s32.totalorder %s194, %s195
    %p206 = scmp.eq.s32.totalorder %s28, 0
    %p207 = por %p205, %p206
    %p208 = scmp.ne.s32.totalorder %s194, %s195
    %p209 = scmp.eq.s32.totalorder %s29, 1
    %p210 = por %p208, %p209
    %p212 = scmp.ne.s32.totalorder %s195, %s211
    %p213 = scmp.eq.s32.totalorder %s29, 0
    %p214 = por %p212, %p213
    %s215 = ssub.s32 %s31, %s38
    %p216 = scmp.eq.s32.totalorder %s215, 0
    %s218 = sadd.s32 %s217, 1
    %s219 = scalar_select %p216, %s217, %s218
    %p222 = pneg %p216
    %p223 = scmp.eq.s32.totalorder %s23, 1
    %p224 = por %p222, %p223
    %p225 = scmp.ne.s32.totalorder %s217, %s220
    %p226 = scmp.eq.s32.totalorder %s23, 0
    %p227 = por %p225, %p226
    %p228 = scmp.ne.s32.totalorder %s217, %s220
    %p229 = scmp.eq.s32.totalorder %s28, 1
    %p230 = por %p228, %p229
    %p231 = scmp.ne.s32.totalorder %s220, %s221
    %p232 = scmp.eq.s32.totalorder %s28, 0
    %p233 = por %p231, %p232
    %p234 = scmp.ne.s32.totalorder %s220, %s221
    %p235 = scmp.eq.s32.totalorder %s29, 1
    %p236 = por %p234, %p235
    %p238 = scmp.ne.s32.totalorder %s221, %s237
    %p239 = scmp.eq.s32.totalorder %s29, 0
    %p240 = por %p238, %p239
    %s241 = ssub.s32 %s31, %s38
    %p242 = scmp.eq.s32.totalorder %s241, 0
    %s244 = sadd.s32 %s243, 1
    %s245 = scalar_select %p242, %s243, %s244
    %p248 = pneg %p242
    %p249 = scmp.eq.s32.totalorder %s23, 1
    %p250 = por %p248, %p249
    %p251 = scmp.ne.s32.totalorder %s243, %s246
    %p252 = scmp.eq.s32.totalorder %s23, 0
    %p253 = por %p251, %p252
    %p254 = scmp.ne.s32.totalorder %s243, %s246
    %p255 = scmp.eq.s32.totalorder %s28, 1
    %p256 = por %p254, %p255
    %p257 = scmp.ne.s32.totalorder %s246, %s247
    %p258 = scmp.eq.s32.totalorder %s28, 0
    %p259 = por %p257, %p258
    %p260 = scmp.ne.s32.totalorder %s246, %s247
    %p261 = scmp.eq.s32.totalorder %s29, 1
    %p262 = por %p260, %p261
    %p264 = scmp.ne.s32.totalorder %s247, %s263
    %p265 = scmp.eq.s32.totalorder %s29, 0
    %p266 = por %p264, %p265
    %s267 = ssub.s32 %s31, %s38
    %p268 = scmp.eq.s32.totalorder %s267, 0
    %s270 = sadd.s32 %s269, 1
    %s271 = scalar_select %p268, %s269, %s270
    %p274 = pneg %p268
    %p275 = scmp.eq.s32.totalorder %s23, 1
    %p276 = por %p274, %p275
    %p277 = scmp.ne.s32.totalorder %s269, %s272
    %p278 = scmp.eq.s32.totalorder %s23, 0
    %p279 = por %p277, %p278
    %p280 = scmp.ne.s32.totalorder %s269, %s272
    %p281 = scmp.eq.s32.totalorder %s28, 1
    %p282 = por %p280, %p281
    %p283 = scmp.ne.s32.totalorder %s272, %s273
    %p284 = scmp.eq.s32.totalorder %s28, 0
    %p285 = por %p283, %p284
    %p286 = scmp.ne.s32.totalorder %s272, %s273
    %p287 = scmp.eq.s32.totalorder %s29, 1
    %p288 = por %p286, %p287
    %p290 = scmp.ne.s32.totalorder %s273, %s289
    %p291 = scmp.eq.s32.totalorder %s29, 0
    %p292 = por %p290, %p291
    %s293 = ssub.s32 %s31, %s38
    %p294 = scmp.eq.s32.totalorder %s293, 0
    %s296 = sadd.s32 %s295, 1
    %s297 = scalar_select %p294, %s295, %s296
    %p300 = pneg %p294
    %p301 = scmp.eq.s32.totalorder %s23, 1
    %p302 = por %p300, %p301
    %p303 = scmp.ne.s32.totalorder %s295, %s298
    %p304 = scmp.eq.s32.totalorder %s23, 0
    %p305 = por %p303, %p304
    %p306 = scmp.ne.s32.totalorder %s295, %s298
    %p307 = scmp.eq.s32.totalorder %s28, 1
    %p308 = por %p306, %p307
    %p309 = scmp.ne.s32.totalorder %s298, %s299
    %p310 = scmp.eq.s32.totalorder %s28, 0
    %p311 = por %p309, %p310
    %p312 = scmp.ne.s32.totalorder %s298, %s299
    %p313 = scmp.eq.s32.totalorder %s29, 1
    %p314 = por %p312, %p313
    %p316 = scmp.ne.s32.totalorder %s299, %s315
    %p317 = scmp.eq.s32.totalorder %s29, 0
    %p318 = por %p316, %p317
    %s319 = ssub.s32 %s31, %s38
    %p320 = scmp.eq.s32.totalorder %s319, 0
    %s322 = sadd.s32 %s321, 1
    %s323 = scalar_select %p320, %s321, %s322
    %p326 = pneg %p320
    %p327 = scmp.eq.s32.totalorder %s23, 1
    %p328 = por %p326, %p327
    %p329 = scmp.ne.s32.totalorder %s321, %s324
    %p330 = scmp.eq.s32.totalorder %s23, 0
    %p331 = por %p329, %p330
    %p332 = scmp.ne.s32.totalorder %s321, %s324
    %p333 = scmp.eq.s32.totalorder %s28, 1
    %p334 = por %p332, %p333
    %p335 = scmp.ne.s32.totalorder %s324, %s325
    %p336 = scmp.eq.s32.totalorder %s28, 0
    %p337 = por %p335, %p336
    %p338 = scmp.ne.s32.totalorder %s324, %s325
    %p339 = scmp.eq.s32.totalorder %s29, 1
    %p340 = por %p338, %p339
    %p342 = scmp.ne.s32.totalorder %s325, %s341
    %p343 = scmp.eq.s32.totalorder %s29, 0
    %p344 = por %p342, %p343
    %s345 = ssub.s32 %s31, %s38
    %p346 = scmp.eq.s32.totalorder %s345, 0
    %s348 = sadd.s32 %s347, 1
    %s349 = scalar_select %p346, %s347, %s348
    %p352 = pneg %p346
    %p353 = scmp.eq.s32.totalorder %s23, 1
    %p354 = por %p352, %p353
    %p355 = scmp.ne.s32.totalorder %s347, %s350
    %p356 = scmp.eq.s32.totalorder %s23, 0
    %p357 = por %p355, %p356
    %p358 = scmp.ne.s32.totalorder %s347, %s350
    %p359 = scmp.eq.s32.totalorder %s28, 1
    %p360 = por %p358, %p359
    %p361 = scmp.ne.s32.totalorder %s350, %s351
    %p362 = scmp.eq.s32.totalorder %s28, 0
    %p363 = por %p361, %p362
    %p364 = scmp.ne.s32.totalorder %s350, %s351
    %p365 = scmp.eq.s32.totalorder %s29, 1
    %p366 = por %p364, %p365
    %p368 = scmp.ne.s32.totalorder %s351, %s367
    %p369 = scmp.eq.s32.totalorder %s29, 0
    %p370 = por %p368, %p369
    %s371 = ssub.s32 %s31, %s38
    %p372 = scmp.eq.s32.totalorder %s371, 0
    %s374 = sadd.s32 %s373, 1
    %s375 = scalar_select %p372, %s373, %s374
    %p378 = pneg %p372
    %p379 = scmp.eq.s32.totalorder %s23, 1
    %p380 = por %p378, %p379
    %p381 = scmp.ne.s32.totalorder %s373, %s376
    %p382 = scmp.eq.s32.totalorder %s23, 0
    %p383 = por %p381, %p382
    %p384 = scmp.ne.s32.totalorder %s373, %s376
    %p385 = scmp.eq.s32.totalorder %s28, 1
    %p386 = por %p384, %p385
    %p387 = scmp.ne.s32.totalorder %s376, %s377
    %p388 = scmp.eq.s32.totalorder %s28, 0
    %p389 = por %p387, %p388
    %p390 = scmp.ne.s32.totalorder %s376, %s377
    %p391 = scmp.eq.s32.totalorder %s29, 1
    %p392 = por %p390, %p391
    %p394 = scmp.ne.s32.totalorder %s377, %s393
    %p395 = scmp.eq.s32.totalorder %s29, 0
    %p396 = por %p394, %p395
    %s397 = ssub.s32 %s31, %s38
    %p398 = scmp.eq.s32.totalorder %s397, 0
    %s400 = sadd.s32 %s399, 1
    %s401 = scalar_select %p398, %s399, %s400
    %p404 = pneg %p398
    %p405 = scmp.eq.s32.totalorder %s23, 1
    %p406 = por %p404, %p405
    %p407 = scmp.ne.s32.totalorder %s399, %s402
    %p408 = scmp.eq.s32.totalorder %s23, 0
    %p409 = por %p407, %p408
    %p410 = scmp.ne.s32.totalorder %s399, %s402
    %p411 = scmp.eq.s32.totalorder %s28, 1
    %p412 = por %p410, %p411
    %p413 = scmp.ne.s32.totalorder %s402, %s403
    %p414 = scmp.eq.s32.totalorder %s28, 0
    %p415 = por %p413, %p414
    %p416 = scmp.ne.s32.totalorder %s402, %s403
    %p417 = scmp.eq.s32.totalorder %s29, 1
    %p418 = por %p416, %p417
    %p420 = scmp.ne.s32.totalorder %s403, %s419
    %p421 = scmp.eq.s32.totalorder %s29, 0
    %p422 = por %p420, %p421
    %s423 = ssub.s32 %s31, %s38
    %p424 = scmp.eq.s32.totalorder %s423, 0
    %s426 = sadd.s32 %s425, 1
    %s427 = scalar_select %p424, %s425, %s426
    %p430 = pneg %p424
    %p431 = scmp.eq.s32.totalorder %s23, 1
    %p432 = por %p430, %p431
    %p433 = scmp.ne.s32.totalorder %s425, %s428
    %p434 = scmp.eq.s32.totalorder %s23, 0
    %p435 = por %p433, %p434
    %p436 = scmp.ne.s32.totalorder %s425, %s428
    %p437 = scmp.eq.s32.totalorder %s28, 1
    %p438 = por %p436, %p437
    %p439 = scmp.ne.s32.totalorder %s428, %s429
    %p440 = scmp.eq.s32.totalorder %s28, 0
    %p441 = por %p439, %p440
    %p442 = scmp.ne.s32.totalorder %s428, %s429
    %p443 = scmp.eq.s32.totalorder %s29, 1
    %p444 = por %p442, %p443
    %p446 = scmp.ne.s32.totalorder %s429, %s445
    %p447 = scmp.eq.s32.totalorder %s29, 0
    %p448 = por %p446, %p447
    %s449 = ssub.s32 %s31, %s38
    %p450 = scmp.eq.s32.totalorder %s449, 0
    %s452 = sadd.s32 %s451, 1
    %s453 = scalar_select %p450, %s451, %s452
    %p456 = pneg %p450
    %p457 = scmp.eq.s32.totalorder %s23, 1
    %p458 = por %p456, %p457
    %p459 = scmp.ne.s32.totalorder %s451, %s454
    %p460 = scmp.eq.s32.totalorder %s23, 0
    %p461 = por %p459, %p460
    %p462 = scmp.ne.s32.totalorder %s451, %s454
    %p463 = scmp.eq.s32.totalorder %s28, 1
    %p464 = por %p462, %p463
    %p465 = scmp.ne.s32.totalorder %s454, %s455
    %p466 = scmp.eq.s32.totalorder %s28, 0
    %p467 = por %p465, %p466
    %p468 = scmp.ne.s32.totalorder %s454, %s455
    %p469 = scmp.eq.s32.totalorder %s29, 1
    %p470 = por %p468, %p469
    %p472 = scmp.ne.s32.totalorder %s455, %s471
    %p473 = scmp.eq.s32.totalorder %s29, 0
    %p474 = por %p472, %p473
    %s475 = ssub.s32 %s30, %s42
    %p476 = scmp.eq.s32.totalorder %s475, 0
    %s478 = sadd.s32 %s477, 1
    %s479 = scalar_select %p476, %s477, %s478
    %p482 = pneg %p476
    %p483 = scmp.eq.s32.totalorder %s23, 1
    %p484 = por %p482, %p483
    %p485 = scmp.ne.s32.totalorder %s477, %s480
    %p486 = scmp.eq.s32.totalorder %s23, 0
    %p487 = por %p485, %p486
    %p488 = scmp.ne.s32.totalorder %s477, %s480
    %p489 = scmp.eq.s32.totalorder %s28, 1
    %p490 = por %p488, %p489
    %p491 = scmp.ne.s32.totalorder %s480, %s481
    %p492 = scmp.eq.s32.totalorder %s28, 0
    %p493 = por %p491, %p492
    %p494 = scmp.ne.s32.totalorder %s480, %s481
    %p495 = scmp.eq.s32.totalorder %s29, 1
    %p496 = por %p494, %p495
    %p498 = scmp.ne.s32.totalorder %s481, %s497
    %p499 = scmp.eq.s32.totalorder %s29, 0
    %p500 = por %p498, %p499
    %p501 = scmp.le.s32.totalorder 1, %s23
    %p502 = scmp.lt.s32.totalorder %s23, 3
    %p503 = pnand %p501, %p502
    %p504 = pneg %p503
    // Predicated region
    $region9: #{speech_transformer_encoder.1} parent=5 // pred_check
      _
    $region10: #{speech_transformer_encoder.1} parent=5 // pred_check_branch
      %506 = sbr.rel (%p503) target = $region12
    $region11: #{speech_transformer_encoder.1} parent=5 // pred_region
      %s507 = ssub.s32 %s23, 1
      // Predicated region
      $region13: #{speech_transformer_encoder.1} parent=11 // pred_check
        %p508 = pneg %p61
      $region14: #{speech_transformer_encoder.1} parent=11 // pred_check_branch
        %510 = sbr.rel (%p508) target = $region16
      $region15: #{speech_transformer_encoder.1} parent=11 // pred_region
        %s511 = smul.u32 2, %s32
        %p512 = scmp.lt.s32.totalorder %s511, 1
        %s513 = scalar_select %p512, %s511, 1
        %s514 = smul.addr %s513, 8
        %s515 = scalar_lea.vmem %s0, %s514
        %s516 = smul.u32 2, %s32
      $region16: #{speech_transformer_encoder.1} parent=11 // pred_fallthru
        _
      // Predicated region
      $region17: #{speech_transformer_encoder.1} parent=11 // pred_check
        %p517 = pneg %p87
      $region18: #{speech_transformer_encoder.1} parent=11 // pred_check_branch
        %519 = sbr.rel (%p517) target = $region20
      $region19: #{speech_transformer_encoder.1} parent=11 // pred_region
        %s520 = smul.u32 2, %s32
        %p521 = scmp.lt.s32.totalorder %s520, 1
        %s522 = scalar_select %p521, %s520, 1
        %s523 = smul.addr %s522, 8
        %s524 = scalar_lea.vmem %s1, %s523
        %s525 = smul.u32 2, %s32
      $region20: #{speech_transformer_encoder.1} parent=11 // pred_fallthru
        _
      // Predicated region
      $region21: #{speech_transformer_encoder.1} parent=11 // pred_check
        %p526 = pneg %p113
      $region22: #{speech_transformer_encoder.1} parent=11 // pred_check_branch
        %528 = sbr.rel (%p526) target = $region24
      $region23: #{speech_transformer_encoder.1} parent=11 // pred_region
        %s529 = smul.u32 2, %s32
        %p530 = scmp.lt.s32.totalorder %s529, 1
        %s531 = scalar_select %p530, %s529, 1
        %s532 = scalar_lea.vmem %s2, %s531
        %s533 = smul.u32 2, %s32
      $region24: #{speech_transformer_encoder.1} parent=11 // pred_fallthru
        _
      // Predicated region
      $region25: #{speech_transformer_encoder.1} parent=11 // pred_check
        %p534 = pneg %p134
      $region26: #{speech_transformer_encoder.1} parent=11 // pred_check_branch
        %536 = sbr.rel (%p534) target = $region28
      $region27: #{speech_transformer_encoder.1} parent=11 // pred_region
        _
      $region28: #{speech_transformer_encoder.1} parent=11 // pred_fallthru
        _
      // Predicated region
      $region29: #{speech_transformer_encoder.1} parent=11 // pred_check
        %p537 = pneg %p155
      $region30: #{speech_transformer_encoder.1} parent=11 // pred_check_branch
        %539 = sbr.rel (%p537) target = $region32
      $region31: #{speech_transformer_encoder.1} parent=11 // pred_region
        _
      $region32: #{speech_transformer_encoder.1} parent=11 // pred_fallthru
        _
    $region12: #{speech_transformer_encoder.1} parent=5 // pred_fallthru
      _
    %p540 = scmp.lt.s32.totalorder %s23, 2
    // Predicated region
    $region33: #{speech_transformer_encoder.1} parent=5 // pred_check
      %p541 = pneg %p540
    $region34: #{speech_transformer_encoder.1} parent=5 // pred_check_branch
      %543 = sbr.rel (%p541) target = $region36
    $region35: #{speech_transformer_encoder.1} parent=5 // pred_region
      // Predicated region
      $region37: #{speech_transformer_encoder.1} parent=35 // pred_check
        %p544 = pneg %p175
      $region38: #{speech_transformer_encoder.1} parent=35 // pred_check_branch
        %546 = sbr.rel (%p544) target = $region40
      $region39: #{speech_transformer_encoder.1} parent=35 // pred_region
        %p547 = scmp.lt.s32.totalorder %s31, 1
        %s548 = scalar_select %p547, %s31, 1
        %s549 = smul.addr %s548, 48
        %s550 = smul.addr %s549, 4
        %s551 = scalar_lea.vmem %s5, %s550
      $region40: #{speech_transformer_encoder.1} parent=35 // pred_fallthru
        _
      // Predicated region
      $region41: #{speech_transformer_encoder.1} parent=35 // pred_check
        %p552 = pneg %p201
      $region42: #{speech_transformer_encoder.1} parent=35 // pred_check_branch
        %554 = sbr.rel (%p552) target = $region44
      $region43: #{speech_transformer_encoder.1} parent=35 // pred_region
        %p555 = scmp.lt.s32.totalorder %s31, 1
        %s556 = scalar_select %p555, %s31, 1
        %s557 = smul.addr %s556, 3
        %s558 = scalar_lea.vmem %s6, %s557
      $region44: #{speech_transformer_encoder.1} parent=35 // pred_fallthru
        _
      // Predicated region
      $region45: #{speech_transformer_encoder.1} parent=35 // pred_check
        %p559 = pneg %p227
      $region46: #{speech_transformer_encoder.1} parent=35 // pred_check_branch
        %561 = sbr.rel (%p559) target = $region48
      $region47: #{speech_transformer_encoder.1} parent=35 // pred_region
        %p562 = scmp.lt.s32.totalorder %s31, 1
        %s563 = scalar_select %p562, %s31, 1
        %s564 = smul.addr %s563, 16
        %s565 = smul.addr %s564, 4
        %s566 = scalar_lea.vmem %s7, %s565
      $region48: #{speech_transformer_encoder.1} parent=35 // pred_fallthru
        _
      // Predicated region
      $region49: #{speech_transformer_encoder.1} parent=35 // pred_check
        %p567 = pneg %p253
      $region50: #{speech_transformer_encoder.1} parent=35 // pred_check_branch
        %569 = sbr.rel (%p567) target = $region52
      $region51: #{speech_transformer_encoder.1} parent=35 // pred_region
        %p570 = scmp.lt.s32.totalorder %s31, 1
        %s571 = scalar_select %p570, %s31, 1
        %s572 = scalar_lea.vmem %s8, %s571
      $region52: #{speech_transformer_encoder.1} parent=35 // pred_fallthru
        _
      // Predicated region
      $region53: #{speech_transformer_encoder.1} parent=35 // pred_check
        %p573 = pneg %p279
      $region54: #{speech_transformer_encoder.1} parent=35 // pred_check_branch
        %575 = sbr.rel (%p573) target = $region56
      $region55: #{speech_transformer_encoder.1} parent=35 // pred_region
        %p576 = scmp.lt.s32.totalorder %s31, 1
        %s577 = scalar_select %p576, %s31, 1
        %s578 = scalar_lea.vmem %s9, %s577
      $region56: #{speech_transformer_encoder.1} parent=35 // pred_fallthru
        _
      // Predicated region
      $region57: #{speech_transformer_encoder.1} parent=35 // pred_check
        %p579 = pneg %p305
      $region58: #{speech_transformer_encoder.1} parent=35 // pred_check_branch
        %581 = sbr.rel (%p579) target = $region60
      $region59: #{speech_transformer_encoder.1} parent=35 // pred_region
        %p582 = scmp.lt.s32.totalorder %s31, 1
        %s583 = scalar_select %p582, %s31, 1
        %s584 = scalar_lea.vmem %s10, %s583
      $region60: #{speech_transformer_encoder.1} parent=35 // pred_fallthru
        _
      // Predicated region
      $region61: #{speech_transformer_encoder.1} parent=35 // pred_check
        %p585 = pneg %p331
      $region62: #{speech_transformer_encoder.1} parent=35 // pred_check_branch
        %587 = sbr.rel (%p585) target = $region64
      $region63: #{speech_transformer_encoder.1} parent=35 // pred_region
        %p588 = scmp.lt.s32.totalorder %s31, 1
        %s589 = scalar_select %p588, %s31, 1
        %s590 = smul.addr %s589, 16
        %s591 = smul.addr %s590, 4
        %s592 = scalar_lea.vmem %s11, %s591
      $region64: #{speech_transformer_encoder.1} parent=35 // pred_fallthru
        _
      // Predicated region
      $region65: #{speech_transformer_encoder.1} parent=35 // pred_check
        %p593 = pneg %p357
      $region66: #{speech_transformer_encoder.1} parent=35 // pred_check_branch
        %595 = sbr.rel (%p593) target = $region68
      $region67: #{speech_transformer_encoder.1} parent=35 // pred_region
        %p596 = scmp.lt.s32.totalorder %s31, 1
        %s597 = scalar_select %p596, %s31, 1
        %s598 = scalar_lea.vmem %s12, %s597
      $region68: #{speech_transformer_encoder.1} parent=35 // pred_fallthru
        _
      // Predicated region
      $region69: #{speech_transformer_encoder.1} parent=35 // pred_check
        %p599 = pneg %p383
      $region70: #{speech_transformer_encoder.1} parent=35 // pred_check_branch
        %601 = sbr.rel (%p599) target = $region72
      $region71: #{speech_transformer_encoder.1} parent=35 // pred_region
        %p602 = scmp.lt.s32.totalorder %s31, 1
        %s603 = scalar_select %p602, %s31, 1
        %s604 = smul.addr %s603, 16
        %s605 = smul.addr %s604, 4
        %s606 = scalar_lea.vmem %s13, %s605
      $region72: #{speech_transformer_encoder.1} parent=35 // pred_fallthru
        _
      // Predicated region
      $region73: #{speech_transformer_encoder.1} parent=35 // pred_check
        %p607 = pneg %p409
      $region74: #{speech_transformer_encoder.1} parent=35 // pred_check_branch
        %609 = sbr.rel (%p607) target = $region76
      $region75: #{speech_transformer_encoder.1} parent=35 // pred_region
        %p610 = scmp.lt.s32.totalorder %s31, 1
        %s611 = scalar_select %p610, %s31, 1
        %s612 = scalar_lea.vmem %s14, %s611
      $region76: #{speech_transformer_encoder.1} parent=35 // pred_fallthru
        _
      // Predicated region
      $region77: #{speech_transformer_encoder.1} parent=35 // pred_check
        %p613 = pneg %p435
      $region78: #{speech_transformer_encoder.1} parent=35 // pred_check_branch
        %615 = sbr.rel (%p613) target = $region80
      $region79: #{speech_transformer_encoder.1} parent=35 // pred_region
        %p616 = scmp.lt.s32.totalorder %s31, 1
        %s617 = scalar_select %p616, %s31, 1
        %s618 = scalar_lea.vmem %s15, %s617
      $region80: #{speech_transformer_encoder.1} parent=35 // pred_fallthru
        _
      // Predicated region
      $region81: #{speech_transformer_encoder.1} parent=35 // pred_check
        %p619 = pneg %p461
      $region82: #{speech_transformer_encoder.1} parent=35 // pred_check_branch
        %621 = sbr.rel (%p619) target = $region84
      $region83: #{speech_transformer_encoder.1} parent=35 // pred_region
        %p622 = scmp.lt.s32.totalorder %s31, 1
        %s623 = scalar_select %p622, %s31, 1
        %s624 = scalar_lea.vmem %s16, %s623
      $region84: #{speech_transformer_encoder.1} parent=35 // pred_fallthru
        _
    $region36: #{speech_transformer_encoder.1} parent=5 // pred_fallthru
      _
    %p625 = scmp.le.s32.totalorder 1, %s23
    %p626 = scmp.lt.s32.totalorder %s23, 3
    %p627 = pnand %p625, %p626
    %p628 = pneg %p627
    // Predicated region
    $region85: #{speech_transformer_encoder.1} parent=5 // pred_check
      _
    $region86: #{speech_transformer_encoder.1} parent=5 // pred_check_branch
      %630 = sbr.rel (%p627) target = $region88
    $region87: #{speech_transformer_encoder.1} parent=5 // pred_region
      %s631 = ssub.s32 %s23, 1
      %s632 = smul.u32 2, %s32
      %p633 = scmp.lt.s32.totalorder %s632, 1
      %s634 = scalar_select %p633, %s632, 1
      %s635 = smul.addr %s634, 8
      %s636 = scalar_lea.vmem %s0, %s635
      %p637 = pneg %p61
      %p638 = pneg %p58
      %s639 = smul.u32 2, %s32
      %p640 = scmp.lt.s32.totalorder %s639, 1
      %s641 = scalar_select %p640, %s639, 1
      %s642 = smul.addr %s641, 8
      %s643 = scalar_lea.vmem %s1, %s642
      %p644 = pneg %p87
      %p645 = pneg %p84
      %s646 = smul.u32 2, %s32
      %p647 = scmp.lt.s32.totalorder %s646, 1
      %s648 = scalar_select %p647, %s646, 1
      %s649 = scalar_lea.vmem %s2, %s648
      %p650 = pneg %p113
      %p651 = pneg %p110
      %p652 = pneg %p134
      %p653 = pneg %p131
      %p654 = pneg %p155
      %p655 = pneg %p152
      %p656 = scmp.lt.s32.totalorder %s33, 1
      %s657 = scalar_select %p656, %s33, 1
      %s658 = smul.addr %s657, 48
      %s659 = smul.addr %s658, 4
      %s660 = scalar_lea.vmem %s5, %s659
      %p661 = pneg %p181
      %p662 = pneg %p178
      %p663 = scmp.lt.s32.totalorder %s33, 1
      %s664 = scalar_select %p663, %s33, 1
      %s665 = smul.addr %s664, 3
      %s666 = scalar_lea.vmem %s6, %s665
      %p667 = pneg %p207
      %p668 = pneg %p204
      %p669 = scmp.lt.s32.totalorder %s33, 1
      %s670 = scalar_select %p669, %s33, 1
      %s671 = smul.addr %s670, 16
      %s672 = smul.addr %s671, 4
      %s673 = scalar_lea.vmem %s7, %s672
      %p674 = pneg %p233
      %p675 = pneg %p230
      %p676 = scmp.lt.s32.totalorder %s33, 1
      %s677 = scalar_select %p676, %s33, 1
      %s678 = scalar_lea.vmem %s8, %s677
      %p679 = pneg %p259
      %p680 = pneg %p256
      %p681 = scmp.lt.s32.totalorder %s33, 1
      %s682 = scalar_select %p681, %s33, 1
      %s683 = scalar_lea.vmem %s9, %s682
      %p684 = pneg %p285
      %p685 = pneg %p282
      %p686 = scmp.lt.s32.totalorder %s33, 1
      %s687 = scalar_select %p686, %s33, 1
      %s688 = scalar_lea.vmem %s10, %s687
      %p689 = pneg %p311
      %p690 = pneg %p308
      %p691 = scmp.lt.s32.totalorder %s33, 1
      %s692 = scalar_select %p691, %s33, 1
      %s693 = smul.addr %s692, 16
      %s694 = smul.addr %s693, 4
      %s695 = scalar_lea.vmem %s11, %s694
      %p696 = pneg %p337
      %p697 = pneg %p334
      %p698 = scmp.lt.s32.totalorder %s33, 1
      %s699 = scalar_select %p698, %s33, 1
      %s700 = scalar_lea.vmem %s12, %s699
      %p701 = pneg %p363
      %p702 = pneg %p360
      %p703 = scmp.lt.s32.totalorder %s33, 1
      %s704 = scalar_select %p703, %s33, 1
      %s705 = smul.addr %s704, 16
      %s706 = smul.addr %s705, 4
      %s707 = scalar_lea.vmem %s13, %s706
      %p708 = pneg %p389
      %p709 = pneg %p386
      %p710 = scmp.lt.s32.totalorder %s33, 1
      %s711 = scalar_select %p710, %s33, 1
      %s712 = scalar_lea.vmem %s14, %s711
      %p713 = pneg %p415
      %p714 = pneg %p412
      %p715 = scmp.lt.s32.totalorder %s33, 1
      %s716 = scalar_select %p715, %s33, 1
      %s717 = scalar_lea.vmem %s15, %s716
      %p718 = pneg %p441
      %p719 = pneg %p438
      %p720 = scmp.lt.s32.totalorder %s33, 1
      %s721 = scalar_select %p720, %s33, 1
      %s722 = scalar_lea.vmem %s16, %s721
      %p723 = pneg %p467
      %p724 = pneg %p464
      %p725 = pneg %p493
      %p726 = pneg %p490
      %s727 = smul.u32 2, %s32
      %p728 = scmp.lt.s32.totalorder %s727, 1
      %s729 = scalar_select %p728, %s727, 1
      %s730 = smul.addr %s729, 8
      %s731 = scalar_lea.vmem %s17, %s730
      %s732 = smul.u32 2, %s32
      %p733 = scmp.lt.s32.totalorder %s732, 1
      %s734 = scalar_select %p733, %s732, 1
      %s735 = smul.addr %s734, 8
      %s736 = scalar_lea.vmem %s0, %s735
      %s737 = smul.u32 2, %s32
      %s738 = smul.u32 2, %s32
      %p739 = scmp.lt.s32.totalorder %s738, 1
      %s740 = scalar_select %p739, %s738, 1
      %s741 = smul.addr %s740, 8
      %s742 = scalar_lea.vmem %s1, %s741
      %s743 = smul.u32 2, %s32
      %s744 = smul.u32 2, %s32
      %p745 = scmp.lt.s32.totalorder %s744, 1
      %s746 = scalar_select %p745, %s744, 1
      %s747 = scalar_lea.vmem %s2, %s746
      %s748 = smul.u32 2, %s32
      %p749 = scmp.lt.s32.totalorder %s33, 1
      %s750 = scalar_select %p749, %s33, 1
      %s751 = smul.addr %s750, 48
      %s752 = smul.addr %s751, 4
      %s753 = scalar_lea.vmem %s5, %s752
      %p754 = scmp.lt.s32.totalorder %s33, 1
      %s755 = scalar_select %p754, %s33, 1
      %s756 = smul.addr %s755, 3
      %s757 = scalar_lea.vmem %s6, %s756
      %p758 = scmp.lt.s32.totalorder %s33, 1
      %s759 = scalar_select %p758, %s33, 1
      %s760 = smul.addr %s759, 16
      %s761 = smul.addr %s760, 4
      %s762 = scalar_lea.vmem %s7, %s761
      %p763 = scmp.lt.s32.totalorder %s33, 1
      %s764 = scalar_select %p763, %s33, 1
      %s765 = scalar_lea.vmem %s8, %s764
      %p766 = scmp.lt.s32.totalorder %s33, 1
      %s767 = scalar_select %p766, %s33, 1
      %s768 = scalar_lea.vmem %s9, %s767
      %p769 = scmp.lt.s32.totalorder %s33, 1
      %s770 = scalar_select %p769, %s33, 1
      %s771 = scalar_lea.vmem %s10, %s770
      %p772 = scmp.lt.s32.totalorder %s33, 1
      %s773 = scalar_select %p772, %s33, 1
      %s774 = smul.addr %s773, 16
      %s775 = smul.addr %s774, 4
      %s776 = scalar_lea.vmem %s11, %s775
      %p777 = scmp.lt.s32.totalorder %s33, 1
      %s778 = scalar_select %p777, %s33, 1
      %s779 = scalar_lea.vmem %s12, %s778
      %p780 = scmp.lt.s32.totalorder %s33, 1
      %s781 = scalar_select %p780, %s33, 1
      %s782 = smul.addr %s781, 16
      %s783 = smul.addr %s782, 4
      %s784 = scalar_lea.vmem %s13, %s783
      %p785 = scmp.lt.s32.totalorder %s33, 1
      %s786 = scalar_select %p785, %s33, 1
      %s787 = scalar_lea.vmem %s14, %s786
      %p788 = scmp.lt.s32.totalorder %s33, 1
      %s789 = scalar_select %p788, %s33, 1
      %s790 = scalar_lea.vmem %s15, %s789
      %p791 = scmp.lt.s32.totalorder %s33, 1
      %s792 = scalar_select %p791, %s33, 1
      %s793 = scalar_lea.vmem %s16, %s792
      %s794 = smul.u32 2, %s32
      %p795 = scmp.lt.s32.totalorder %s794, 1
      %s796 = scalar_select %p795, %s794, 1
      %s797 = smul.addr %s796, 8
      %s798 = scalar_lea.vmem %s17, %s797
      %s799 = smul.u32 2, %s32
      %p801 = scmp.eq.s32.totalorder %s33, 0
      // Predicated region
      $region89: #{speech_transformer_encoder.1} parent=87 // pred_check
        %p802 = pneg %p801
      $region90: #{speech_transformer_encoder.1} parent=87 // pred_check_branch
        %804 = sbr.rel (%p802) target = $region92
      $region91: #{speech_transformer_encoder.1} parent=87 // pred_region
        %v805 = vld [vmem:[%s736] sm:$0xff]
        %v806 = vld [vmem:[%s736 + $0x8] sm:$0xff]
        %v807 = vpack.c.bf16 %v806, %v805
        %v808 = vld [vmem:[%s3] sm:$0xf]
        %v809 = vld [vmem:[%s3 + $0x4] sm:$0xf]
        %v810 = vld [vmem:[%s3 + $0x8] sm:$0xf]
        %v811 = vld [vmem:[%s3 + $0xc] sm:$0xf]
        %v812 = vld [vmem:[%s3 + $0x10] sm:$0xf]
        %v813 = vld [vmem:[%s3 + $0x14] sm:$0xf]
        %v814 = vld [vmem:[%s3 + $0x18] sm:$0xf]
        %v815 = vld [vmem:[%s3 + $0x1c] sm:$0xf]
        %v816 = vld [vmem:[%s3 + $0x20] sm:$0xf]
        %v817 = vld [vmem:[%s3 + $0x24] sm:$0xf]
        %v818 = vld [vmem:[%s3 + $0x28] sm:$0xf]
        %v819 = vld [vmem:[%s3 + $0x2c] sm:$0xf]
        %v820 = vld [vmem:[%s3 + $0x30] sm:$0xf]
        %v821 = vld [vmem:[%s3 + $0x34] sm:$0xf]
        %v822 = vld [vmem:[%s3 + $0x38] sm:$0xf]
        %v823 = vld [vmem:[%s3 + $0x3c] sm:$0xf]
        %v824 = vld [vmem:[%s4] sm:$0x1]
        %v826 = vlaneseq
        %v827 = vshrl.u32 %v826, 7
        %v828 = vsub.s32 0, %v827
        %v829 = vrot.slane %v824, %v828
        %v847 = vunpack.c.l.b16 %v808
        %v848 = vunpack.c.l.b16 %v809
        %v849 = vunpack.c.l.b16 %v810
        %v850 = vunpack.c.l.b16 %v811
        %v851 = vunpack.c.l.b16 %v812
        %v852 = vunpack.c.l.b16 %v813
        %v853 = vunpack.c.l.b16 %v814
        %v854 = vunpack.c.l.b16 %v815
        %v855 = vunpack.c.l.b16 %v816
        %v856 = vunpack.c.l.b16 %v817
        %v857 = vunpack.c.l.b16 %v818
        %v858 = vunpack.c.l.b16 %v819
        %v859 = vunpack.c.l.b16 %v820
        %v860 = vunpack.c.l.b16 %v821
        %v861 = vunpack.c.l.b16 %v822
        %v862 = vunpack.c.l.b16 %v823
        %v863 = vpack.c.b16 %v848, %v847
        %v864 = vpack.c.b16 %v850, %v849
        %v865 = vpack.c.b16 %v852, %v851
        %v866 = vpack.c.b16 %v854, %v853
        %v867 = vpack.c.b16 %v856, %v855
        %v868 = vpack.c.b16 %v858, %v857
        %v869 = vpack.c.b16 %v860, %v859
        %v870 = vpack.c.b16 %v862, %v861
        %879 = vmatprep.subr.bf16.mxu0 0
        %880 = vmatpush1.bf16.msra.mxu0 %v863
        %881 = vmatprep.subr.bf16.mxu0 0
        %882 = vmatpush1.bf16.msra.mxu0 %v864
        %883 = vmatprep.subr.bf16.mxu0 0
        %884 = vmatpush1.bf16.msra.mxu0 %v865
        %885 = vmatprep.subr.bf16.mxu0 0
        %886 = vmatpush1.bf16.msra.mxu0 %v866
        %887 = vmatprep.subr.bf16.mxu0 0
        %888 = vmatpush1.bf16.msra.mxu0 %v867
        %889 = vmatprep.subr.bf16.mxu0 0
        %890 = vmatpush1.bf16.msra.mxu0 %v868
        %891 = vmatprep.subr.bf16.mxu0 0
        %892 = vmatpush1.bf16.msra.mxu0 %v869
        %893 = vmatprep.subr.bf16.mxu0 0
        %894 = vmatpush1.bf16.msra.mxu0 %v870
        %895 = vmatprep.subr.bf16.mxu0 0
        %896 = vmatpush1.bf16.msra.mxu0 0
        %897 = vmatprep.subr.bf16.mxu0 0
        %898 = vmatpush1.bf16.msra.mxu0 0
        %899 = vmatprep.subr.bf16.mxu0 0
        %900 = vmatpush1.bf16.msra.mxu0 0
        %901 = vmatprep.subr.bf16.mxu0 0
        %902 = vmatpush1.bf16.msra.mxu0 0
        %903 = vmatprep.subr.bf16.mxu0 0
        %904 = vmatpush1.bf16.msra.mxu0 0
        %905 = vmatprep.subr.bf16.mxu0 0
        %906 = vmatpush1.bf16.msra.mxu0 0
        %907 = vmatprep.subr.bf16.mxu0 0
        %908 = vmatpush1.bf16.msra.mxu0 0
        %909 = vmatprep.subr.bf16.mxu0 0
        %910 = vmatpush1.bf16.msra.mxu0 0
        %911 = vmatprep.mubr.bf16.mxu0 0
        %912 = vmatmul.mubr.bf16.gmra.mrb[0].mxu0 %v807
        %v913 = vpop.f32.mrb[0].mxu0
        %v914 = vadd.f32 %v829, %v913
        %v915 = vpop.f32.mrb[0].mxu0
        %v916 = vpop.f32.mrb[0].mxu0
        %v917 = vadd.f32 %v829, %v916
        %v918 = vpop.f32.mrb[0].mxu0
        %919 = vdwg.mxu0
        %v920 = vld [vmem:[%s742] sm:$0xff]
        %v921 = vld [vmem:[%s742 + $0x8] sm:$0xff]
        %v922 = vadd.f32 %v914, %v920
        %v923 = vadd.f32 %v917, %v921
        %924 = vst [vmem:[#allocation2] sm:$0xff] %v922
        %925 = vst [vmem:[#allocation2 + $0x8] sm:$0xff] %v923
      $region92: #{speech_transformer_encoder.1} parent=87 // pred_fallthru
        _
      %v926 = vld [vmem:[#allocation2] sm:$0xff]
      %v927 = vld [vmem:[#allocation2 + $0x8] sm:$0xff]
      %v928 = vpack.c.bf16 %v927, %v926
      %v929 = vld [vmem:[%s753] sm:$0xff]
      %v930 = vld [vmem:[%s753 + $0x8] sm:$0xf]
      %v931 = vld [vmem:[%s753 + $0xc] sm:$0xff]
      %v932 = vld [vmem:[%s753 + $0x14] sm:$0xf]
      %v933 = vld [vmem:[%s753 + $0x18] sm:$0xff]
      %v934 = vld [vmem:[%s753 + $0x20] sm:$0xf]
      %v935 = vld [vmem:[%s753 + $0x24] sm:$0xff]
      %v936 = vld [vmem:[%s753 + $0x2c] sm:$0xf]
      %v937 = vld [vmem:[%s753 + $0x30] sm:$0xff]
      %v938 = vld [vmem:[%s753 + $0x38] sm:$0xf]
      %v939 = vld [vmem:[%s753 + $0x3c] sm:$0xff]
      %v940 = vld [vmem:[%s753 + $0x44] sm:$0xf]
      %v941 = vld [vmem:[%s753 + $0x48] sm:$0xff]
      %v942 = vld [vmem:[%s753 + $0x50] sm:$0xf]
      %v943 = vld [vmem:[%s753 + $0x54] sm:$0xff]
      %v944 = vld [vmem:[%s753 + $0x5c] sm:$0xf]
      %v945 = vld [vmem:[%s753 + $0x60] sm:$0xff]
      %v946 = vld [vmem:[%s753 + $0x68] sm:$0xf]
      %v947 = vld [vmem:[%s753 + $0x6c] sm:$0xff]
      %v948 = vld [vmem:[%s753 + $0x74] sm:$0xf]
      %v949 = vld [vmem:[%s753 + $0x78] sm:$0xff]
      %v950 = vld [vmem:[%s753 + $0x80] sm:$0xf]
      %v951 = vld [vmem:[%s753 + $0x84] sm:$0xff]
      %v952 = vld [vmem:[%s753 + $0x8c] sm:$0xf]
      %v953 = vld [vmem:[%s753 + $0x90] sm:$0xff]
      %v954 = vld [vmem:[%s753 + $0x98] sm:$0xf]
      %v955 = vld [vmem:[%s753 + $0x9c] sm:$0xff]
      %v956 = vld [vmem:[%s753 + $0xa4] sm:$0xf]
      %v957 = vld [vmem:[%s753 + $0xa8] sm:$0xff]
      %v958 = vld [vmem:[%s753 + $0xb0] sm:$0xf]
      %v959 = vld [vmem:[%s753 + $0xb4] sm:$0xff]
      %v960 = vld [vmem:[%s753 + $0xbc] sm:$0xf]
      %v961 = vld [vmem:[%s757] sm:$0x7]
      %v963 = vlaneseq
      %v964 = vshrl.u32 %v963, 7
      %v965 = vsub.s32 0, %v964
      %v966 = vrot.slane %v961, %v965
      %v967 = vlaneseq
      %v968 = vshrl.u32 %v967, 7
      %v969 = vsub.s32 1, %v968
      %v970 = vrot.slane %v961, %v969
      %v971 = vlaneseq
      %v972 = vshrl.u32 %v971, 7
      %v973 = vsub.s32 2, %v972
      %v974 = vrot.slane %v961, %v973
      %v1010 = vunpack.c.l.b16 %v929
      %v1011 = vunpack.c.h.b16 %v929
      %v1012 = vunpack.c.l.b16 %v930
      %v1013 = vunpack.c.l.b16 %v931
      %v1014 = vunpack.c.h.b16 %v931
      %v1015 = vunpack.c.l.b16 %v932
      %v1016 = vunpack.c.l.b16 %v933
      %v1017 = vunpack.c.h.b16 %v933
      %v1018 = vunpack.c.l.b16 %v934
      %v1019 = vunpack.c.l.b16 %v935
      %v1020 = vunpack.c.h.b16 %v935
      %v1021 = vunpack.c.l.b16 %v936
      %v1022 = vunpack.c.l.b16 %v937
      %v1023 = vunpack.c.h.b16 %v937
      %v1024 = vunpack.c.l.b16 %v938
      %v1025 = vunpack.c.l.b16 %v939
      %v1026 = vunpack.c.h.b16 %v939
      %v1027 = vunpack.c.l.b16 %v940
      %v1028 = vunpack.c.l.b16 %v941
      %v1029 = vunpack.c.h.b16 %v941
      %v1030 = vunpack.c.l.b16 %v942
      %v1031 = vunpack.c.l.b16 %v943
      %v1032 = vunpack.c.h.b16 %v943
      %v1033 = vunpack.c.l.b16 %v944
      %v1034 = vunpack.c.l.b16 %v945
      %v1035 = vunpack.c.h.b16 %v945
      %v1036 = vunpack.c.l.b16 %v946
      %v1037 = vunpack.c.l.b16 %v947
      %v1038 = vunpack.c.h.b16 %v947
      %v1039 = vunpack.c.l.b16 %v948
      %v1040 = vunpack.c.l.b16 %v949
      %v1041 = vunpack.c.h.b16 %v949
      %v1042 = vunpack.c.l.b16 %v950
      %v1043 = vunpack.c.l.b16 %v951
      %v1044 = vunpack.c.h.b16 %v951
      %v1045 = vunpack.c.l.b16 %v952
      %v1046 = vunpack.c.l.b16 %v953
      %v1047 = vunpack.c.h.b16 %v953
      %v1048 = vunpack.c.l.b16 %v954
      %v1049 = vunpack.c.l.b16 %v955
      %v1050 = vunpack.c.h.b16 %v955
      %v1051 = vunpack.c.l.b16 %v956
      %v1052 = vunpack.c.l.b16 %v957
      %v1053 = vunpack.c.h.b16 %v957
      %v1054 = vunpack.c.l.b16 %v958
      %v1055 = vunpack.c.l.b16 %v959
      %v1056 = vunpack.c.h.b16 %v959
      %v1057 = vunpack.c.l.b16 %v960
      %v1058 = vpack.c.b16 %v1013, %v1010
      %v1059 = vpack.c.b16 %v1014, %v1011
      %v1060 = vpack.c.b16 %v1015, %v1012
      %v1061 = vpack.c.b16 %v1019, %v1016
      %v1062 = vpack.c.b16 %v1020, %v1017
      %v1063 = vpack.c.b16 %v1021, %v1018
      %v1064 = vpack.c.b16 %v1025, %v1022
      %v1065 = vpack.c.b16 %v1026, %v1023
      %v1066 = vpack.c.b16 %v1027, %v1024
      %v1067 = vpack.c.b16 %v1031, %v1028
      %v1068 = vpack.c.b16 %v1032, %v1029
      %v1069 = vpack.c.b16 %v1033, %v1030
      %v1070 = vpack.c.b16 %v1037, %v1034
      %v1071 = vpack.c.b16 %v1038, %v1035
      %v1072 = vpack.c.b16 %v1039, %v1036
      %v1073 = vpack.c.b16 %v1043, %v1040
      %v1074 = vpack.c.b16 %v1044, %v1041
      %v1075 = vpack.c.b16 %v1045, %v1042
      %v1076 = vpack.c.b16 %v1049, %v1046
      %v1077 = vpack.c.b16 %v1050, %v1047
      %v1078 = vpack.c.b16 %v1051, %v1048
      %v1079 = vpack.c.b16 %v1055, %v1052
      %v1080 = vpack.c.b16 %v1056, %v1053
      %v1081 = vpack.c.b16 %v1057, %v1054
      %1106 = vmatprep.subr.bf16.mxu0 %v1059
      %1107 = vmatpush1.bf16.msra.mxu0 %v1058
      %1108 = vmatprep.subr.bf16.mxu0 %v1062
      %1109 = vmatpush1.bf16.msra.mxu0 %v1061
      %1110 = vmatprep.subr.bf16.mxu0 %v1065
      %1111 = vmatpush1.bf16.msra.mxu0 %v1064
      %1112 = vmatprep.subr.bf16.mxu0 %v1068
      %1113 = vmatpush1.bf16.msra.mxu0 %v1067
      %1114 = vmatprep.subr.bf16.mxu0 %v1071
      %1115 = vmatpush1.bf16.msra.mxu0 %v1070
      %1116 = vmatprep.subr.bf16.mxu0 %v1074
      %1117 = vmatpush1.bf16.msra.mxu0 %v1073
      %1118 = vmatprep.subr.bf16.mxu0 %v1077
      %1119 = vmatpush1.bf16.msra.mxu0 %v1076
      %1120 = vmatprep.subr.bf16.mxu0 %v1080
      %1121 = vmatpush1.bf16.msra.mxu0 %v1079
      %1122 = vmatprep.subr.bf16.mxu0 0
      %1123 = vmatpush1.bf16.msra.mxu0 0
      %1124 = vmatprep.subr.bf16.mxu0 0
      %1125 = vmatpush1.bf16.msra.mxu0 0
      %1126 = vmatprep.subr.bf16.mxu0 0
      %1127 = vmatpush1.bf16.msra.mxu0 0
      %1128 = vmatprep.subr.bf16.mxu0 0
      %1129 = vmatpush1.bf16.msra.mxu0 0
      %1130 = vmatprep.subr.bf16.mxu0 0
      %1131 = vmatpush1.bf16.msra.mxu0 0
      %1132 = vmatprep.subr.bf16.mxu0 0
      %1133 = vmatpush1.bf16.msra.mxu0 0
      %1134 = vmatprep.subr.bf16.mxu0 0
      %1135 = vmatpush1.bf16.msra.mxu0 0
      %1136 = vmatprep.subr.bf16.mxu0 0
      %1137 = vmatpush1.bf16.msra.mxu0 0
      %1138 = vmatprep.mubr.bf16.mxu0 0
      %1139 = vmatmul.mubr.bf16.gmra.mrb[0].mxu0 %v928
      %v1140 = vpop.f32.mrb[0].mxu0
      %v1141 = vadd.f32 %v966, %v1140
      %v1142 = vpop.f32.mrb[0].mxu0
      %v1143 = vadd.f32 %v970, %v1142
      %v1144 = vpop.f32.mrb[0].mxu0
      %v1145 = vadd.f32 %v966, %v1144
      %v1146 = vpop.f32.mrb[0].mxu0
      %v1147 = vadd.f32 %v970, %v1146
      %1148 = vdwg.mxu0
      %1149 = vmatprep.subr.bf16.mxu0 0
      %1150 = vmatpush1.bf16.msra.mxu0 %v1060
      %1151 = vmatprep.subr.bf16.mxu0 0
      %1152 = vmatpush1.bf16.msra.mxu0 %v1063
      %1153 = vmatprep.subr.bf16.mxu0 0
      %1154 = vmatpush1.bf16.msra.mxu0 %v1066
      %1155 = vmatprep.subr.bf16.mxu0 0
      %1156 = vmatpush1.bf16.msra.mxu0 %v1069
      %1157 = vmatprep.subr.bf16.mxu0 0
      %1158 = vmatpush1.bf16.msra.mxu0 %v1072
      %1159 = vmatprep.subr.bf16.mxu0 0
      %1160 = vmatpush1.bf16.msra.mxu0 %v1075
      %1161 = vmatprep.subr.bf16.mxu0 0
      %1162 = vmatpush1.bf16.msra.mxu0 %v1078
      %1163 = vmatprep.subr.bf16.mxu0 0
      %1164 = vmatpush1.bf16.msra.mxu0 %v1081
      %1165 = vmatprep.subr.bf16.mxu0 0
      %1166 = vmatpush1.bf16.msra.mxu0 0
      %1167 = vmatprep.subr.bf16.mxu0 0
      %1168 = vmatpush1.bf16.msra.mxu0 0
      %1169 = vmatprep.subr.bf16.mxu0 0
      %1170 = vmatpush1.bf16.msra.mxu0 0
      %1171 = vmatprep.subr.bf16.mxu0 0
      %1172 = vmatpush1.bf16.msra.mxu0 0
      %1173 = vmatprep.subr.bf16.mxu0 0
      %1174 = vmatpush1.bf16.msra.mxu0 0
      %1175 = vmatprep.subr.bf16.mxu0 0
      %1176 = vmatpush1.bf16.msra.mxu0 0
      %1177 = vmatprep.subr.bf16.mxu0 0
      %1178 = vmatpush1.bf16.msra.mxu0 0
      %1179 = vmatprep.subr.bf16.mxu0 0
      %1180 = vmatpush1.bf16.msra.mxu0 0
      %1181 = vmatprep.mubr.bf16.mxu0 0
      %1182 = vmatmul.mubr.bf16.gmra.mrb[0].mxu0 %v928
      %v1183 = vpop.f32.mrb[0].mxu0
      %v1184 = vadd.f32 %v974, %v1183
      %v1185 = vpop.f32.mrb[0].mxu0
      %v1186 = vpop.f32.mrb[0].mxu0
      %v1187 = vadd.f32 %v974, %v1186
      %v1188 = vpop.f32.mrb[0].mxu0
      %1189 = vdwg.mxu0
      %v1190 = vld [vmem:[%s747] sm:$0x1]
      %v1191 = vld [vmem:[%s747 + $0x1] sm:$0x1]
      %v1192 = vpack.c.bf16 %v1141, %v1141
      %v1193 = vpack.c.bf16 %v1145, %v1145
      %v1194 = vpack.c.bf16 %v1143, %v1143
      %v1195 = vpack.c.bf16 %v1147, %v1147
      %v1196 = vpack.c.bf16 %v1184, %v1184
      %v1197 = vpack.c.bf16 %v1187, %v1187
      %v1200 = vlaneseq
      %v1201 = vshrl.u32 %v1200, 7
      %v1202 = vsub.s32 0, %v1201
      %v1203 = vrot.slane %v1190, %v1202
      %v1204 = vlaneseq
      %v1205 = vshrl.u32 %v1204, 7
      %v1206 = vsub.s32 0, %v1205
      %v1207 = vrot.slane %v1191, %v1206
      %vm1210 = vcmask 261120
      %v1212 = vsel %vm1210, %v1192, 0
      %v1215 = vsel %vm1210, %v1194, 0
      %1217 = vmatprep.subr.bf16.mxu0 0
      %1218 = vmatpush1.bf16.xpose.msra.mxu0 %v1215
      %1219 = vmatprep.subr.bf16.mxu0 0
      %1220 = vmatpush1.bf16.xpose.msra.mxu0 0
      %1221 = vmatprep.subr.bf16.mxu0 0
      %1222 = vmatpush1.bf16.xpose.msra.mxu0 0
      %1223 = vmatprep.subr.bf16.mxu0 0
      %1224 = vmatpush1.bf16.xpose.msra.mxu0 0
      %1225 = vmatprep.subr.bf16.mxu0 0
      %1226 = vmatpush1.bf16.xpose.msra.mxu0 0
      %1227 = vmatprep.subr.bf16.mxu0 0
      %1228 = vmatpush1.bf16.xpose.msra.mxu0 0
      %1229 = vmatprep.subr.bf16.mxu0 0
      %1230 = vmatpush1.bf16.xpose.msra.mxu0 0
      %1231 = vmatprep.subr.bf16.mxu0 0
      %1232 = vmatpush1.bf16.xpose.msra.mxu0 0
      %1233 = vmatprep.subr.bf16.mxu0 0
      %1234 = vmatpush1.bf16.xpose.msra.mxu0 0
      %1235 = vmatprep.subr.bf16.mxu0 0
      %1236 = vmatpush1.bf16.xpose.msra.mxu0 0
      %1237 = vmatprep.subr.bf16.mxu0 0
      %1238 = vmatpush1.bf16.xpose.msra.mxu0 0
      %1239 = vmatprep.subr.bf16.mxu0 0
      %1240 = vmatpush1.bf16.xpose.msra.mxu0 0
      %1241 = vmatprep.subr.bf16.mxu0 0
      %1242 = vmatpush1.bf16.xpose.msra.mxu0 0
      %1243 = vmatprep.subr.bf16.mxu0 0
      %1244 = vmatpush1.bf16.xpose.msra.mxu0 0
      %1245 = vmatprep.subr.bf16.mxu0 0
      %1246 = vmatpush1.bf16.xpose.msra.mxu0 0
      %1247 = vmatprep.subr.bf16.mxu0 0
      %1248 = vmatpush1.bf16.xpose.msra.mxu0 0
      %1249 = vmatprep.mubr.bf16.mxu0 0
      %1250 = vmatmul.mubr.bf16.gmra.mrb[0].mxu0 %v1212
      %v1251 = vpop.f32.mrb[0].mxu0
      %v1252 = vadd.f32 %v1203, %v1251
      %v1253 = vpop.f32.mrb[0].mxu0
      %v1254 = vpop.f32.mrb[0].mxu0
      %v1255 = vpop.f32.mrb[0].mxu0
      %1256 = vdwg.mxu0
      %v1258 = vsel %vm1210, %v1193, 0
      %v1261 = vsel %vm1210, %v1195, 0
      %1263 = vmatprep.subr.bf16.mxu0 0
      %1264 = vmatpush1.bf16.xpose.msra.mxu0 %v1261
      %1265 = vmatprep.subr.bf16.mxu0 0
      %1266 = vmatpush1.bf16.xpose.msra.mxu0 0
      %1267 = vmatprep.subr.bf16.mxu0 0
      %1268 = vmatpush1.bf16.xpose.msra.mxu0 0
      %1269 = vmatprep.subr.bf16.mxu0 0
      %1270 = vmatpush1.bf16.xpose.msra.mxu0 0
      %1271 = vmatprep.subr.bf16.mxu0 0
      %1272 = vmatpush1.bf16.xpose.msra.mxu0 0
      %1273 = vmatprep.subr.bf16.mxu0 0
      %1274 = vmatpush1.bf16.xpose.msra.mxu0 0
      %1275 = vmatprep.subr.bf16.mxu0 0
      %1276 = vmatpush1.bf16.xpose.msra.mxu0 0
      %1277 = vmatprep.subr.bf16.mxu0 0
      %1278 = vmatpush1.bf16.xpose.msra.mxu0 0
      %1279 = vmatprep.subr.bf16.mxu0 0
      %1280 = vmatpush1.bf16.xpose.msra.mxu0 0
      %1281 = vmatprep.subr.bf16.mxu0 0
      %1282 = vmatpush1.bf16.xpose.msra.mxu0 0
      %1283 = vmatprep.subr.bf16.mxu0 0
      %1284 = vmatpush1.bf16.xpose.msra.mxu0 0
      %1285 = vmatprep.subr.bf16.mxu0 0
      %1286 = vmatpush1.bf16.xpose.msra.mxu0 0
      %1287 = vmatprep.subr.bf16.mxu0 0
      %1288 = vmatpush1.bf16.xpose.msra.mxu0 0
      %1289 = vmatprep.subr.bf16.mxu0 0
      %1290 = vmatpush1.bf16.xpose.msra.mxu0 0
      %1291 = vmatprep.subr.bf16.mxu0 0
      %1292 = vmatpush1.bf16.xpose.msra.mxu0 0
      %1293 = vmatprep.subr.bf16.mxu0 0
      %1294 = vmatpush1.bf16.xpose.msra.mxu0 0
      %1295 = vmatprep.mubr.bf16.mxu0 0
      %1296 = vmatmul.mubr.bf16.gmra.mrb[0].mxu0 %v1258
      %v1297 = vpop.f32.mrb[0].mxu0
      %v1298 = vadd.f32 %v1207, %v1297
      %v1299 = vpop.f32.mrb[0].mxu0
      %v1300 = vpop.f32.mrb[0].mxu0
      %v1301 = vpop.f32.mrb[0].mxu0
      %1302 = vdwg.mxu0
      %vm1303 = vcmask 64512
      %v1304 = vsel %vm1303, %v1252, -inf
      %1305 = vmax.xlane.f32.xlu0 %v1304
      %v1306 = vpop.xlane.xlu0 %1305
      %v1307 = vsel %vm1303, %v1298, -inf
      %1308 = vmax.xlane.f32.xlu0 %v1307
      %v1309 = vpop.xlane.xlu0 %1308
      %v1310 = vsub.f32 %v1252, %v1306
      %v1311 = vsub.f32 %v1298, %v1309
      %v1312 = vmul.f32 %v1310, 1.442695
      %v1313 = vpow.pop %v1312
      %v1314 = vmul.f32 %v1311, 1.442695
      %v1315 = vpow.pop %v1314
      %v1316 = vsel %vm1303, %v1313, 0.0
      %1317 = vadd.xlane.f32.xlu0 %v1316
      %v1318 = vpop.xlane.xlu0 %1317
      %v1319 = vsel %vm1303, %v1315, 0.0
      %1320 = vadd.xlane.f32.xlu0 %v1319
      %v1321 = vpop.xlane.xlu0 %1320
      %v1322 = vrcp.pop %v1318
      %v1323 = vrcp.pop %v1321
      %v1324 = vmul.f32 %v1313, %v1322
      %v1325 = vmul.f32 %v1315, %v1323
      %v1326 = vpack.c.bf16 %v1324, %v1324
      %v1327 = vpack.c.bf16 %v1325, %v1325
      %v1329 = vsel %vm1303, %v1326, 0
      %vm1331 = vcmask 1043456
      %v1333 = vsel %vm1331, %v1196, 0
      %1335 = vmatprep.subr.bf16.mxu0 0
      %1336 = vmatpush1.bf16.msra.mxu0 %v1333
      %1337 = vmatprep.subr.bf16.mxu0 0
      %1338 = vmatpush1.bf16.msra.mxu0 0
      %1339 = vmatprep.subr.bf16.mxu0 0
      %1340 = vmatpush1.bf16.msra.mxu0 0
      %1341 = vmatprep.subr.bf16.mxu0 0
      %1342 = vmatpush1.bf16.msra.mxu0 0
      %1343 = vmatprep.subr.bf16.mxu0 0
      %1344 = vmatpush1.bf16.msra.mxu0 0
      %1345 = vmatprep.subr.bf16.mxu0 0
      %1346 = vmatpush1.bf16.msra.mxu0 0
      %1347 = vmatprep.subr.bf16.mxu0 0
      %1348 = vmatpush1.bf16.msra.mxu0 0
      %1349 = vmatprep.subr.bf16.mxu0 0
      %1350 = vmatpush1.bf16.msra.mxu0 0
      %1351 = vmatprep.subr.bf16.mxu0 0
      %1352 = vmatpush1.bf16.msra.mxu0 0
      %1353 = vmatprep.subr.bf16.mxu0 0
      %1354 = vmatpush1.bf16.msra.mxu0 0
      %1355 = vmatprep.subr.bf16.mxu0 0
      %1356 = vmatpush1.bf16.msra.mxu0 0
      %1357 = vmatprep.subr.bf16.mxu0 0
      %1358 = vmatpush1.bf16.msra.mxu0 0
      %1359 = vmatprep.subr.bf16.mxu0 0
      %1360 = vmatpush1.bf16.msra.mxu0 0
      %1361 = vmatprep.subr.bf16.mxu0 0
      %1362 = vmatpush1.bf16.msra.mxu0 0
      %1363 = vmatprep.subr.bf16.mxu0 0
      %1364 = vmatpush1.bf16.msra.mxu0 0
      %1365 = vmatprep.subr.bf16.mxu0 0
      %1366 = vmatpush1.bf16.msra.mxu0 0
      %1367 = vmatprep.mubr.bf16.mxu0 0
      %1368 = vmatmul.mubr.bf16.gmra.mrb[0].mxu0 %v1329
      %v1369 = vpop.f32.mrb[0].mxu0
      %v1370 = vadd.f32 0.0, %v1369
      %v1371 = vpop.f32.mrb[0].mxu0
      %v1372 = vpop.f32.mrb[0].mxu0
      %v1373 = vpop.f32.mrb[0].mxu0
      %1374 = vdwg.mxu0
      %v1376 = vsel %vm1303, %v1327, 0
      %v1379 = vsel %vm1331, %v1197, 0
      %1381 = vmatprep.subr.bf16.mxu0 0
      %1382 = vmatpush1.bf16.msra.mxu0 %v1379
      %1383 = vmatprep.subr.bf16.mxu0 0
      %1384 = vmatpush1.bf16.msra.mxu0 0
      %1385 = vmatprep.subr.bf16.mxu0 0
      %1386 = vmatpush1.bf16.msra.mxu0 0
      %1387 = vmatprep.subr.bf16.mxu0 0
      %1388 = vmatpush1.bf16.msra.mxu0 0
      %1389 = vmatprep.subr.bf16.mxu0 0
      %1390 = vmatpush1.bf16.msra.mxu0 0
      %1391 = vmatprep.subr.bf16.mxu0 0
      %1392 = vmatpush1.bf16.msra.mxu0 0
      %1393 = vmatprep.subr.bf16.mxu0 0
      %1394 = vmatpush1.bf16.msra.mxu0 0
      %1395 = vmatprep.subr.bf16.mxu0 0
      %1396 = vmatpush1.bf16.msra.mxu0 0
      %1397 = vmatprep.subr.bf16.mxu0 0
      %1398 = vmatpush1.bf16.msra.mxu0 0
      %1399 = vmatprep.subr.bf16.mxu0 0
      %1400 = vmatpush1.bf16.msra.mxu0 0
      %1401 = vmatprep.subr.bf16.mxu0 0
      %1402 = vmatpush1.bf16.msra.mxu0 0
      %1403 = vmatprep.subr.bf16.mxu0 0
      %1404 = vmatpush1.bf16.msra.mxu0 0
      %1405 = vmatprep.subr.bf16.mxu0 0
      %1406 = vmatpush1.bf16.msra.mxu0 0
      %1407 = vmatprep.subr.bf16.mxu0 0
      %1408 = vmatpush1.bf16.msra.mxu0 0
      %1409 = vmatprep.subr.bf16.mxu0 0
      %1410 = vmatpush1.bf16.msra.mxu0 0
      %1411 = vmatprep.subr.bf16.mxu0 0
      %1412 = vmatpush1.bf16.msra.mxu0 0
      %1413 = vmatprep.mubr.bf16.mxu0 0
      %1414 = vmatmul.mubr.bf16.gmra.mrb[0].mxu0 %v1376
      %v1415 = vpop.f32.mrb[0].mxu0
      %v1416 = vadd.f32 0.0, %v1415
      %v1417 = vpop.f32.mrb[0].mxu0
      %v1418 = vpop.f32.mrb[0].mxu0
      %v1419 = vpop.f32.mrb[0].mxu0
      %1420 = vdwg.mxu0
      %1422 = vrot.lane.b32.xlu0 %v1192, 96
      %v1423 = vpop.permute.xlu0 %1422
      %1425 = vrot.lane.b32.xlu0 %v1194, 96
      %v1426 = vpop.permute.xlu0 %1425
      %v1428 = vsel %vm1210, %v1423, 0
      %v1431 = vsel %vm1210, %v1426, 0
      %1433 = vmatprep.subr.bf16.mxu0 0
      %1434 = vmatpush1.bf16.xpose.msra.mxu0 %v1431
      %1435 = vmatprep.subr.bf16.mxu0 0
      %1436 = vmatpush1.bf16.xpose.msra.mxu0 0
      %1437 = vmatprep.subr.bf16.mxu0 0
      %1438 = vmatpush1.bf16.xpose.msra.mxu0 0
      %1439 = vmatprep.subr.bf16.mxu0 0
      %1440 = vmatpush1.bf16.xpose.msra.mxu0 0
      %1441 = vmatprep.subr.bf16.mxu0 0
      %1442 = vmatpush1.bf16.xpose.msra.mxu0 0
      %1443 = vmatprep.subr.bf16.mxu0 0
      %1444 = vmatpush1.bf16.xpose.msra.mxu0 0
      %1445 = vmatprep.subr.bf16.mxu0 0
      %1446 = vmatpush1.bf16.xpose.msra.mxu0 0
      %1447 = vmatprep.subr.bf16.mxu0 0
      %1448 = vmatpush1.bf16.xpose.msra.mxu0 0
      %1449 = vmatprep.subr.bf16.mxu0 0
      %1450 = vmatpush1.bf16.xpose.msra.mxu0 0
      %1451 = vmatprep.subr.bf16.mxu0 0
      %1452 = vmatpush1.bf16.xpose.msra.mxu0 0
      %1453 = vmatprep.subr.bf16.mxu0 0
      %1454 = vmatpush1.bf16.xpose.msra.mxu0 0
      %1455 = vmatprep.subr.bf16.mxu0 0
      %1456 = vmatpush1.bf16.xpose.msra.mxu0 0
      %1457 = vmatprep.subr.bf16.mxu0 0
      %1458 = vmatpush1.bf16.xpose.msra.mxu0 0
      %1459 = vmatprep.subr.bf16.mxu0 0
      %1460 = vmatpush1.bf16.xpose.msra.mxu0 0
      %1461 = vmatprep.subr.bf16.mxu0 0
      %1462 = vmatpush1.bf16.xpose.msra.mxu0 0
      %1463 = vmatprep.subr.bf16.mxu0 0
      %1464 = vmatpush1.bf16.xpose.msra.mxu0 0
      %1465 = vmatprep.mubr.bf16.mxu0 0
      %1466 = vmatmul.mubr.bf16.gmra.mrb[0].mxu0 %v1428
      %v1467 = vpop.f32.mrb[0].mxu0
      %v1468 = vadd.f32 %v1203, %v1467
      %v1469 = vpop.f32.mrb[0].mxu0
      %v1470 = vpop.f32.mrb[0].mxu0
      %v1471 = vpop.f32.mrb[0].mxu0
      %1472 = vdwg.mxu0
      %1474 = vrot.lane.b32.xlu0 %v1193, 96
      %v1475 = vpop.permute.xlu0 %1474
      %1477 = vrot.lane.b32.xlu0 %v1195, 96
      %v1478 = vpop.permute.xlu0 %1477
      %v1480 = vsel %vm1210, %v1475, 0
      %v1483 = vsel %vm1210, %v1478, 0
      %1485 = vmatprep.subr.bf16.mxu0 0
      %1486 = vmatpush1.bf16.xpose.msra.mxu0 %v1483
      %1487 = vmatprep.subr.bf16.mxu0 0
      %1488 = vmatpush1.bf16.xpose.msra.mxu0 0
      %1489 = vmatprep.subr.bf16.mxu0 0
      %1490 = vmatpush1.bf16.xpose.msra.mxu0 0
      %1491 = vmatprep.subr.bf16.mxu0 0
      %1492 = vmatpush1.bf16.xpose.msra.mxu0 0
      %1493 = vmatprep.subr.bf16.mxu0 0
      %1494 = vmatpush1.bf16.xpose.msra.mxu0 0
      %1495 = vmatprep.subr.bf16.mxu0 0
      %1496 = vmatpush1.bf16.xpose.msra.mxu0 0
      %1497 = vmatprep.subr.bf16.mxu0 0
      %1498 = vmatpush1.bf16.xpose.msra.mxu0 0
      %1499 = vmatprep.subr.bf16.mxu0 0
      %1500 = vmatpush1.bf16.xpose.msra.mxu0 0
      %1501 = vmatprep.subr.bf16.mxu0 0
      %1502 = vmatpush1.bf16.xpose.msra.mxu0 0
      %1503 = vmatprep.subr.bf16.mxu0 0
      %1504 = vmatpush1.bf16.xpose.msra.mxu0 0
      %1505 = vmatprep.subr.bf16.mxu0 0
      %1506 = vmatpush1.bf16.xpose.msra.mxu0 0
      %1507 = vmatprep.subr.bf16.mxu0 0
      %1508 = vmatpush1.bf16.xpose.msra.mxu0 0
      %1509 = vmatprep.subr.bf16.mxu0 0
      %1510 = vmatpush1.bf16.xpose.msra.mxu0 0
      %1511 = vmatprep.subr.bf16.mxu0 0
      %1512 = vmatpush1.bf16.xpose.msra.mxu0 0
      %1513 = vmatprep.subr.bf16.mxu0 0
      %1514 = vmatpush1.bf16.xpose.msra.mxu0 0
      %1515 = vmatprep.subr.bf16.mxu0 0
      %1516 = vmatpush1.bf16.xpose.msra.mxu0 0
      %1517 = vmatprep.mubr.bf16.mxu0 0
      %1518 = vmatmul.mubr.bf16.gmra.mrb[0].mxu0 %v1480
      %v1519 = vpop.f32.mrb[0].mxu0
      %v1520 = vadd.f32 %v1207, %v1519
      %v1521 = vpop.f32.mrb[0].mxu0
      %v1522 = vpop.f32.mrb[0].mxu0
      %v1523 = vpop.f32.mrb[0].mxu0
      %1524 = vdwg.mxu0
      %v1525 = vsel %vm1303, %v1468, -inf
      %1526 = vmax.xlane.f32.xlu0 %v1525
      %v1527 = vpop.xlane.xlu0 %1526
      %v1528 = vsel %vm1303, %v1520, -inf
      %1529 = vmax.xlane.f32.xlu0 %v1528
      %v1530 = vpop.xlane.xlu0 %1529
      %v1531 = vsub.f32 %v1468, %v1527
      %v1532 = vsub.f32 %v1520, %v1530
      %v1533 = vmul.f32 %v1531, 1.442695
      %v1534 = vpow.pop %v1533
      %v1535 = vmul.f32 %v1532, 1.442695
      %v1536 = vpow.pop %v1535
      %v1537 = vsel %vm1303, %v1534, 0.0
      %1538 = vadd.xlane.f32.xlu0 %v1537
      %v1539 = vpop.xlane.xlu0 %1538
      %v1540 = vsel %vm1303, %v1536, 0.0
      %1541 = vadd.xlane.f32.xlu0 %v1540
      %v1542 = vpop.xlane.xlu0 %1541
      %v1543 = vrcp.pop %v1539
      %v1544 = vrcp.pop %v1542
      %v1545 = vmul.f32 %v1534, %v1543
      %v1546 = vmul.f32 %v1536, %v1544
      %v1547 = vpack.c.bf16 %v1545, %v1545
      %v1548 = vpack.c.bf16 %v1546, %v1546
      %1550 = vrot.lane.b32.xlu0 %v1196, 96
      %v1551 = vpop.permute.xlu0 %1550
      %v1553 = vsel %vm1303, %v1547, 0
      %v1556 = vsel %vm1331, %v1551, 0
      %1558 = vmatprep.subr.bf16.mxu0 0
      %1559 = vmatpush1.bf16.msra.mxu0 %v1556
      %1560 = vmatprep.subr.bf16.mxu0 0
      %1561 = vmatpush1.bf16.msra.mxu0 0
      %1562 = vmatprep.subr.bf16.mxu0 0
      %1563 = vmatpush1.bf16.msra.mxu0 0
      %1564 = vmatprep.subr.bf16.mxu0 0
      %1565 = vmatpush1.bf16.msra.mxu0 0
      %1566 = vmatprep.subr.bf16.mxu0 0
      %1567 = vmatpush1.bf16.msra.mxu0 0
      %1568 = vmatprep.subr.bf16.mxu0 0
      %1569 = vmatpush1.bf16.msra.mxu0 0
      %1570 = vmatprep.subr.bf16.mxu0 0
      %1571 = vmatpush1.bf16.msra.mxu0 0
      %1572 = vmatprep.subr.bf16.mxu0 0
      %1573 = vmatpush1.bf16.msra.mxu0 0
      %1574 = vmatprep.subr.bf16.mxu0 0
      %1575 = vmatpush1.bf16.msra.mxu0 0
      %1576 = vmatprep.subr.bf16.mxu0 0
      %1577 = vmatpush1.bf16.msra.mxu0 0
      %1578 = vmatprep.subr.bf16.mxu0 0
      %1579 = vmatpush1.bf16.msra.mxu0 0
      %1580 = vmatprep.subr.bf16.mxu0 0
      %1581 = vmatpush1.bf16.msra.mxu0 0
      %1582 = vmatprep.subr.bf16.mxu0 0
      %1583 = vmatpush1.bf16.msra.mxu0 0
      %1584 = vmatprep.subr.bf16.mxu0 0
      %1585 = vmatpush1.bf16.msra.mxu0 0
      %1586 = vmatprep.subr.bf16.mxu0 0
      %1587 = vmatpush1.bf16.msra.mxu0 0
      %1588 = vmatprep.subr.bf16.mxu0 0
      %1589 = vmatpush1.bf16.msra.mxu0 0
      %1590 = vmatprep.mubr.bf16.mxu0 0
      %1591 = vmatmul.mubr.bf16.gmra.mrb[0].mxu0 %v1553
      %v1592 = vpop.f32.mrb[0].mxu0
      %v1593 = vadd.f32 0.0, %v1592
      %v1594 = vpop.f32.mrb[0].mxu0
      %v1595 = vpop.f32.mrb[0].mxu0
      %v1596 = vpop.f32.mrb[0].mxu0
      %1597 = vdwg.mxu0
      %1599 = vrot.lane.b32.xlu0 %v1197, 96
      %v1600 = vpop.permute.xlu0 %1599
      %v1602 = vsel %vm1303, %v1548, 0
      %v1605 = vsel %vm1331, %v1600, 0
      %1607 = vmatprep.subr.bf16.mxu0 0
      %1608 = vmatpush1.bf16.msra.mxu0 %v1605
      %1609 = vmatprep.subr.bf16.mxu0 0
      %1610 = vmatpush1.bf16.msra.mxu0 0
      %1611 = vmatprep.subr.bf16.mxu0 0
      %1612 = vmatpush1.bf16.msra.mxu0 0
      %1613 = vmatprep.subr.bf16.mxu0 0
      %1614 = vmatpush1.bf16.msra.mxu0 0
      %1615 = vmatprep.subr.bf16.mxu0 0
      %1616 = vmatpush1.bf16.msra.mxu0 0
      %1617 = vmatprep.subr.bf16.mxu0 0
      %1618 = vmatpush1.bf16.msra.mxu0 0
      %1619 = vmatprep.subr.bf16.mxu0 0
      %1620 = vmatpush1.bf16.msra.mxu0 0
      %1621 = vmatprep.subr.bf16.mxu0 0
      %1622 = vmatpush1.bf16.msra.mxu0 0
      %1623 = vmatprep.subr.bf16.mxu0 0
      %1624 = vmatpush1.bf16.msra.mxu0 0
      %1625 = vmatprep.subr.bf16.mxu0 0
      %1626 = vmatpush1.bf16.msra.mxu0 0
      %1627 = vmatprep.subr.bf16.mxu0 0
      %1628 = vmatpush1.bf16.msra.mxu0 0
      %1629 = vmatprep.subr.bf16.mxu0 0
      %1630 = vmatpush1.bf16.msra.mxu0 0
      %1631 = vmatprep.subr.bf16.mxu0 0
      %1632 = vmatpush1.bf16.msra.mxu0 0
      %1633 = vmatprep.subr.bf16.mxu0 0
      %1634 = vmatpush1.bf16.msra.mxu0 0
      %1635 = vmatprep.subr.bf16.mxu0 0
      %1636 = vmatpush1.bf16.msra.mxu0 0
      %1637 = vmatprep.subr.bf16.mxu0 0
      %1638 = vmatpush1.bf16.msra.mxu0 0
      %1639 = vmatprep.mubr.bf16.mxu0 0
      %1640 = vmatmul.mubr.bf16.gmra.mrb[0].mxu0 %v1602
      %v1641 = vpop.f32.mrb[0].mxu0
      %v1642 = vadd.f32 0.0, %v1641
      %v1643 = vpop.f32.mrb[0].mxu0
      %v1644 = vpop.f32.mrb[0].mxu0
      %v1645 = vpop.f32.mrb[0].mxu0
      %1646 = vdwg.mxu0
      %1647 = vrot.lane.b32.xlu0 %v1192, 64
      %v1648 = vpop.permute.xlu0 %1647
      %1649 = vrot.lane.b32.xlu0 %v1194, 64
      %v1650 = vpop.permute.xlu0 %1649
      %v1652 = vsel %vm1210, %v1648, 0
      %v1655 = vsel %vm1210, %v1650, 0
      %1657 = vmatprep.subr.bf16.mxu0 0
      %1658 = vmatpush1.bf16.xpose.msra.mxu0 %v1655
      %1659 = vmatprep.subr.bf16.mxu0 0
      %1660 = vmatpush1.bf16.xpose.msra.mxu0 0
      %1661 = vmatprep.subr.bf16.mxu0 0
      %1662 = vmatpush1.bf16.xpose.msra.mxu0 0
      %1663 = vmatprep.subr.bf16.mxu0 0
      %1664 = vmatpush1.bf16.xpose.msra.mxu0 0
      %1665 = vmatprep.subr.bf16.mxu0 0
      %1666 = vmatpush1.bf16.xpose.msra.mxu0 0
      %1667 = vmatprep.subr.bf16.mxu0 0
      %1668 = vmatpush1.bf16.xpose.msra.mxu0 0
      %1669 = vmatprep.subr.bf16.mxu0 0
      %1670 = vmatpush1.bf16.xpose.msra.mxu0 0
      %1671 = vmatprep.subr.bf16.mxu0 0
      %1672 = vmatpush1.bf16.xpose.msra.mxu0 0
      %1673 = vmatprep.subr.bf16.mxu0 0
      %1674 = vmatpush1.bf16.xpose.msra.mxu0 0
      %1675 = vmatprep.subr.bf16.mxu0 0
      %1676 = vmatpush1.bf16.xpose.msra.mxu0 0
      %1677 = vmatprep.subr.bf16.mxu0 0
      %1678 = vmatpush1.bf16.xpose.msra.mxu0 0
      %1679 = vmatprep.subr.bf16.mxu0 0
      %1680 = vmatpush1.bf16.xpose.msra.mxu0 0
      %1681 = vmatprep.subr.bf16.mxu0 0
      %1682 = vmatpush1.bf16.xpose.msra.mxu0 0
      %1683 = vmatprep.subr.bf16.mxu0 0
      %1684 = vmatpush1.bf16.xpose.msra.mxu0 0
      %1685 = vmatprep.subr.bf16.mxu0 0
      %1686 = vmatpush1.bf16.xpose.msra.mxu0 0
      %1687 = vmatprep.subr.bf16.mxu0 0
      %1688 = vmatpush1.bf16.xpose.msra.mxu0 0
      %1689 = vmatprep.mubr.bf16.mxu0 0
      %1690 = vmatmul.mubr.bf16.gmra.mrb[0].mxu0 %v1652
      %v1691 = vpop.f32.mrb[0].mxu0
      %v1692 = vadd.f32 %v1203, %v1691
      %v1693 = vpop.f32.mrb[0].mxu0
      %v1694 = vpop.f32.mrb[0].mxu0
      %v1695 = vpop.f32.mrb[0].mxu0
      %1696 = vdwg.mxu0
      %1697 = vrot.lane.b32.xlu0 %v1193, 64
      %v1698 = vpop.permute.xlu0 %1697
      %1699 = vrot.lane.b32.xlu0 %v1195, 64
      %v1700 = vpop.permute.xlu0 %1699
      %v1702 = vsel %vm1210, %v1698, 0
      %v1705 = vsel %vm1210, %v1700, 0
      %1707 = vmatprep.subr.bf16.mxu0 0
      %1708 = vmatpush1.bf16.xpose.msra.mxu0 %v1705
      %1709 = vmatprep.subr.bf16.mxu0 0
      %1710 = vmatpush1.bf16.xpose.msra.mxu0 0
      %1711 = vmatprep.subr.bf16.mxu0 0
      %1712 = vmatpush1.bf16.xpose.msra.mxu0 0
      %1713 = vmatprep.subr.bf16.mxu0 0
      %1714 = vmatpush1.bf16.xpose.msra.mxu0 0
      %1715 = vmatprep.subr.bf16.mxu0 0
      %1716 = vmatpush1.bf16.xpose.msra.mxu0 0
      %1717 = vmatprep.subr.bf16.mxu0 0
      %1718 = vmatpush1.bf16.xpose.msra.mxu0 0
      %1719 = vmatprep.subr.bf16.mxu0 0
      %1720 = vmatpush1.bf16.xpose.msra.mxu0 0
      %1721 = vmatprep.subr.bf16.mxu0 0
      %1722 = vmatpush1.bf16.xpose.msra.mxu0 0
      %1723 = vmatprep.subr.bf16.mxu0 0
      %1724 = vmatpush1.bf16.xpose.msra.mxu0 0
      %1725 = vmatprep.subr.bf16.mxu0 0
      %1726 = vmatpush1.bf16.xpose.msra.mxu0 0
      %1727 = vmatprep.subr.bf16.mxu0 0
      %1728 = vmatpush1.bf16.xpose.msra.mxu0 0
      %1729 = vmatprep.subr.bf16.mxu0 0
      %1730 = vmatpush1.bf16.xpose.msra.mxu0 0
      %1731 = vmatprep.subr.bf16.mxu0 0
      %1732 = vmatpush1.bf16.xpose.msra.mxu0 0
      %1733 = vmatprep.subr.bf16.mxu0 0
      %1734 = vmatpush1.bf16.xpose.msra.mxu0 0
      %1735 = vmatprep.subr.bf16.mxu0 0
      %1736 = vmatpush1.bf16.xpose.msra.mxu0 0
      %1737 = vmatprep.subr.bf16.mxu0 0
      %1738 = vmatpush1.bf16.xpose.msra.mxu0 0
      %1739 = vmatprep.mubr.bf16.mxu0 0
      %1740 = vmatmul.mubr.bf16.gmra.mrb[0].mxu0 %v1702
      %v1741 = vpop.f32.mrb[0].mxu0
      %v1742 = vadd.f32 %v1207, %v1741
      %v1743 = vpop.f32.mrb[0].mxu0
      %v1744 = vpop.f32.mrb[0].mxu0
      %v1745 = vpop.f32.mrb[0].mxu0
      %1746 = vdwg.mxu0
      %v1747 = vsel %vm1303, %v1692, -inf
      %1748 = vmax.xlane.f32.xlu0 %v1747
      %v1749 = vpop.xlane.xlu0 %1748
      %v1750 = vsel %vm1303, %v1742, -inf
      %1751 = vmax.xlane.f32.xlu0 %v1750
      %v1752 = vpop.xlane.xlu0 %1751
      %v1753 = vsub.f32 %v1692, %v1749
      %v1754 = vsub.f32 %v1742, %v1752
      %v1755 = vmul.f32 %v1753, 1.442695
      %v1756 = vpow.pop %v1755
      %v1757 = vmul.f32 %v1754, 1.442695
      %v1758 = vpow.pop %v1757
      %v1759 = vsel %vm1303, %v1756, 0.0
      %1760 = vadd.xlane.f32.xlu0 %v1759
      %v1761 = vpop.xlane.xlu0 %1760
      %v1762 = vsel %vm1303, %v1758, 0.0
      %1763 = vadd.xlane.f32.xlu0 %v1762
      %v1764 = vpop.xlane.xlu0 %1763
      %v1765 = vrcp.pop %v1761
      %v1766 = vrcp.pop %v1764
      %v1767 = vmul.f32 %v1756, %v1765
      %v1768 = vmul.f32 %v1758, %v1766
      %v1769 = vpack.c.bf16 %v1767, %v1767
      %v1770 = vpack.c.bf16 %v1768, %v1768
      %1771 = vrot.lane.b32.xlu0 %v1196, 64
      %v1772 = vpop.permute.xlu0 %1771
      %v1774 = vsel %vm1303, %v1769, 0
      %v1777 = vsel %vm1331, %v1772, 0
      %1779 = vmatprep.subr.bf16.mxu0 0
      %1780 = vmatpush1.bf16.msra.mxu0 %v1777
      %1781 = vmatprep.subr.bf16.mxu0 0
      %1782 = vmatpush1.bf16.msra.mxu0 0
      %1783 = vmatprep.subr.bf16.mxu0 0
      %1784 = vmatpush1.bf16.msra.mxu0 0
      %1785 = vmatprep.subr.bf16.mxu0 0
      %1786 = vmatpush1.bf16.msra.mxu0 0
      %1787 = vmatprep.subr.bf16.mxu0 0
      %1788 = vmatpush1.bf16.msra.mxu0 0
      %1789 = vmatprep.subr.bf16.mxu0 0
      %1790 = vmatpush1.bf16.msra.mxu0 0
      %1791 = vmatprep.subr.bf16.mxu0 0
      %1792 = vmatpush1.bf16.msra.mxu0 0
      %1793 = vmatprep.subr.bf16.mxu0 0
      %1794 = vmatpush1.bf16.msra.mxu0 0
      %1795 = vmatprep.subr.bf16.mxu0 0
      %1796 = vmatpush1.bf16.msra.mxu0 0
      %1797 = vmatprep.subr.bf16.mxu0 0
      %1798 = vmatpush1.bf16.msra.mxu0 0
      %1799 = vmatprep.subr.bf16.mxu0 0
      %1800 = vmatpush1.bf16.msra.mxu0 0
      %1801 = vmatprep.subr.bf16.mxu0 0
      %1802 = vmatpush1.bf16.msra.mxu0 0
      %1803 = vmatprep.subr.bf16.mxu0 0
      %1804 = vmatpush1.bf16.msra.mxu0 0
      %1805 = vmatprep.subr.bf16.mxu0 0
      %1806 = vmatpush1.bf16.msra.mxu0 0
      %1807 = vmatprep.subr.bf16.mxu0 0
      %1808 = vmatpush1.bf16.msra.mxu0 0
      %1809 = vmatprep.subr.bf16.mxu0 0
      %1810 = vmatpush1.bf16.msra.mxu0 0
      %1811 = vmatprep.mubr.bf16.mxu0 0
      %1812 = vmatmul.mubr.bf16.gmra.mrb[0].mxu0 %v1774
      %v1813 = vpop.f32.mrb[0].mxu0
      %v1814 = vadd.f32 0.0, %v1813
      %v1815 = vpop.f32.mrb[0].mxu0
      %v1816 = vpop.f32.mrb[0].mxu0
      %v1817 = vpop.f32.mrb[0].mxu0
      %1818 = vdwg.mxu0
      %1819 = vrot.lane.b32.xlu0 %v1197, 64
      %v1820 = vpop.permute.xlu0 %1819
      %v1822 = vsel %vm1303, %v1770, 0
      %v1825 = vsel %vm1331, %v1820, 0
      %1827 = vmatprep.subr.bf16.mxu0 0
      %1828 = vmatpush1.bf16.msra.mxu0 %v1825
      %1829 = vmatprep.subr.bf16.mxu0 0
      %1830 = vmatpush1.bf16.msra.mxu0 0
      %1831 = vmatprep.subr.bf16.mxu0 0
      %1832 = vmatpush1.bf16.msra.mxu0 0
      %1833 = vmatprep.subr.bf16.mxu0 0
      %1834 = vmatpush1.bf16.msra.mxu0 0
      %1835 = vmatprep.subr.bf16.mxu0 0
      %1836 = vmatpush1.bf16.msra.mxu0 0
      %1837 = vmatprep.subr.bf16.mxu0 0
      %1838 = vmatpush1.bf16.msra.mxu0 0
      %1839 = vmatprep.subr.bf16.mxu0 0
      %1840 = vmatpush1.bf16.msra.mxu0 0
      %1841 = vmatprep.subr.bf16.mxu0 0
      %1842 = vmatpush1.bf16.msra.mxu0 0
      %1843 = vmatprep.subr.bf16.mxu0 0
      %1844 = vmatpush1.bf16.msra.mxu0 0
      %1845 = vmatprep.subr.bf16.mxu0 0
      %1846 = vmatpush1.bf16.msra.mxu0 0
      %1847 = vmatprep.subr.bf16.mxu0 0
      %1848 = vmatpush1.bf16.msra.mxu0 0
      %1849 = vmatprep.subr.bf16.mxu0 0
      %1850 = vmatpush1.bf16.msra.mxu0 0
      %1851 = vmatprep.subr.bf16.mxu0 0
      %1852 = vmatpush1.bf16.msra.mxu0 0
      %1853 = vmatprep.subr.bf16.mxu0 0
      %1854 = vmatpush1.bf16.msra.mxu0 0
      %1855 = vmatprep.subr.bf16.mxu0 0
      %1856 = vmatpush1.bf16.msra.mxu0 0
      %1857 = vmatprep.subr.bf16.mxu0 0
      %1858 = vmatpush1.bf16.msra.mxu0 0
      %1859 = vmatprep.mubr.bf16.mxu0 0
      %1860 = vmatmul.mubr.bf16.gmra.mrb[0].mxu0 %v1822
      %v1861 = vpop.f32.mrb[0].mxu0
      %v1862 = vadd.f32 0.0, %v1861
      %v1863 = vpop.f32.mrb[0].mxu0
      %v1864 = vpop.f32.mrb[0].mxu0
      %v1865 = vpop.f32.mrb[0].mxu0
      %1866 = vdwg.mxu0
      %1867 = vrot.lane.b32.xlu0 %v1192, 32
      %v1868 = vpop.permute.xlu0 %1867
      %1869 = vrot.lane.b32.xlu0 %v1194, 32
      %v1870 = vpop.permute.xlu0 %1869
      %v1872 = vsel %vm1210, %v1868, 0
      %v1875 = vsel %vm1210, %v1870, 0
      %1877 = vmatprep.subr.bf16.mxu0 0
      %1878 = vmatpush1.bf16.xpose.msra.mxu0 %v1875
      %1879 = vmatprep.subr.bf16.mxu0 0
      %1880 = vmatpush1.bf16.xpose.msra.mxu0 0
      %1881 = vmatprep.subr.bf16.mxu0 0
      %1882 = vmatpush1.bf16.xpose.msra.mxu0 0
      %1883 = vmatprep.subr.bf16.mxu0 0
      %1884 = vmatpush1.bf16.xpose.msra.mxu0 0
      %1885 = vmatprep.subr.bf16.mxu0 0
      %1886 = vmatpush1.bf16.xpose.msra.mxu0 0
      %1887 = vmatprep.subr.bf16.mxu0 0
      %1888 = vmatpush1.bf16.xpose.msra.mxu0 0
      %1889 = vmatprep.subr.bf16.mxu0 0
      %1890 = vmatpush1.bf16.xpose.msra.mxu0 0
      %1891 = vmatprep.subr.bf16.mxu0 0
      %1892 = vmatpush1.bf16.xpose.msra.mxu0 0
      %1893 = vmatprep.subr.bf16.mxu0 0
      %1894 = vmatpush1.bf16.xpose.msra.mxu0 0
      %1895 = vmatprep.subr.bf16.mxu0 0
      %1896 = vmatpush1.bf16.xpose.msra.mxu0 0
      %1897 = vmatprep.subr.bf16.mxu0 0
      %1898 = vmatpush1.bf16.xpose.msra.mxu0 0
      %1899 = vmatprep.subr.bf16.mxu0 0
      %1900 = vmatpush1.bf16.xpose.msra.mxu0 0
      %1901 = vmatprep.subr.bf16.mxu0 0
      %1902 = vmatpush1.bf16.xpose.msra.mxu0 0
      %1903 = vmatprep.subr.bf16.mxu0 0
      %1904 = vmatpush1.bf16.xpose.msra.mxu0 0
      %1905 = vmatprep.subr.bf16.mxu0 0
      %1906 = vmatpush1.bf16.xpose.msra.mxu0 0
      %1907 = vmatprep.subr.bf16.mxu0 0
      %1908 = vmatpush1.bf16.xpose.msra.mxu0 0
      %1909 = vmatprep.mubr.bf16.mxu0 0
      %1910 = vmatmul.mubr.bf16.gmra.mrb[0].mxu0 %v1872
      %v1911 = vpop.f32.mrb[0].mxu0
      %v1912 = vadd.f32 %v1203, %v1911
      %v1913 = vpop.f32.mrb[0].mxu0
      %v1914 = vpop.f32.mrb[0].mxu0
      %v1915 = vpop.f32.mrb[0].mxu0
      %1916 = vdwg.mxu0
      %1917 = vrot.lane.b32.xlu0 %v1193, 32
      %v1918 = vpop.permute.xlu0 %1917
      %1919 = vrot.lane.b32.xlu0 %v1195, 32
      %v1920 = vpop.permute.xlu0 %1919
      %v1922 = vsel %vm1210, %v1918, 0
      %v1925 = vsel %vm1210, %v1920, 0
      %1927 = vmatprep.subr.bf16.mxu0 0
      %1928 = vmatpush1.bf16.xpose.msra.mxu0 %v1925
      %1929 = vmatprep.subr.bf16.mxu0 0
      %1930 = vmatpush1.bf16.xpose.msra.mxu0 0
      %1931 = vmatprep.subr.bf16.mxu0 0
      %1932 = vmatpush1.bf16.xpose.msra.mxu0 0
      %1933 = vmatprep.subr.bf16.mxu0 0
      %1934 = vmatpush1.bf16.xpose.msra.mxu0 0
      %1935 = vmatprep.subr.bf16.mxu0 0
      %1936 = vmatpush1.bf16.xpose.msra.mxu0 0
      %1937 = vmatprep.subr.bf16.mxu0 0
      %1938 = vmatpush1.bf16.xpose.msra.mxu0 0
      %1939 = vmatprep.subr.bf16.mxu0 0
      %1940 = vmatpush1.bf16.xpose.msra.mxu0 0
      %1941 = vmatprep.subr.bf16.mxu0 0
      %1942 = vmatpush1.bf16.xpose.msra.mxu0 0
      %1943 = vmatprep.subr.bf16.mxu0 0
      %1944 = vmatpush1.bf16.xpose.msra.mxu0 0
      %1945 = vmatprep.subr.bf16.mxu0 0
      %1946 = vmatpush1.bf16.xpose.msra.mxu0 0
      %1947 = vmatprep.subr.bf16.mxu0 0
      %1948 = vmatpush1.bf16.xpose.msra.mxu0 0
      %1949 = vmatprep.subr.bf16.mxu0 0
      %1950 = vmatpush1.bf16.xpose.msra.mxu0 0
      %1951 = vmatprep.subr.bf16.mxu0 0
      %1952 = vmatpush1.bf16.xpose.msra.mxu0 0
      %1953 = vmatprep.subr.bf16.mxu0 0
      %1954 = vmatpush1.bf16.xpose.msra.mxu0 0
      %1955 = vmatprep.subr.bf16.mxu0 0
      %1956 = vmatpush1.bf16.xpose.msra.mxu0 0
      %1957 = vmatprep.subr.bf16.mxu0 0
      %1958 = vmatpush1.bf16.xpose.msra.mxu0 0
      %1959 = vmatprep.mubr.bf16.mxu0 0
      %1960 = vmatmul.mubr.bf16.gmra.mrb[0].mxu0 %v1922
      %v1961 = vpop.f32.mrb[0].mxu0
      %v1962 = vadd.f32 %v1207, %v1961
      %v1963 = vpop.f32.mrb[0].mxu0
      %v1964 = vpop.f32.mrb[0].mxu0
      %v1965 = vpop.f32.mrb[0].mxu0
      %1966 = vdwg.mxu0
      %v1967 = vsel %vm1303, %v1912, -inf
      %1968 = vmax.xlane.f32.xlu0 %v1967
      %v1969 = vpop.xlane.xlu0 %1968
      %v1970 = vsel %vm1303, %v1962, -inf
      %1971 = vmax.xlane.f32.xlu0 %v1970
      %v1972 = vpop.xlane.xlu0 %1971
      %v1973 = vsub.f32 %v1912, %v1969
      %v1974 = vsub.f32 %v1962, %v1972
      %v1975 = vmul.f32 %v1973, 1.442695
      %v1976 = vpow.pop %v1975
      %v1977 = vmul.f32 %v1974, 1.442695
      %v1978 = vpow.pop %v1977
      %v1979 = vsel %vm1303, %v1976, 0.0
      %1980 = vadd.xlane.f32.xlu0 %v1979
      %v1981 = vpop.xlane.xlu0 %1980
      %v1982 = vsel %vm1303, %v1978, 0.0
      %1983 = vadd.xlane.f32.xlu0 %v1982
      %v1984 = vpop.xlane.xlu0 %1983
      %v1985 = vrcp.pop %v1981
      %v1986 = vrcp.pop %v1984
      %v1987 = vmul.f32 %v1976, %v1985
      %v1988 = vmul.f32 %v1978, %v1986
      %v1989 = vpack.c.bf16 %v1987, %v1987
      %v1990 = vpack.c.bf16 %v1988, %v1988
      %1991 = vrot.lane.b32.xlu0 %v1196, 32
      %v1992 = vpop.permute.xlu0 %1991
      %v1994 = vsel %vm1303, %v1989, 0
      %v1997 = vsel %vm1331, %v1992, 0
      %1999 = vmatprep.subr.bf16.mxu0 0
      %2000 = vmatpush1.bf16.msra.mxu0 %v1997
      %2001 = vmatprep.subr.bf16.mxu0 0
      %2002 = vmatpush1.bf16.msra.mxu0 0
      %2003 = vmatprep.subr.bf16.mxu0 0
      %2004 = vmatpush1.bf16.msra.mxu0 0
      %2005 = vmatprep.subr.bf16.mxu0 0
      %2006 = vmatpush1.bf16.msra.mxu0 0
      %2007 = vmatprep.subr.bf16.mxu0 0
      %2008 = vmatpush1.bf16.msra.mxu0 0
      %2009 = vmatprep.subr.bf16.mxu0 0
      %2010 = vmatpush1.bf16.msra.mxu0 0
      %2011 = vmatprep.subr.bf16.mxu0 0
      %2012 = vmatpush1.bf16.msra.mxu0 0
      %2013 = vmatprep.subr.bf16.mxu0 0
      %2014 = vmatpush1.bf16.msra.mxu0 0
      %2015 = vmatprep.subr.bf16.mxu0 0
      %2016 = vmatpush1.bf16.msra.mxu0 0
      %2017 = vmatprep.subr.bf16.mxu0 0
      %2018 = vmatpush1.bf16.msra.mxu0 0
      %2019 = vmatprep.subr.bf16.mxu0 0
      %2020 = vmatpush1.bf16.msra.mxu0 0
      %2021 = vmatprep.subr.bf16.mxu0 0
      %2022 = vmatpush1.bf16.msra.mxu0 0
      %2023 = vmatprep.subr.bf16.mxu0 0
      %2024 = vmatpush1.bf16.msra.mxu0 0
      %2025 = vmatprep.subr.bf16.mxu0 0
      %2026 = vmatpush1.bf16.msra.mxu0 0
      %2027 = vmatprep.subr.bf16.mxu0 0
      %2028 = vmatpush1.bf16.msra.mxu0 0
      %2029 = vmatprep.subr.bf16.mxu0 0
      %2030 = vmatpush1.bf16.msra.mxu0 0
      %2031 = vmatprep.mubr.bf16.mxu0 0
      %2032 = vmatmul.mubr.bf16.gmra.mrb[0].mxu0 %v1994
      %v2033 = vpop.f32.mrb[0].mxu0
      %v2034 = vadd.f32 0.0, %v2033
      %v2035 = vpop.f32.mrb[0].mxu0
      %v2036 = vpop.f32.mrb[0].mxu0
      %v2037 = vpop.f32.mrb[0].mxu0
      %2038 = vdwg.mxu0
      %2039 = vrot.lane.b32.xlu0 %v1197, 32
      %v2040 = vpop.permute.xlu0 %2039
      %v2042 = vsel %vm1303, %v1990, 0
      %v2045 = vsel %vm1331, %v2040, 0
      %2047 = vmatprep.subr.bf16.mxu0 0
      %2048 = vmatpush1.bf16.msra.mxu0 %v2045
      %2049 = vmatprep.subr.bf16.mxu0 0
      %2050 = vmatpush1.bf16.msra.mxu0 0
      %2051 = vmatprep.subr.bf16.mxu0 0
      %2052 = vmatpush1.bf16.msra.mxu0 0
      %2053 = vmatprep.subr.bf16.mxu0 0
      %2054 = vmatpush1.bf16.msra.mxu0 0
      %2055 = vmatprep.subr.bf16.mxu0 0
      %2056 = vmatpush1.bf16.msra.mxu0 0
      %2057 = vmatprep.subr.bf16.mxu0 0
      %2058 = vmatpush1.bf16.msra.mxu0 0
      %2059 = vmatprep.subr.bf16.mxu0 0
      %2060 = vmatpush1.bf16.msra.mxu0 0
      %2061 = vmatprep.subr.bf16.mxu0 0
      %2062 = vmatpush1.bf16.msra.mxu0 0
      %2063 = vmatprep.subr.bf16.mxu0 0
      %2064 = vmatpush1.bf16.msra.mxu0 0
      %2065 = vmatprep.subr.bf16.mxu0 0
      %2066 = vmatpush1.bf16.msra.mxu0 0
      %2067 = vmatprep.subr.bf16.mxu0 0
      %2068 = vmatpush1.bf16.msra.mxu0 0
      %2069 = vmatprep.subr.bf16.mxu0 0
      %2070 = vmatpush1.bf16.msra.mxu0 0
      %2071 = vmatprep.subr.bf16.mxu0 0
      %2072 = vmatpush1.bf16.msra.mxu0 0
      %2073 = vmatprep.subr.bf16.mxu0 0
      %2074 = vmatpush1.bf16.msra.mxu0 0
      %2075 = vmatprep.subr.bf16.mxu0 0
      %2076 = vmatpush1.bf16.msra.mxu0 0
      %2077 = vmatprep.subr.bf16.mxu0 0
      %2078 = vmatpush1.bf16.msra.mxu0 0
      %2079 = vmatprep.mubr.bf16.mxu0 0
      %2080 = vmatmul.mubr.bf16.gmra.mrb[0].mxu0 %v2042
      %v2081 = vpop.f32.mrb[0].mxu0
      %v2082 = vadd.f32 0.0, %v2081
      %v2083 = vpop.f32.mrb[0].mxu0
      %v2084 = vpop.f32.mrb[0].mxu0
      %v2085 = vpop.f32.mrb[0].mxu0
      %2086 = vdwg.mxu0
      %2089 = vrot.lane.b32.xlu0 %v1593, 32
      %v2090 = vpop.permute.xlu0 %2089
      %2091 = vrot.lane.b32.xlu0 %v1642, 32
      %v2092 = vpop.permute.xlu0 %2091
      %2097 = vrot.lane.b32.xlu0 %v1814, 64
      %v2098 = vpop.permute.xlu0 %2097
      %2099 = vrot.lane.b32.xlu0 %v1862, 64
      %v2100 = vpop.permute.xlu0 %2099
      %2105 = vrot.lane.b32.xlu0 %v2034, 96
      %v2106 = vpop.permute.xlu0 %2105
      %2107 = vrot.lane.b32.xlu0 %v2082, 96
      %v2108 = vpop.permute.xlu0 %2107
      %v2111 = vsel %vm1210, %v1370, %v2090
      %v2112 = vsel %vm1210, %v1416, %v2092
      %vm2113 = vcmask 523264
      %v2114 = vsel %vm2113, %v2111, %v2098
      %v2115 = vsel %vm2113, %v2112, %v2100
      %vm2116 = vcmask 785408
      %v2117 = vsel %vm2116, %v2114, %v2106
      %v2118 = vsel %vm2116, %v2115, %v2108
      %v2119 = vpack.c.bf16 %v2118, %v2117
      %v2120 = vld [vmem:[%s762] sm:$0xf]
      %v2121 = vld [vmem:[%s762 + $0x4] sm:$0xf]
      %v2122 = vld [vmem:[%s762 + $0x8] sm:$0xf]
      %v2123 = vld [vmem:[%s762 + $0xc] sm:$0xf]
      %v2124 = vld [vmem:[%s762 + $0x10] sm:$0xf]
      %v2125 = vld [vmem:[%s762 + $0x14] sm:$0xf]
      %v2126 = vld [vmem:[%s762 + $0x18] sm:$0xf]
      %v2127 = vld [vmem:[%s762 + $0x1c] sm:$0xf]
      %v2128 = vld [vmem:[%s762 + $0x20] sm:$0xf]
      %v2129 = vld [vmem:[%s762 + $0x24] sm:$0xf]
      %v2130 = vld [vmem:[%s762 + $0x28] sm:$0xf]
      %v2131 = vld [vmem:[%s762 + $0x2c] sm:$0xf]
      %v2132 = vld [vmem:[%s762 + $0x30] sm:$0xf]
      %v2133 = vld [vmem:[%s762 + $0x34] sm:$0xf]
      %v2134 = vld [vmem:[%s762 + $0x38] sm:$0xf]
      %v2135 = vld [vmem:[%s762 + $0x3c] sm:$0xf]
      %v2136 = vld [vmem:[%s765] sm:$0x1]
      %v2138 = vlaneseq
      %v2139 = vshrl.u32 %v2138, 7
      %v2140 = vsub.s32 0, %v2139
      %v2141 = vrot.slane %v2136, %v2140
      %v2159 = vunpack.c.l.b16 %v2120
      %v2160 = vunpack.c.l.b16 %v2121
      %v2161 = vunpack.c.l.b16 %v2122
      %v2162 = vunpack.c.l.b16 %v2123
      %v2163 = vunpack.c.l.b16 %v2124
      %v2164 = vunpack.c.l.b16 %v2125
      %v2165 = vunpack.c.l.b16 %v2126
      %v2166 = vunpack.c.l.b16 %v2127
      %v2167 = vunpack.c.l.b16 %v2128
      %v2168 = vunpack.c.l.b16 %v2129
      %v2169 = vunpack.c.l.b16 %v2130
      %v2170 = vunpack.c.l.b16 %v2131
      %v2171 = vunpack.c.l.b16 %v2132
      %v2172 = vunpack.c.l.b16 %v2133
      %v2173 = vunpack.c.l.b16 %v2134
      %v2174 = vunpack.c.l.b16 %v2135
      %v2175 = vpack.c.b16 %v2160, %v2159
      %v2176 = vpack.c.b16 %v2162, %v2161
      %v2177 = vpack.c.b16 %v2164, %v2163
      %v2178 = vpack.c.b16 %v2166, %v2165
      %v2179 = vpack.c.b16 %v2168, %v2167
      %v2180 = vpack.c.b16 %v2170, %v2169
      %v2181 = vpack.c.b16 %v2172, %v2171
      %v2182 = vpack.c.b16 %v2174, %v2173
      %2191 = vmatprep.subr.bf16.mxu0 0
      %2192 = vmatpush1.bf16.msra.mxu0 %v2175
      %2193 = vmatprep.subr.bf16.mxu0 0
      %2194 = vmatpush1.bf16.msra.mxu0 %v2176
      %2195 = vmatprep.subr.bf16.mxu0 0
      %2196 = vmatpush1.bf16.msra.mxu0 %v2177
      %2197 = vmatprep.subr.bf16.mxu0 0
      %2198 = vmatpush1.bf16.msra.mxu0 %v2178
      %2199 = vmatprep.subr.bf16.mxu0 0
      %2200 = vmatpush1.bf16.msra.mxu0 %v2179
      %2201 = vmatprep.subr.bf16.mxu0 0
      %2202 = vmatpush1.bf16.msra.mxu0 %v2180
      %2203 = vmatprep.subr.bf16.mxu0 0
      %2204 = vmatpush1.bf16.msra.mxu0 %v2181
      %2205 = vmatprep.subr.bf16.mxu0 0
      %2206 = vmatpush1.bf16.msra.mxu0 %v2182
      %2207 = vmatprep.subr.bf16.mxu0 0
      %2208 = vmatpush1.bf16.msra.mxu0 0
      %2209 = vmatprep.subr.bf16.mxu0 0
      %2210 = vmatpush1.bf16.msra.mxu0 0
      %2211 = vmatprep.subr.bf16.mxu0 0
      %2212 = vmatpush1.bf16.msra.mxu0 0
      %2213 = vmatprep.subr.bf16.mxu0 0
      %2214 = vmatpush1.bf16.msra.mxu0 0
      %2215 = vmatprep.subr.bf16.mxu0 0
      %2216 = vmatpush1.bf16.msra.mxu0 0
      %2217 = vmatprep.subr.bf16.mxu0 0
      %2218 = vmatpush1.bf16.msra.mxu0 0
      %2219 = vmatprep.subr.bf16.mxu0 0
      %2220 = vmatpush1.bf16.msra.mxu0 0
      %2221 = vmatprep.subr.bf16.mxu0 0
      %2222 = vmatpush1.bf16.msra.mxu0 0
      %2223 = vmatprep.mubr.bf16.mxu0 0
      %2224 = vmatmul.mubr.bf16.gmra.mrb[0].mxu0 %v2119
      %v2225 = vpop.f32.mrb[0].mxu0
      %v2226 = vadd.f32 %v2141, %v2225
      %v2227 = vpop.f32.mrb[0].mxu0
      %v2228 = vpop.f32.mrb[0].mxu0
      %v2229 = vadd.f32 %v2141, %v2228
      %v2230 = vpop.f32.mrb[0].mxu0
      %2231 = vdwg.mxu0
      %v2232 = vadd.f32 %v926, %v2226
      %v2233 = vadd.f32 %v927, %v2229
      %v2234 = vld [vmem:[%s768] sm:$0x1]
      %v2235 = vld [vmem:[%s771] sm:$0x1]
      %2236 = vadd.xlane.f32.xlu0 %v2232
      %v2237 = vpop.xlane.xlu0 %2236
      %2238 = vadd.xlane.f32.xlu0 %v2233
      %v2239 = vpop.xlane.xlu0 %2238
      %v2240 = vmul.f32 %v2237, 0.03125
      %v2241 = vmul.f32 %v2239, 0.03125
      %v2242 = vmul.f32 %v2232, %v2232
      %v2243 = vmul.f32 %v2233, %v2233
      %2244 = vadd.xlane.f32.xlu0 %v2242
      %v2245 = vpop.xlane.xlu0 %2244
      %2246 = vadd.xlane.f32.xlu0 %v2243
      %v2247 = vpop.xlane.xlu0 %2246
      %v2248 = vmul.f32 %v2245, 0.03125
      %v2249 = vmul.f32 %v2247, 0.03125
      %v2250 = vmul.f32 %v2240, %v2240
      %v2251 = vmul.f32 %v2241, %v2241
      %v2252 = vsub.f32 %v2248, %v2250
      %v2253 = vsub.f32 %v2249, %v2251
      %v2254 = vsub.f32 %v2232, %v2240
      %v2255 = vsub.f32 %v2233, %v2241
      %v2256 = vadd.f32 %v2252, 1e-05
      %v2257 = vadd.f32 %v2253, 1e-05
      %v2258 = vrsqrt.pop %v2256
      %v2259 = vrsqrt.pop %v2257
      %v2260 = vmul.f32 %v2254, %v2258
      %v2261 = vmul.f32 %v2255, %v2259
      %v2263 = vlaneseq
      %v2264 = vshrl.u32 %v2263, 7
      %v2265 = vsub.s32 0, %v2264
      %v2266 = vrot.slane %v2234, %v2265
      %v2268 = vmul.f32 %v2260, %v2266
      %v2269 = vmul.f32 %v2261, %v2266
      %v2271 = vlaneseq
      %v2272 = vshrl.u32 %v2271, 7
      %v2273 = vsub.s32 0, %v2272
      %v2274 = vrot.slane %v2235, %v2273
      %v2276 = vadd.f32 %v2268, %v2274
      %v2277 = vadd.f32 %v2269, %v2274
      %v2278 = vpack.c.bf16 %v2277, %v2276
      %v2279 = vld [vmem:[%s776] sm:$0xf]
      %v2280 = vld [vmem:[%s776 + $0x4] sm:$0xf]
      %v2281 = vld [vmem:[%s776 + $0x8] sm:$0xf]
      %v2282 = vld [vmem:[%s776 + $0xc] sm:$0xf]
      %v2283 = vld [vmem:[%s776 + $0x10] sm:$0xf]
      %v2284 = vld [vmem:[%s776 + $0x14] sm:$0xf]
      %v2285 = vld [vmem:[%s776 + $0x18] sm:$0xf]
      %v2286 = vld [vmem:[%s776 + $0x1c] sm:$0xf]
      %v2287 = vld [vmem:[%s776 + $0x20] sm:$0xf]
      %v2288 = vld [vmem:[%s776 + $0x24] sm:$0xf]
      %v2289 = vld [vmem:[%s776 + $0x28] sm:$0xf]
      %v2290 = vld [vmem:[%s776 + $0x2c] sm:$0xf]
      %v2291 = vld [vmem:[%s776 + $0x30] sm:$0xf]
      %v2292 = vld [vmem:[%s776 + $0x34] sm:$0xf]
      %v2293 = vld [vmem:[%s776 + $0x38] sm:$0xf]
      %v2294 = vld [vmem:[%s776 + $0x3c] sm:$0xf]
      %v2295 = vld [vmem:[%s779] sm:$0x1]
      %v2297 = vlaneseq
      %v2298 = vshrl.u32 %v2297, 7
      %v2299 = vsub.s32 0, %v2298
      %v2300 = vrot.slane %v2295, %v2299
      %v2318 = vunpack.c.l.b16 %v2279
      %v2319 = vunpack.c.l.b16 %v2280
      %v2320 = vunpack.c.l.b16 %v2281
      %v2321 = vunpack.c.l.b16 %v2282
      %v2322 = vunpack.c.l.b16 %v2283
      %v2323 = vunpack.c.l.b16 %v2284
      %v2324 = vunpack.c.l.b16 %v2285
      %v2325 = vunpack.c.l.b16 %v2286
      %v2326 = vunpack.c.l.b16 %v2287
      %v2327 = vunpack.c.l.b16 %v2288
      %v2328 = vunpack.c.l.b16 %v2289
      %v2329 = vunpack.c.l.b16 %v2290
      %v2330 = vunpack.c.l.b16 %v2291
      %v2331 = vunpack.c.l.b16 %v2292
      %v2332 = vunpack.c.l.b16 %v2293
      %v2333 = vunpack.c.l.b16 %v2294
      %v2334 = vpack.c.b16 %v2319, %v2318
      %v2335 = vpack.c.b16 %v2321, %v2320
      %v2336 = vpack.c.b16 %v2323, %v2322
      %v2337 = vpack.c.b16 %v2325, %v2324
      %v2338 = vpack.c.b16 %v2327, %v2326
      %v2339 = vpack.c.b16 %v2329, %v2328
      %v2340 = vpack.c.b16 %v2331, %v2330
      %v2341 = vpack.c.b16 %v2333, %v2332
      %2350 = vmatprep.subr.bf16.mxu0 0
      %2351 = vmatpush1.bf16.msra.mxu0 %v2334
      %2352 = vmatprep.subr.bf16.mxu0 0
      %2353 = vmatpush1.bf16.msra.mxu0 %v2335
      %2354 = vmatprep.subr.bf16.mxu0 0
      %2355 = vmatpush1.bf16.msra.mxu0 %v2336
      %2356 = vmatprep.subr.bf16.mxu0 0
      %2357 = vmatpush1.bf16.msra.mxu0 %v2337
      %2358 = vmatprep.subr.bf16.mxu0 0
      %2359 = vmatpush1.bf16.msra.mxu0 %v2338
      %2360 = vmatprep.subr.bf16.mxu0 0
      %2361 = vmatpush1.bf16.msra.mxu0 %v2339
      %2362 = vmatprep.subr.bf16.mxu0 0
      %2363 = vmatpush1.bf16.msra.mxu0 %v2340
      %2364 = vmatprep.subr.bf16.mxu0 0
      %2365 = vmatpush1.bf16.msra.mxu0 %v2341
      %2366 = vmatprep.subr.bf16.mxu0 0
      %2367 = vmatpush1.bf16.msra.mxu0 0
      %2368 = vmatprep.subr.bf16.mxu0 0
      %2369 = vmatpush1.bf16.msra.mxu0 0
      %2370 = vmatprep.subr.bf16.mxu0 0
      %2371 = vmatpush1.bf16.msra.mxu0 0
      %2372 = vmatprep.subr.bf16.mxu0 0
      %2373 = vmatpush1.bf16.msra.mxu0 0
      %2374 = vmatprep.subr.bf16.mxu0 0
      %2375 = vmatpush1.bf16.msra.mxu0 0
      %2376 = vmatprep.subr.bf16.mxu0 0
      %2377 = vmatpush1.bf16.msra.mxu0 0
      %2378 = vmatprep.subr.bf16.mxu0 0
      %2379 = vmatpush1.bf16.msra.mxu0 0
      %2380 = vmatprep.subr.bf16.mxu0 0
      %2381 = vmatpush1.bf16.msra.mxu0 0
      %2382 = vmatprep.mubr.bf16.mxu0 0
      %2383 = vmatmul.mubr.bf16.gmra.mrb[0].mxu0 %v2278
      %v2384 = vpop.f32.mrb[0].mxu0
      %v2385 = vadd.f32 %v2300, %v2384
      %v2386 = vpop.f32.mrb[0].mxu0
      %v2387 = vpop.f32.mrb[0].mxu0
      %v2388 = vadd.f32 %v2300, %v2387
      %v2389 = vpop.f32.mrb[0].mxu0
      %2390 = vdwg.mxu0
      %v2391 = vmax.f32 %v2385, 0.0
      %v2392 = vmax.f32 %v2388, 0.0
      %v2393 = vpack.c.bf16 %v2392, %v2391
      %v2394 = vld [vmem:[%s784] sm:$0xf]
      %v2395 = vld [vmem:[%s784 + $0x4] sm:$0xf]
      %v2396 = vld [vmem:[%s784 + $0x8] sm:$0xf]
      %v2397 = vld [vmem:[%s784 + $0xc] sm:$0xf]
      %v2398 = vld [vmem:[%s784 + $0x10] sm:$0xf]
      %v2399 = vld [vmem:[%s784 + $0x14] sm:$0xf]
      %v2400 = vld [vmem:[%s784 + $0x18] sm:$0xf]
      %v2401 = vld [vmem:[%s784 + $0x1c] sm:$0xf]
      %v2402 = vld [vmem:[%s784 + $0x20] sm:$0xf]
      %v2403 = vld [vmem:[%s784 + $0x24] sm:$0xf]
      %v2404 = vld [vmem:[%s784 + $0x28] sm:$0xf]
      %v2405 = vld [vmem:[%s784 + $0x2c] sm:$0xf]
      %v2406 = vld [vmem:[%s784 + $0x30] sm:$0xf]
      %v2407 = vld [vmem:[%s784 + $0x34] sm:$0xf]
      %v2408 = vld [vmem:[%s784 + $0x38] sm:$0xf]
      %v2409 = vld [vmem:[%s784 + $0x3c] sm:$0xf]
      %v2410 = vld [vmem:[%s787] sm:$0x1]
      %v2412 = vlaneseq
      %v2413 = vshrl.u32 %v2412, 7
      %v2414 = vsub.s32 0, %v2413
      %v2415 = vrot.slane %v2410, %v2414
      %v2433 = vunpack.c.l.b16 %v2394
      %v2434 = vunpack.c.l.b16 %v2395
      %v2435 = vunpack.c.l.b16 %v2396
      %v2436 = vunpack.c.l.b16 %v2397
      %v2437 = vunpack.c.l.b16 %v2398
      %v2438 = vunpack.c.l.b16 %v2399
      %v2439 = vunpack.c.l.b16 %v2400
      %v2440 = vunpack.c.l.b16 %v2401
      %v2441 = vunpack.c.l.b16 %v2402
      %v2442 = vunpack.c.l.b16 %v2403
      %v2443 = vunpack.c.l.b16 %v2404
      %v2444 = vunpack.c.l.b16 %v2405
      %v2445 = vunpack.c.l.b16 %v2406
      %v2446 = vunpack.c.l.b16 %v2407
      %v2447 = vunpack.c.l.b16 %v2408
      %v2448 = vunpack.c.l.b16 %v2409
      %v2449 = vpack.c.b16 %v2434, %v2433
      %v2450 = vpack.c.b16 %v2436, %v2435
      %v2451 = vpack.c.b16 %v2438, %v2437
      %v2452 = vpack.c.b16 %v2440, %v2439
      %v2453 = vpack.c.b16 %v2442, %v2441
      %v2454 = vpack.c.b16 %v2444, %v2443
      %v2455 = vpack.c.b16 %v2446, %v2445
      %v2456 = vpack.c.b16 %v2448, %v2447
      %2465 = vmatprep.subr.bf16.mxu0 0
      %2466 = vmatpush1.bf16.msra.mxu0 %v2449
      %2467 = vmatprep.subr.bf16.mxu0 0
      %2468 = vmatpush1.bf16.msra.mxu0 %v2450
      %2469 = vmatprep.subr.bf16.mxu0 0
      %2470 = vmatpush1.bf16.msra.mxu0 %v2451
      %2471 = vmatprep.subr.bf16.mxu0 0
      %2472 = vmatpush1.bf16.msra.mxu0 %v2452
      %2473 = vmatprep.subr.bf16.mxu0 0
      %2474 = vmatpush1.bf16.msra.mxu0 %v2453
      %2475 = vmatprep.subr.bf16.mxu0 0
      %2476 = vmatpush1.bf16.msra.mxu0 %v2454
      %2477 = vmatprep.subr.bf16.mxu0 0
      %2478 = vmatpush1.bf16.msra.mxu0 %v2455
      %2479 = vmatprep.subr.bf16.mxu0 0
      %2480 = vmatpush1.bf16.msra.mxu0 %v2456
      %2481 = vmatprep.subr.bf16.mxu0 0
      %2482 = vmatpush1.bf16.msra.mxu0 0
      %2483 = vmatprep.subr.bf16.mxu0 0
      %2484 = vmatpush1.bf16.msra.mxu0 0
      %2485 = vmatprep.subr.bf16.mxu0 0
      %2486 = vmatpush1.bf16.msra.mxu0 0
      %2487 = vmatprep.subr.bf16.mxu0 0
      %2488 = vmatpush1.bf16.msra.mxu0 0
      %2489 = vmatprep.subr.bf16.mxu0 0
      %2490 = vmatpush1.bf16.msra.mxu0 0
      %2491 = vmatprep.subr.bf16.mxu0 0
      %2492 = vmatpush1.bf16.msra.mxu0 0
      %2493 = vmatprep.subr.bf16.mxu0 0
      %2494 = vmatpush1.bf16.msra.mxu0 0
      %2495 = vmatprep.subr.bf16.mxu0 0
      %2496 = vmatpush1.bf16.msra.mxu0 0
      %2497 = vmatprep.mubr.bf16.mxu0 0
      %2498 = vmatmul.mubr.bf16.gmra.mrb[0].mxu0 %v2393
      %v2499 = vpop.f32.mrb[0].mxu0
      %v2500 = vadd.f32 %v2415, %v2499
      %v2501 = vpop.f32.mrb[0].mxu0
      %v2502 = vpop.f32.mrb[0].mxu0
      %v2503 = vadd.f32 %v2415, %v2502
      %v2504 = vpop.f32.mrb[0].mxu0
      %2505 = vdwg.mxu0
      %v2506 = vadd.f32 %v2276, %v2500
      %v2507 = vadd.f32 %v2277, %v2503
      %v2508 = vld [vmem:[%s790] sm:$0x1]
      %v2509 = vld [vmem:[%s793] sm:$0x1]
      %2510 = vadd.xlane.f32.xlu0 %v2506
      %v2511 = vpop.xlane.xlu0 %2510
      %2512 = vadd.xlane.f32.xlu0 %v2507
      %v2513 = vpop.xlane.xlu0 %2512
      %v2514 = vmul.f32 %v2511, 0.03125
      %v2515 = vmul.f32 %v2513, 0.03125
      %v2516 = vmul.f32 %v2506, %v2506
      %v2517 = vmul.f32 %v2507, %v2507
      %2518 = vadd.xlane.f32.xlu0 %v2516
      %v2519 = vpop.xlane.xlu0 %2518
      %2520 = vadd.xlane.f32.xlu0 %v2517
      %v2521 = vpop.xlane.xlu0 %2520
      %v2522 = vmul.f32 %v2519, 0.03125
      %v2523 = vmul.f32 %v2521, 0.03125
      %v2524 = vmul.f32 %v2514, %v2514
      %v2525 = vmul.f32 %v2515, %v2515
      %v2526 = vsub.f32 %v2522, %v2524
      %v2527 = vsub.f32 %v2523, %v2525
      %v2528 = vsub.f32 %v2506, %v2514
      %v2529 = vsub.f32 %v2507, %v2515
      %v2530 = vadd.f32 %v2526, 1e-05
      %v2531 = vadd.f32 %v2527, 1e-05
      %v2532 = vrsqrt.pop %v2530
      %v2533 = vrsqrt.pop %v2531
      %v2534 = vmul.f32 %v2528, %v2532
      %v2535 = vmul.f32 %v2529, %v2533
      %v2537 = vlaneseq
      %v2538 = vshrl.u32 %v2537, 7
      %v2539 = vsub.s32 0, %v2538
      %v2540 = vrot.slane %v2508, %v2539
      %v2542 = vmul.f32 %v2534, %v2540
      %v2543 = vmul.f32 %v2535, %v2540
      %v2545 = vlaneseq
      %v2546 = vshrl.u32 %v2545, 7
      %v2547 = vsub.s32 0, %v2546
      %v2548 = vrot.slane %v2509, %v2547
      %v2550 = vadd.f32 %v2542, %v2548
      %v2551 = vadd.f32 %v2543, %v2548
      %2552 = vst [vmem:[#allocation2] sm:$0xff] %v2550
      %2553 = vst [vmem:[#allocation2 + $0x8] sm:$0xff] %v2551
      %p2554 = scmp.eq.s32.totalorder %s33, 1
      // Predicated region
      $region93: #{speech_transformer_encoder.1} parent=87 // pred_check
        %p2555 = pneg %p2554
      $region94: #{speech_transformer_encoder.1} parent=87 // pred_check_branch
        %2557 = sbr.rel (%p2555) target = $region96
      $region95: #{speech_transformer_encoder.1} parent=87 // pred_region
        %2558 = vst [vmem:[%s798] sm:$0xff] %v2550
        %2559 = vst [vmem:[%s798 + $0x8] sm:$0xff] %v2551
      $region96: #{speech_transformer_encoder.1} parent=87 // pred_fallthru
        _
      %s2560 = smul.u32 2, %s32
      %p2561 = scmp.lt.s32.totalorder %s2560, 1
      %s2562 = scalar_select %p2561, %s2560, 1
      %s2563 = smul.addr %s2562, 8
      %s2564 = scalar_lea.vmem %s17, %s2563
      // Predicated region
      $region97: #{speech_transformer_encoder.1} parent=87 // pred_check
        %p2565 = pneg %p490
      $region98: #{speech_transformer_encoder.1} parent=87 // pred_check_branch
        %2567 = sbr.rel (%p2565) target = $region100
      $region99: #{speech_transformer_encoder.1} parent=87 // pred_region
        %s2568 = smul.u32 2, %s32
      $region100: #{speech_transformer_encoder.1} parent=87 // pred_fallthru
        _
      // Predicated region
      $region101: #{speech_transformer_encoder.1} parent=87 // pred_check
        %p2569 = pneg %p490
      $region102: #{speech_transformer_encoder.1} parent=87 // pred_check_branch
        %2571 = sbr.rel (%p2569) target = $region104
      $region103: #{speech_transformer_encoder.1} parent=87 // pred_region
        %s2572 = smul.u32 2, %s32
        %p2573 = scmp.lt.s32.totalorder %s2572, 1
        %s2574 = scalar_select %p2573, %s2572, 1
        %s2575 = smul.addr %s2574, 8
        %s2576 = scalar_lea.vmem %s17, %s2575
      $region104: #{speech_transformer_encoder.1} parent=87 // pred_fallthru
        _
    $region88: #{speech_transformer_encoder.1} parent=5 // pred_fallthru
      _
    %p2577 = scmp.le.s32.totalorder 2, %s23
    // Predicated region
    $region105: #{speech_transformer_encoder.1} parent=5 // pred_check
      %p2578 = pneg %p2577
    $region106: #{speech_transformer_encoder.1} parent=5 // pred_check_branch
      %2580 = sbr.rel (%p2578) target = $region108
    $region107: #{speech_transformer_encoder.1} parent=5 // pred_region
      %s2581 = ssub.s32 %s23, 2
    $region108: #{speech_transformer_encoder.1} parent=5 // pred_fallthru
      _
  $region6: #{speech_transformer_encoder.1} parent=0 // loop_footer
    %s27 = sadd.s32 1, %s23
  $region7: #{speech_transformer_encoder.1} parent=0 // loop_footer_branch
    %22 = sbr.rel target = $region3
  $region8: #{speech_transformer_encoder.1} parent=0 // loop_exit
    _

</llo_original>
